<compile_context>
chip_gen: v7x
topology: tpu7x:2x2x1
jax: 0.10.0
libtpu: 0.0.40
codegen_flags: <defaults>
</compile_context>

<pallas_src>
import functools
import math

import jax
import jax.numpy as jnp
import numpy as np
from jax.experimental import pallas as pl
from jax.experimental.pallas import tpu as pltpu


def _layer_norm(v, w, b, eps=1e-5):
    # single-pass variance: mean(x*x) - mu*mu (f32 throughout)
    mu = jnp.mean(v, axis=-1, keepdims=True)
    var = jnp.mean(v * v, axis=-1, keepdims=True) - mu * mu
    return (v - mu) * jax.lax.rsqrt(var + eps) * w + b


def _mae_kernel(d_model, nhead, num_layers, batch_block, seq_len,
                x_ref, pe_ref, wp_ref, bp_ref,
                wqkv_ref, bqkv_ref, outw_ref, outb_ref,
                ln1w_ref, ln1b_ref, ln2w_ref, ln2b_ref,
                w1_ref, b1_ref, w2_ref, b2_ref,
                wd_ref, bd_ref, o_ref):
    D = d_model
    H = nhead
    hd = D // H
    BB, S = batch_block, seq_len
    R = BB * S                       # flattened rows handled this grid step
    f32 = jnp.float32
    bf16 = jnp.bfloat16

    x = x_ref[...]                                                   # (R, F) bf16

    # input projection (sqrt(d_model) folded into wp/bp) + positional encoding
    h = jnp.dot(x, wp_ref[...], preferred_element_type=f32) + bp_ref[...]   # (R, D)
    h = (h.reshape(BB, S, D) + pe_ref[...][None]).reshape(R, D)             # free reshape

    for l in range(num_layers):
        # ---- self-attention block (post-LN) ----
        hb = h.astype(bf16)
        # fused QKV: single lane-dense (R, D) @ (D, 3D) matmul, f32 accumulate
        qkv = jnp.dot(hb, wqkv_ref[l], preferred_element_type=f32) + bqkv_ref[l]  # (R, 3D)
        q = qkv[:, 0 * D:1 * D]      # 1/sqrt(hd) already folded into these columns
        k = qkv[:, 1 * D:2 * D]
        v = qkv[:, 2 * D:3 * D]

        # attention batched over the whole (BB, S) block; loop is over the fixed
        # head count only (head split = cheap 16-lane slices after the big matmul)
        ctx_heads = []
        for hh in range(H):
            cs = slice(hh * hd, (hh + 1) * hd)
            qh = q[:, cs].reshape(BB, S, hd).astype(bf16)
            kh = k[:, cs].reshape(BB, S, hd).astype(bf16)
            vh = v[:, cs].reshape(BB, S, hd).astype(bf16)
            s = jnp.einsum('bqd,bkd->bqk', qh, kh,
                           preferred_element_type=f32)               # (BB, S, S)
            s = s - jnp.max(s, axis=-1, keepdims=True)
            p = jnp.exp(s)
            p = p * pl.reciprocal(jnp.sum(p, axis=-1, keepdims=True), approx=True)
            ctx_heads.append(
                jnp.einsum('bqk,bkd->bqd', p.astype(bf16), vh,
                           preferred_element_type=f32).reshape(R, hd))
        ctx = jnp.concatenate(ctx_heads, axis=-1)                     # (R, D)

        # single (R, D) @ (D, D) output projection
        attn = jnp.dot(ctx.astype(bf16), outw_ref[l],
                       preferred_element_type=f32) + outb_ref[l]
        h = _layer_norm(h + attn, ln1w_ref[l], ln1b_ref[l])

        # ---- feed-forward block (ReLU) ----
        ff = jnp.dot(h.astype(bf16), w1_ref[l],
                     preferred_element_type=f32) + b1_ref[l]
        ff = jnp.maximum(ff, 0.0)
        ff = jnp.dot(ff.astype(bf16), w2_ref[l],
                     preferred_element_type=f32) + b2_ref[l]
        h = _layer_norm(h + ff, ln2w_ref[l], ln2b_ref[l])

    # decoder head into a lane-dense, zero-padded output slab
    o_ref[...] = jnp.dot(h.astype(bf16), wd_ref[...],
                         preferred_element_type=f32) + bd_ref[...]


def make_positional_encoding(d_model, max_len):
    position = jnp.arange(max_len, dtype=jnp.float32)[:, None]
    div_term = jnp.exp(jnp.arange(0, d_model, 2, dtype=jnp.float32)
                       * (-math.log(10000.0) / d_model))
    pe = jnp.zeros((max_len, d_model), dtype=jnp.float32)
    pe = pe.at[:, 0::2].set(jnp.sin(position * div_term))
    pe = pe.at[:, 1::2].set(jnp.cos(position * div_term))
    return pe


def init_params(key, feature_dim, d_model, nhead, num_layers, dim_ff, max_len=64):
    """Deterministic synthetic weights in PyTorch-equivalent (in_dim, out_dim) layout."""
    ks = jax.random.split(key, 32)
    it = iter(ks)
    s = 0.02

    def n(shape):
        return (s * jax.random.normal(next(it), shape)).astype(jnp.float32)

    L = num_layers
    return dict(
        pe=make_positional_encoding(d_model, max_len),
        wp=n((feature_dim, d_model)),   bp=n((1, d_model)),
        inw=n((L, d_model, 3 * d_model)), inb=n((L, 1, 3 * d_model)),
        outw=n((L, d_model, d_model)),    outb=n((L, 1, d_model)),
        ln1w=jnp.ones((L, 1, d_model), jnp.float32),
        ln1b=jnp.zeros((L, 1, d_model), jnp.float32),
        ln2w=jnp.ones((L, 1, d_model), jnp.float32),
        ln2b=jnp.zeros((L, 1, d_model), jnp.float32),
        w1=n((L, d_model, dim_ff)), b1=n((L, 1, dim_ff)),
        w2=n((L, dim_ff, d_model)), b2=n((L, 1, d_model)),
        wd=n((d_model, feature_dim)), bd=n((1, feature_dim)),
    )


def prepare_params(params, *, d_model, nhead, num_layers, feature_dim):
    """One-time weight transform: fold scales, fused QKV matrix, bf16 cast, pad head.

    Independent of batch size / batch_block / seq_len.
    """
    D, L = d_model, num_layers
    hd = D // nhead
    sqrt_d = math.sqrt(D)
    inv_sqrt_hd = 1.0 / math.sqrt(hd)
    F = feature_dim
    out_pad = max(128, ((F + 127) // 128) * 128)
    bf16 = jnp.bfloat16

    # fold 1/sqrt(head_dim) into the Q columns of the fused (D, 3D) QKV weight/bias
    scale = jnp.concatenate([jnp.full((D,), inv_sqrt_hd, jnp.float32),
                             jnp.ones((2 * D,), jnp.float32)])
    wqkv = params["inw"] * scale[None, None, :]          # (L, D, 3D)
    bqkv = params["inb"] * scale[None, None, :]          # (L, 1, 3D)

    wd_pad = jnp.zeros((D, out_pad), jnp.float32).at[:, :F].set(params["wd"])
    bd_pad = jnp.zeros((1, out_pad), jnp.float32).at[:, :F].set(params["bd"])

    return dict(
        pe=params["pe"],                                  # (max_len, D), sliced to S by wrapper
        wp=(params["wp"] * sqrt_d).astype(bf16), bp=params["bp"] * sqrt_d,
        wqkv=wqkv.astype(bf16), bqkv=bqkv,
        outw=params["outw"].astype(bf16), outb=params["outb"],
        ln1w=params["ln1w"], ln1b=params["ln1b"],
        ln2w=params["ln2w"], ln2b=params["ln2b"],
        w1=params["w1"].astype(bf16), b1=params["b1"],
        w2=params["w2"].astype(bf16), b2=params["b2"],
        wd=wd_pad.astype(bf16), bd=bd_pad,
    )


def masked_autoencoder_forward(x, kparams, *, d_model, nhead, num_layers,
                               batch_block=None):
    B, S, F = x.shape
    BB = B if batch_block is None else batch_block
    assert B % BB == 0, (B, BB)
    nblocks = B // BB
    R = BB * S
    out_pad = kparams["wd"].shape[1]

    x2 = x.reshape(B * S, F).astype(jnp.bfloat16)         # bf16 input: half the DMA
    pe = kparams["pe"][:S]                                 # (S, D)

    args = [x2, pe, kparams["wp"], kparams["bp"],
            kparams["wqkv"], kparams["bqkv"], kparams["outw"], kparams["outb"],
            kparams["ln1w"], kparams["ln1b"], kparams["ln2w"], kparams["ln2b"],
            kparams["w1"], kparams["b1"], kparams["w2"], kparams["b2"],
            kparams["wd"], kparams["bd"]]

    def full_spec(a):
        nd = a.ndim
        return pl.BlockSpec(a.shape, lambda i, _nd=nd: (0,) * _nd)

    in_specs = ([pl.BlockSpec((R, F), lambda i: (i, 0))]
                + [full_spec(a) for a in args[1:]])

    kernel = functools.partial(_mae_kernel, d_model, nhead, num_layers, BB, S)
    # Note: ~0.3 MB of weights + small activation blocks -> default scoped VMEM is
    # ample on v5e/v6e/v7x.  If the model / batch_block is scaled up, cap R so the
    # per-step live set fits (v7x has half the VMEM of v5e/v6e) and set
    # pltpu.CompilerParams(vmem_limit_bytes=...).
    out = pl.pallas_call(
        kernel,
        out_shape=jax.ShapeDtypeStruct((B * S, out_pad), jnp.float32),
        grid=(nblocks,),
        in_specs=in_specs,
        out_specs=pl.BlockSpec((R, out_pad), lambda i: (i, 0)),
        compiler_params=pltpu.CompilerParams(dimension_semantics=("parallel",)),
    )(*args)

    return out[:, :F].reshape(B, S, F)


def reference_forward(x, params, *, d_model, nhead, num_layers):
    """Pure-JAX f32 reference mirroring the PyTorch forward (eval mode)."""
    B, S, F = x.shape
    D = d_model
    hd = D // nhead
    pe = params["pe"][:S]
    h = x @ params["wp"] + params["bp"]
    h = h * math.sqrt(D) + pe[None]
    for l in range(num_layers):
        qkv = h @ params["inw"][l] + params["inb"][l]
        q, k, v = qkv[..., :D], qkv[..., D:2 * D], qkv[..., 2 * D:]
        qh = q.reshape(B, S, nhead, hd).transpose(0, 2, 1, 3) / math.sqrt(hd)
        kh = k.reshape(B, S, nhead, hd).transpose(0, 2, 1, 3)
        vh = v.reshape(B, S, nhead, hd).transpose(0, 2, 1, 3)
        sc = jnp.einsum("bhqd,bhkd->bhqk", qh, kh)
        p = jax.nn.softmax(sc, axis=-1)
        a = jnp.einsum("bhqk,bhkd->bhqd", p, vh).transpose(0, 2, 1, 3).reshape(B, S, D)
        a = a @ params["outw"][l] + params["outb"][l]
        h = _layer_norm(h + a, params["ln1w"][l], params["ln1b"][l])
        ff = jnp.maximum(h @ params["w1"][l] + params["b1"][l], 0.0)
        ff = ff @ params["w2"][l] + params["b2"][l]
        h = _layer_norm(h + ff, params["ln2w"][l], params["ln2b"][l])
    return h @ params["wd"] + params["bd"]


if __name__ == "__main__":
    B, S, F = 4, 8, 8
    D, NHEAD, NLAYERS, DFF = 64, 4, 2, 256

    key = jax.random.PRNGKey(0)
    kx, kp = jax.random.split(key)
    x = jax.random.normal(kx, (B, S, F), dtype=jnp.float32)
    params = init_params(kp, F, D, NHEAD, NLAYERS, DFF, max_len=64)

    # one-time weight preparation (fold scales, fused QKV, bf16, padded decoder head)
    kparams = prepare_params(params, d_model=D, nhead=NHEAD, num_layers=NLAYERS,
                             feature_dim=F)

    # batch_block=2 -> grid=(2,) parallel steps (feeds both v7x TensorCores /
    # keeps the pipeline busy); for large batches pick batch_block so R = BB*S
    # is a multiple of 128/256.
    fwd = jax.jit(functools.partial(masked_autoencoder_forward,
                                    d_model=D, nhead=NHEAD, num_layers=NLAYERS,
                                    batch_block=2))
    out = jax.block_until_ready(fwd(x, kparams))
    assert out.shape == (B, S, F), out.shape

    ref = jax.block_until_ready(
        reference_forward(x, params, d_model=D, nhead=NHEAD, num_layers=NLAYERS))
    # bf16 MXU inputs with f32 accumulation (plus EUP approx reciprocal in softmax):
    # compare against the f32 reference with a tolerance sized for bf16 rounding.
    np.testing.assert_allclose(np.asarray(out), np.asarray(ref), atol=2e-2, rtol=2e-2)

    print("KERNEL_OK")
</pallas_src>

<mosaic_0001>
module attributes {stable_mosaic.version = 11 : i64} {
  func.func @_mae_kernel(%arg0: i32, %arg1: memref<16x8xbf16, #tpu.memory_space<vmem>>, %arg2: memref<8x64xf32, #tpu.memory_space<vmem>>, %arg3: memref<8x64xbf16, #tpu.memory_space<vmem>>, %arg4: memref<1x64xf32, #tpu.memory_space<vmem>>, %arg5: memref<2x64x192xbf16, #tpu.memory_space<vmem>>, %arg6: memref<2x1x192xf32, #tpu.memory_space<vmem>>, %arg7: memref<2x64x64xbf16, #tpu.memory_space<vmem>>, %arg8: memref<2x1x64xf32, #tpu.memory_space<vmem>>, %arg9: memref<2x1x64xf32, #tpu.memory_space<vmem>>, %arg10: memref<2x1x64xf32, #tpu.memory_space<vmem>>, %arg11: memref<2x1x64xf32, #tpu.memory_space<vmem>>, %arg12: memref<2x1x64xf32, #tpu.memory_space<vmem>>, %arg13: memref<2x64x256xbf16, #tpu.memory_space<vmem>>, %arg14: memref<2x1x256xf32, #tpu.memory_space<vmem>>, %arg15: memref<2x256x64xbf16, #tpu.memory_space<vmem>>, %arg16: memref<2x1x64xf32, #tpu.memory_space<vmem>>, %arg17: memref<64x128xbf16, #tpu.memory_space<vmem>>, %arg18: memref<1x128xf32, #tpu.memory_space<vmem>>, %arg19: memref<16x128xf32, #tpu.memory_space<vmem>>) attributes {dimension_semantics = [#tpu.dimension_semantics<parallel>], iteration_bounds = array<i64: 2>, scalar_prefetch = 0 : i64, scratch_operands = 0 : i64, tpu.core_type = #tpu.core_type<tc>, window_params = [{transform_indices = @transform_0, window_bounds = array<i64: 16, 8>}, {pipeline_mode = #tpu.pipeline_mode<synchronous>, transform_indices = @transform_1, window_bounds = array<i64: 8, 64>}, {pipeline_mode = #tpu.pipeline_mode<synchronous>, transform_indices = @transform_2, window_bounds = array<i64: 8, 64>}, {pipeline_mode = #tpu.pipeline_mode<synchronous>, transform_indices = @transform_3, window_bounds = array<i64: 1, 64>}, {pipeline_mode = #tpu.pipeline_mode<synchronous>, transform_indices = @transform_4, window_bounds = array<i64: 2, 64, 192>}, {pipeline_mode = #tpu.pipeline_mode<synchronous>, transform_indices = @transform_5, window_bounds = array<i64: 2, 1, 192>}, {pipeline_mode = #tpu.pipeline_mode<synchronous>, transform_indices = @transform_6, window_bounds = array<i64: 2, 64, 64>}, {pipeline_mode = #tpu.pipeline_mode<synchronous>, transform_indices = @transform_7, window_bounds = array<i64: 2, 1, 64>}, {pipeline_mode = #tpu.pipeline_mode<synchronous>, transform_indices = @transform_8, window_bounds = array<i64: 2, 1, 64>}, {pipeline_mode = #tpu.pipeline_mode<synchronous>, transform_indices = @transform_9, window_bounds = array<i64: 2, 1, 64>}, {pipeline_mode = #tpu.pipeline_mode<synchronous>, transform_indices = @transform_10, window_bounds = array<i64: 2, 1, 64>}, {pipeline_mode = #tpu.pipeline_mode<synchronous>, transform_indices = @transform_11, window_bounds = array<i64: 2, 1, 64>}, {pipeline_mode = #tpu.pipeline_mode<synchronous>, transform_indices = @transform_12, window_bounds = array<i64: 2, 64, 256>}, {pipeline_mode = #tpu.pipeline_mode<synchronous>, transform_indices = @transform_13, window_bounds = array<i64: 2, 1, 256>}, {pipeline_mode = #tpu.pipeline_mode<synchronous>, transform_indices = @transform_14, window_bounds = array<i64: 2, 256, 64>}, {pipeline_mode = #tpu.pipeline_mode<synchronous>, transform_indices = @transform_15, window_bounds = array<i64: 2, 1, 64>}, {pipeline_mode = #tpu.pipeline_mode<synchronous>, transform_indices = @transform_16, window_bounds = array<i64: 64, 128>}, {pipeline_mode = #tpu.pipeline_mode<synchronous>, transform_indices = @transform_17, window_bounds = array<i64: 1, 128>}, {transform_indices = @transform_18, window_bounds = array<i64: 16, 128>}]} {
    %c0 = arith.constant 0 : index
    %c0_0 = arith.constant 0 : index
    %0 = vector.load %arg1[%c0, %c0_0] : memref<16x8xbf16, #tpu.memory_space<vmem>>, vector<16x8xbf16>
    %c0_1 = arith.constant 0 : index
    %c0_2 = arith.constant 0 : index
    %1 = vector.load %arg3[%c0_1, %c0_2] : memref<8x64xbf16, #tpu.memory_space<vmem>>, vector<8x64xbf16>
    %cst = arith.constant dense<0.000000e+00> : vector<16x64xf32>
    %2 = tpu.matmul %0, %1, %cst {dimension_numbers = #tpu.dot_dimension_numbers<[1], [0], [0], [1], [0, 0, 1, 1], [], []>} : vector<16x8xbf16>, vector<8x64xbf16>, vector<16x64xf32> -> vector<16x64xf32>
    %c0_3 = arith.constant 0 : index
    %c0_4 = arith.constant 0 : index
    %3 = vector.load %arg4[%c0_3, %c0_4] : memref<1x64xf32, #tpu.memory_space<vmem>>, vector<1x64xf32>
    %4 = vector.broadcast %3 : vector<1x64xf32> to vector<16x64xf32>
    %5 = arith.addf %2, %4 : vector<16x64xf32>
    %6 = vector.shape_cast %5 : vector<16x64xf32> to vector<2x8x64xf32>
    %c0_5 = arith.constant 0 : index
    %c0_6 = arith.constant 0 : index
    %7 = vector.load %arg2[%c0_5, %c0_6] : memref<8x64xf32, #tpu.memory_space<vmem>>, vector<8x64xf32>
    %8 = vector.shape_cast %7 : vector<8x64xf32> to vector<1x8x64xf32>
    %9 = vector.broadcast %8 : vector<1x8x64xf32> to vector<2x8x64xf32>
    %10 = arith.addf %6, %9 : vector<2x8x64xf32>
    %11 = vector.shape_cast %10 : vector<2x8x64xf32> to vector<16x64xf32>
    %12 = arith.truncf %11 : vector<16x64xf32> to vector<16x64xbf16>
    %c0_7 = arith.constant 0 : index
    %c0_8 = arith.constant 0 : index
    %c0_9 = arith.constant 0 : index
    %13 = vector.load %arg5[%c0_7, %c0_8, %c0_9] : memref<2x64x192xbf16, #tpu.memory_space<vmem>>, vector<1x64x192xbf16>
    %14 = vector.shape_cast %13 : vector<1x64x192xbf16> to vector<64x192xbf16>
    %cst_10 = arith.constant dense<0.000000e+00> : vector<16x192xf32>
    %15 = tpu.matmul %12, %14, %cst_10 {dimension_numbers = #tpu.dot_dimension_numbers<[1], [0], [0], [1], [0, 0, 1, 1], [], []>} : vector<16x64xbf16>, vector<64x192xbf16>, vector<16x192xf32> -> vector<16x192xf32>
    %c0_11 = arith.constant 0 : index
    %c0_12 = arith.constant 0 : index
    %c0_13 = arith.constant 0 : index
    %16 = vector.load %arg6[%c0_11, %c0_12, %c0_13] : memref<2x1x192xf32, #tpu.memory_space<vmem>>, vector<1x1x192xf32>
    %17 = vector.shape_cast %16 : vector<1x1x192xf32> to vector<1x192xf32>
    %18 = vector.broadcast %17 : vector<1x192xf32> to vector<16x192xf32>
    %19 = arith.addf %15, %18 : vector<16x192xf32>
    %20 = vector.extract_strided_slice %19 {offsets = [0, 0], sizes = [16, 64], strides = [1, 1]} : vector<16x192xf32> to vector<16x64xf32>
    %21 = vector.extract_strided_slice %19 {offsets = [0, 64], sizes = [16, 64], strides = [1, 1]} : vector<16x192xf32> to vector<16x64xf32>
    %22 = vector.extract_strided_slice %19 {offsets = [0, 128], sizes = [16, 64], strides = [1, 1]} : vector<16x192xf32> to vector<16x64xf32>
    %23 = vector.extract_strided_slice %20 {offsets = [0, 0], sizes = [16, 16], strides = [1, 1]} : vector<16x64xf32> to vector<16x16xf32>
    %24 = vector.shape_cast %23 : vector<16x16xf32> to vector<2x8x16xf32>
    %25 = arith.truncf %24 : vector<2x8x16xf32> to vector<2x8x16xbf16>
    %26 = vector.extract_strided_slice %21 {offsets = [0, 0], sizes = [16, 16], strides = [1, 1]} : vector<16x64xf32> to vector<16x16xf32>
    %27 = vector.shape_cast %26 : vector<16x16xf32> to vector<2x8x16xf32>
    %28 = arith.truncf %27 : vector<2x8x16xf32> to vector<2x8x16xbf16>
    %29 = vector.extract_strided_slice %22 {offsets = [0, 0], sizes = [16, 16], strides = [1, 1]} : vector<16x64xf32> to vector<16x16xf32>
    %30 = vector.shape_cast %29 : vector<16x16xf32> to vector<2x8x16xf32>
    %31 = arith.truncf %30 : vector<2x8x16xf32> to vector<2x8x16xbf16>
    "tpu.trace_start"() <{level = 10 : i32, message = "bqd,bkd->bqk"}> : () -> ()
    %cst_14 = arith.constant dense<0.000000e+00> : vector<2x8x8xf32>
    %32 = tpu.matmul %25, %28, %cst_14 {dimension_numbers = #tpu.dot_dimension_numbers<[2], [2], [1], [1], [0, 0, 0, 1, 1, 1], [0], [0]>} : vector<2x8x16xbf16>, vector<2x8x16xbf16>, vector<2x8x8xf32> -> vector<2x8x8xf32>
    "tpu.trace_stop"() : () -> ()
    %cst_15 = arith.constant dense<0xFF800000> : vector<2x8xf32>
    %33 = vector.multi_reduction <maximumf>, %32, %cst_15 [2] : vector<2x8x8xf32> to vector<2x8xf32>
    %34 = vector.shape_cast %33 : vector<2x8xf32> to vector<2x8x1xf32>
    %35 = vector.broadcast %34 : vector<2x8x1xf32> to vector<2x8x8xf32>
    %36 = arith.subf %32, %35 : vector<2x8x8xf32>
    %37 = math.exp %36 : vector<2x8x8xf32>
    %cst_16 = arith.constant dense<0.000000e+00> : vector<2x8xf32>
    %38 = vector.multi_reduction <add>, %37, %cst_16 [2] : vector<2x8x8xf32> to vector<2x8xf32>
    %39 = vector.shape_cast %38 : vector<2x8xf32> to vector<2x8x1xf32>
    %40 = tpu.reciprocal %39 {approx = true} : vector<2x8x1xf32> -> vector<2x8x1xf32>
    %41 = vector.broadcast %40 : vector<2x8x1xf32> to vector<2x8x8xf32>
    %42 = arith.mulf %37, %41 : vector<2x8x8xf32>
    %43 = arith.truncf %42 : vector<2x8x8xf32> to vector<2x8x8xbf16>
    "tpu.trace_start"() <{level = 10 : i32, message = "bqk,bkd->bqd"}> : () -> ()
    %cst_17 = arith.constant dense<0.000000e+00> : vector<2x8x16xf32>
    %44 = tpu.matmul %43, %31, %cst_17 {dimension_numbers = #tpu.dot_dimension_numbers<[2], [1], [1], [2], [0, 0, 0, 1, 1, 2], [0], [0]>} : vector<2x8x8xbf16>, vector<2x8x16xbf16>, vector<2x8x16xf32> -> vector<2x8x16xf32>
    "tpu.trace_stop"() : () -> ()
    %45 = vector.shape_cast %44 : vector<2x8x16xf32> to vector<16x16xf32>
    %46 = vector.extract_strided_slice %20 {offsets = [0, 16], sizes = [16, 16], strides = [1, 1]} : vector<16x64xf32> to vector<16x16xf32>
    %47 = vector.shape_cast %46 : vector<16x16xf32> to vector<2x8x16xf32>
    %48 = arith.truncf %47 : vector<2x8x16xf32> to vector<2x8x16xbf16>
    %49 = vector.extract_strided_slice %21 {offsets = [0, 16], sizes = [16, 16], strides = [1, 1]} : vector<16x64xf32> to vector<16x16xf32>
    %50 = vector.shape_cast %49 : vector<16x16xf32> to vector<2x8x16xf32>
    %51 = arith.truncf %50 : vector<2x8x16xf32> to vector<2x8x16xbf16>
    %52 = vector.extract_strided_slice %22 {offsets = [0, 16], sizes = [16, 16], strides = [1, 1]} : vector<16x64xf32> to vector<16x16xf32>
    %53 = vector.shape_cast %52 : vector<16x16xf32> to vector<2x8x16xf32>
    %54 = arith.truncf %53 : vector<2x8x16xf32> to vector<2x8x16xbf16>
    "tpu.trace_start"() <{level = 10 : i32, message = "bqd,bkd->bqk"}> : () -> ()
    %cst_18 = arith.constant dense<0.000000e+00> : vector<2x8x8xf32>
    %55 = tpu.matmul %48, %51, %cst_18 {dimension_numbers = #tpu.dot_dimension_numbers<[2], [2], [1], [1], [0, 0, 0, 1, 1, 1], [0], [0]>} : vector<2x8x16xbf16>, vector<2x8x16xbf16>, vector<2x8x8xf32> -> vector<2x8x8xf32>
    "tpu.trace_stop"() : () -> ()
    %cst_19 = arith.constant dense<0xFF800000> : vector<2x8xf32>
    %56 = vector.multi_reduction <maximumf>, %55, %cst_19 [2] : vector<2x8x8xf32> to vector<2x8xf32>
    %57 = vector.shape_cast %56 : vector<2x8xf32> to vector<2x8x1xf32>
    %58 = vector.broadcast %57 : vector<2x8x1xf32> to vector<2x8x8xf32>
    %59 = arith.subf %55, %58 : vector<2x8x8xf32>
    %60 = math.exp %59 : vector<2x8x8xf32>
    %cst_20 = arith.constant dense<0.000000e+00> : vector<2x8xf32>
    %61 = vector.multi_reduction <add>, %60, %cst_20 [2] : vector<2x8x8xf32> to vector<2x8xf32>
    %62 = vector.shape_cast %61 : vector<2x8xf32> to vector<2x8x1xf32>
    %63 = tpu.reciprocal %62 {approx = true} : vector<2x8x1xf32> -> vector<2x8x1xf32>
    %64 = vector.broadcast %63 : vector<2x8x1xf32> to vector<2x8x8xf32>
    %65 = arith.mulf %60, %64 : vector<2x8x8xf32>
    %66 = arith.truncf %65 : vector<2x8x8xf32> to vector<2x8x8xbf16>
    "tpu.trace_start"() <{level = 10 : i32, message = "bqk,bkd->bqd"}> : () -> ()
    %cst_21 = arith.constant dense<0.000000e+00> : vector<2x8x16xf32>
    %67 = tpu.matmul %66, %54, %cst_21 {dimension_numbers = #tpu.dot_dimension_numbers<[2], [1], [1], [2], [0, 0, 0, 1, 1, 2], [0], [0]>} : vector<2x8x8xbf16>, vector<2x8x16xbf16>, vector<2x8x16xf32> -> vector<2x8x16xf32>
    "tpu.trace_stop"() : () -> ()
    %68 = vector.shape_cast %67 : vector<2x8x16xf32> to vector<16x16xf32>
    %69 = vector.extract_strided_slice %20 {offsets = [0, 32], sizes = [16, 16], strides = [1, 1]} : vector<16x64xf32> to vector<16x16xf32>
    %70 = vector.shape_cast %69 : vector<16x16xf32> to vector<2x8x16xf32>
    %71 = arith.truncf %70 : vector<2x8x16xf32> to vector<2x8x16xbf16>
    %72 = vector.extract_strided_slice %21 {offsets = [0, 32], sizes = [16, 16], strides = [1, 1]} : vector<16x64xf32> to vector<16x16xf32>
    %73 = vector.shape_cast %72 : vector<16x16xf32> to vector<2x8x16xf32>
    %74 = arith.truncf %73 : vector<2x8x16xf32> to vector<2x8x16xbf16>
    %75 = vector.extract_strided_slice %22 {offsets = [0, 32], sizes = [16, 16], strides = [1, 1]} : vector<16x64xf32> to vector<16x16xf32>
    %76 = vector.shape_cast %75 : vector<16x16xf32> to vector<2x8x16xf32>
    %77 = arith.truncf %76 : vector<2x8x16xf32> to vector<2x8x16xbf16>
    "tpu.trace_start"() <{level = 10 : i32, message = "bqd,bkd->bqk"}> : () -> ()
    %cst_22 = arith.constant dense<0.000000e+00> : vector<2x8x8xf32>
    %78 = tpu.matmul %71, %74, %cst_22 {dimension_numbers = #tpu.dot_dimension_numbers<[2], [2], [1], [1], [0, 0, 0, 1, 1, 1], [0], [0]>} : vector<2x8x16xbf16>, vector<2x8x16xbf16>, vector<2x8x8xf32> -> vector<2x8x8xf32>
    "tpu.trace_stop"() : () -> ()
    %cst_23 = arith.constant dense<0xFF800000> : vector<2x8xf32>
    %79 = vector.multi_reduction <maximumf>, %78, %cst_23 [2] : vector<2x8x8xf32> to vector<2x8xf32>
    %80 = vector.shape_cast %79 : vector<2x8xf32> to vector<2x8x1xf32>
    %81 = vector.broadcast %80 : vector<2x8x1xf32> to vector<2x8x8xf32>
    %82 = arith.subf %78, %81 : vector<2x8x8xf32>
    %83 = math.exp %82 : vector<2x8x8xf32>
    %cst_24 = arith.constant dense<0.000000e+00> : vector<2x8xf32>
    %84 = vector.multi_reduction <add>, %83, %cst_24 [2] : vector<2x8x8xf32> to vector<2x8xf32>
    %85 = vector.shape_cast %84 : vector<2x8xf32> to vector<2x8x1xf32>
    %86 = tpu.reciprocal %85 {approx = true} : vector<2x8x1xf32> -> vector<2x8x1xf32>
    %87 = vector.broadcast %86 : vector<2x8x1xf32> to vector<2x8x8xf32>
    %88 = arith.mulf %83, %87 : vector<2x8x8xf32>
    %89 = arith.truncf %88 : vector<2x8x8xf32> to vector<2x8x8xbf16>
    "tpu.trace_start"() <{level = 10 : i32, message = "bqk,bkd->bqd"}> : () -> ()
    %cst_25 = arith.constant dense<0.000000e+00> : vector<2x8x16xf32>
    %90 = tpu.matmul %89, %77, %cst_25 {dimension_numbers = #tpu.dot_dimension_numbers<[2], [1], [1], [2], [0, 0, 0, 1, 1, 2], [0], [0]>} : vector<2x8x8xbf16>, vector<2x8x16xbf16>, vector<2x8x16xf32> -> vector<2x8x16xf32>
    "tpu.trace_stop"() : () -> ()
    %91 = vector.shape_cast %90 : vector<2x8x16xf32> to vector<16x16xf32>
    %92 = vector.extract_strided_slice %20 {offsets = [0, 48], sizes = [16, 16], strides = [1, 1]} : vector<16x64xf32> to vector<16x16xf32>
    %93 = vector.shape_cast %92 : vector<16x16xf32> to vector<2x8x16xf32>
    %94 = arith.truncf %93 : vector<2x8x16xf32> to vector<2x8x16xbf16>
    %95 = vector.extract_strided_slice %21 {offsets = [0, 48], sizes = [16, 16], strides = [1, 1]} : vector<16x64xf32> to vector<16x16xf32>
    %96 = vector.shape_cast %95 : vector<16x16xf32> to vector<2x8x16xf32>
    %97 = arith.truncf %96 : vector<2x8x16xf32> to vector<2x8x16xbf16>
    %98 = vector.extract_strided_slice %22 {offsets = [0, 48], sizes = [16, 16], strides = [1, 1]} : vector<16x64xf32> to vector<16x16xf32>
    %99 = vector.shape_cast %98 : vector<16x16xf32> to vector<2x8x16xf32>
    %100 = arith.truncf %99 : vector<2x8x16xf32> to vector<2x8x16xbf16>
    "tpu.trace_start"() <{level = 10 : i32, message = "bqd,bkd->bqk"}> : () -> ()
    %cst_26 = arith.constant dense<0.000000e+00> : vector<2x8x8xf32>
    %101 = tpu.matmul %94, %97, %cst_26 {dimension_numbers = #tpu.dot_dimension_numbers<[2], [2], [1], [1], [0, 0, 0, 1, 1, 1], [0], [0]>} : vector<2x8x16xbf16>, vector<2x8x16xbf16>, vector<2x8x8xf32> -> vector<2x8x8xf32>
    "tpu.trace_stop"() : () -> ()
    %cst_27 = arith.constant dense<0xFF800000> : vector<2x8xf32>
    %102 = vector.multi_reduction <maximumf>, %101, %cst_27 [2] : vector<2x8x8xf32> to vector<2x8xf32>
    %103 = vector.shape_cast %102 : vector<2x8xf32> to vector<2x8x1xf32>
    %104 = vector.broadcast %103 : vector<2x8x1xf32> to vector<2x8x8xf32>
    %105 = arith.subf %101, %104 : vector<2x8x8xf32>
    %106 = math.exp %105 : vector<2x8x8xf32>
    %cst_28 = arith.constant dense<0.000000e+00> : vector<2x8xf32>
    %107 = vector.multi_reduction <add>, %106, %cst_28 [2] : vector<2x8x8xf32> to vector<2x8xf32>
    %108 = vector.shape_cast %107 : vector<2x8xf32> to vector<2x8x1xf32>
    %109 = tpu.reciprocal %108 {approx = true} : vector<2x8x1xf32> -> vector<2x8x1xf32>
    %110 = vector.broadcast %109 : vector<2x8x1xf32> to vector<2x8x8xf32>
    %111 = arith.mulf %106, %110 : vector<2x8x8xf32>
    %112 = arith.truncf %111 : vector<2x8x8xf32> to vector<2x8x8xbf16>
    "tpu.trace_start"() <{level = 10 : i32, message = "bqk,bkd->bqd"}> : () -> ()
    %cst_29 = arith.constant dense<0.000000e+00> : vector<2x8x16xf32>
    %113 = tpu.matmul %112, %100, %cst_29 {dimension_numbers = #tpu.dot_dimension_numbers<[2], [1], [1], [2], [0, 0, 0, 1, 1, 2], [0], [0]>} : vector<2x8x8xbf16>, vector<2x8x16xbf16>, vector<2x8x16xf32> -> vector<2x8x16xf32>
    "tpu.trace_stop"() : () -> ()
    %114 = vector.shape_cast %113 : vector<2x8x16xf32> to vector<16x16xf32>
    %115 = tpu.concatenate %45, %68, %91, %114 in 1 : vector<16x16xf32>, vector<16x16xf32>, vector<16x16xf32>, vector<16x16xf32> -> vector<16x64xf32>
    %116 = arith.truncf %115 : vector<16x64xf32> to vector<16x64xbf16>
    %c0_30 = arith.constant 0 : index
    %c0_31 = arith.constant 0 : index
    %c0_32 = arith.constant 0 : index
    %117 = vector.load %arg7[%c0_30, %c0_31, %c0_32] : memref<2x64x64xbf16, #tpu.memory_space<vmem>>, vector<1x64x64xbf16>
    %118 = vector.shape_cast %117 : vector<1x64x64xbf16> to vector<64x64xbf16>
    %cst_33 = arith.constant dense<0.000000e+00> : vector<16x64xf32>
    %119 = tpu.matmul %116, %118, %cst_33 {dimension_numbers = #tpu.dot_dimension_numbers<[1], [0], [0], [1], [0, 0, 1, 1], [], []>} : vector<16x64xbf16>, vector<64x64xbf16>, vector<16x64xf32> -> vector<16x64xf32>
    %c0_34 = arith.constant 0 : index
    %c0_35 = arith.constant 0 : index
    %c0_36 = arith.constant 0 : index
    %120 = vector.load %arg8[%c0_34, %c0_35, %c0_36] : memref<2x1x64xf32, #tpu.memory_space<vmem>>, vector<1x1x64xf32>
    %121 = vector.shape_cast %120 : vector<1x1x64xf32> to vector<1x64xf32>
    %122 = vector.broadcast %121 : vector<1x64xf32> to vector<16x64xf32>
    %123 = arith.addf %119, %122 : vector<16x64xf32>
    %124 = arith.addf %11, %123 : vector<16x64xf32>
    %c0_37 = arith.constant 0 : index
    %c0_38 = arith.constant 0 : index
    %c0_39 = arith.constant 0 : index
    %125 = vector.load %arg9[%c0_37, %c0_38, %c0_39] : memref<2x1x64xf32, #tpu.memory_space<vmem>>, vector<1x1x64xf32>
    %126 = vector.shape_cast %125 : vector<1x1x64xf32> to vector<1x64xf32>
    %c0_40 = arith.constant 0 : index
    %c0_41 = arith.constant 0 : index
    %c0_42 = arith.constant 0 : index
    %127 = vector.load %arg10[%c0_40, %c0_41, %c0_42] : memref<2x1x64xf32, #tpu.memory_space<vmem>>, vector<1x1x64xf32>
    %128 = vector.shape_cast %127 : vector<1x1x64xf32> to vector<1x64xf32>
    %cst_43 = arith.constant dense<0.000000e+00> : vector<16xf32>
    %129 = vector.multi_reduction <add>, %124, %cst_43 [1] : vector<16x64xf32> to vector<16xf32>
    %130 = vector.shape_cast %129 : vector<16xf32> to vector<16x1xf32>
    %cst_44 = arith.constant 6.400000e+01 : f32
    %131 = vector.broadcast %cst_44 : f32 to vector<16x1xf32>
    %132 = arith.divf %130, %131 : vector<16x1xf32>
    %133 = arith.mulf %124, %124 : vector<16x64xf32>
    %cst_45 = arith.constant dense<0.000000e+00> : vector<16xf32>
    %134 = vector.multi_reduction <add>, %133, %cst_45 [1] : vector<16x64xf32> to vector<16xf32>
    %135 = vector.shape_cast %134 : vector<16xf32> to vector<16x1xf32>
    %cst_46 = arith.constant 6.400000e+01 : f32
    %136 = vector.broadcast %cst_46 : f32 to vector<16x1xf32>
    %137 = arith.divf %135, %136 : vector<16x1xf32>
    %138 = arith.mulf %132, %132 : vector<16x1xf32>
    %139 = arith.subf %137, %138 : vector<16x1xf32>
    %140 = vector.broadcast %132 : vector<16x1xf32> to vector<16x64xf32>
    %141 = arith.subf %124, %140 : vector<16x64xf32>
    %cst_47 = arith.constant 9.99999974E-6 : f32
    %142 = vector.broadcast %cst_47 : f32 to vector<16x1xf32>
    %143 = arith.addf %139, %142 : vector<16x1xf32>
    %144 = math.rsqrt %143 : vector<16x1xf32>
    %145 = vector.broadcast %144 : vector<16x1xf32> to vector<16x64xf32>
    %146 = arith.mulf %141, %145 : vector<16x64xf32>
    %147 = vector.broadcast %126 : vector<1x64xf32> to vector<16x64xf32>
    %148 = arith.mulf %146, %147 : vector<16x64xf32>
    %149 = vector.broadcast %128 : vector<1x64xf32> to vector<16x64xf32>
    %150 = arith.addf %148, %149 : vector<16x64xf32>
    %151 = arith.truncf %150 : vector<16x64xf32> to vector<16x64xbf16>
    %c0_48 = arith.constant 0 : index
    %c0_49 = arith.constant 0 : index
    %c0_50 = arith.constant 0 : index
    %152 = vector.load %arg13[%c0_48, %c0_49, %c0_50] : memref<2x64x256xbf16, #tpu.memory_space<vmem>>, vector<1x64x256xbf16>
    %153 = vector.shape_cast %152 : vector<1x64x256xbf16> to vector<64x256xbf16>
    %cst_51 = arith.constant dense<0.000000e+00> : vector<16x256xf32>
    %154 = tpu.matmul %151, %153, %cst_51 {dimension_numbers = #tpu.dot_dimension_numbers<[1], [0], [0], [1], [0, 0, 1, 1], [], []>} : vector<16x64xbf16>, vector<64x256xbf16>, vector<16x256xf32> -> vector<16x256xf32>
    %c0_52 = arith.constant 0 : index
    %c0_53 = arith.constant 0 : index
    %c0_54 = arith.constant 0 : index
    %155 = vector.load %arg14[%c0_52, %c0_53, %c0_54] : memref<2x1x256xf32, #tpu.memory_space<vmem>>, vector<1x1x256xf32>
    %156 = vector.shape_cast %155 : vector<1x1x256xf32> to vector<1x256xf32>
    %157 = vector.broadcast %156 : vector<1x256xf32> to vector<16x256xf32>
    %158 = arith.addf %154, %157 : vector<16x256xf32>
    %cst_55 = arith.constant 0.000000e+00 : f32
    %159 = vector.broadcast %cst_55 : f32 to vector<16x256xf32>
    %160 = arith.maximumf %158, %159 : vector<16x256xf32>
    %161 = arith.truncf %160 : vector<16x256xf32> to vector<16x256xbf16>
    %c0_56 = arith.constant 0 : index
    %c0_57 = arith.constant 0 : index
    %c0_58 = arith.constant 0 : index
    %162 = vector.load %arg15[%c0_56, %c0_57, %c0_58] : memref<2x256x64xbf16, #tpu.memory_space<vmem>>, vector<1x256x64xbf16>
    %163 = vector.shape_cast %162 : vector<1x256x64xbf16> to vector<256x64xbf16>
    %cst_59 = arith.constant dense<0.000000e+00> : vector<16x64xf32>
    %164 = tpu.matmul %161, %163, %cst_59 {dimension_numbers = #tpu.dot_dimension_numbers<[1], [0], [0], [1], [0, 0, 1, 1], [], []>} : vector<16x256xbf16>, vector<256x64xbf16>, vector<16x64xf32> -> vector<16x64xf32>
    %c0_60 = arith.constant 0 : index
    %c0_61 = arith.constant 0 : index
    %c0_62 = arith.constant 0 : index
    %165 = vector.load %arg16[%c0_60, %c0_61, %c0_62] : memref<2x1x64xf32, #tpu.memory_space<vmem>>, vector<1x1x64xf32>
    %166 = vector.shape_cast %165 : vector<1x1x64xf32> to vector<1x64xf32>
    %167 = vector.broadcast %166 : vector<1x64xf32> to vector<16x64xf32>
    %168 = arith.addf %164, %167 : vector<16x64xf32>
    %169 = arith.addf %150, %168 : vector<16x64xf32>
    %c0_63 = arith.constant 0 : index
    %c0_64 = arith.constant 0 : index
    %c0_65 = arith.constant 0 : index
    %170 = vector.load %arg11[%c0_63, %c0_64, %c0_65] : memref<2x1x64xf32, #tpu.memory_space<vmem>>, vector<1x1x64xf32>
    %171 = vector.shape_cast %170 : vector<1x1x64xf32> to vector<1x64xf32>
    %c0_66 = arith.constant 0 : index
    %c0_67 = arith.constant 0 : index
    %c0_68 = arith.constant 0 : index
    %172 = vector.load %arg12[%c0_66, %c0_67, %c0_68] : memref<2x1x64xf32, #tpu.memory_space<vmem>>, vector<1x1x64xf32>
    %173 = vector.shape_cast %172 : vector<1x1x64xf32> to vector<1x64xf32>
    %cst_69 = arith.constant dense<0.000000e+00> : vector<16xf32>
    %174 = vector.multi_reduction <add>, %169, %cst_69 [1] : vector<16x64xf32> to vector<16xf32>
    %175 = vector.shape_cast %174 : vector<16xf32> to vector<16x1xf32>
    %cst_70 = arith.constant 6.400000e+01 : f32
    %176 = vector.broadcast %cst_70 : f32 to vector<16x1xf32>
    %177 = arith.divf %175, %176 : vector<16x1xf32>
    %178 = arith.mulf %169, %169 : vector<16x64xf32>
    %cst_71 = arith.constant dense<0.000000e+00> : vector<16xf32>
    %179 = vector.multi_reduction <add>, %178, %cst_71 [1] : vector<16x64xf32> to vector<16xf32>
    %180 = vector.shape_cast %179 : vector<16xf32> to vector<16x1xf32>
    %cst_72 = arith.constant 6.400000e+01 : f32
    %181 = vector.broadcast %cst_72 : f32 to vector<16x1xf32>
    %182 = arith.divf %180, %181 : vector<16x1xf32>
    %183 = arith.mulf %177, %177 : vector<16x1xf32>
    %184 = arith.subf %182, %183 : vector<16x1xf32>
    %185 = vector.broadcast %177 : vector<16x1xf32> to vector<16x64xf32>
    %186 = arith.subf %169, %185 : vector<16x64xf32>
    %cst_73 = arith.constant 9.99999974E-6 : f32
    %187 = vector.broadcast %cst_73 : f32 to vector<16x1xf32>
    %188 = arith.addf %184, %187 : vector<16x1xf32>
    %189 = math.rsqrt %188 : vector<16x1xf32>
    %190 = vector.broadcast %189 : vector<16x1xf32> to vector<16x64xf32>
    %191 = arith.mulf %186, %190 : vector<16x64xf32>
    %192 = vector.broadcast %171 : vector<1x64xf32> to vector<16x64xf32>
    %193 = arith.mulf %191, %192 : vector<16x64xf32>
    %194 = vector.broadcast %173 : vector<1x64xf32> to vector<16x64xf32>
    %195 = arith.addf %193, %194 : vector<16x64xf32>
    %196 = arith.truncf %195 : vector<16x64xf32> to vector<16x64xbf16>
    %c1 = arith.constant 1 : index
    %c0_74 = arith.constant 0 : index
    %c0_75 = arith.constant 0 : index
    %197 = vector.load %arg5[%c1, %c0_74, %c0_75] : memref<2x64x192xbf16, #tpu.memory_space<vmem>>, vector<1x64x192xbf16>
    %198 = vector.shape_cast %197 : vector<1x64x192xbf16> to vector<64x192xbf16>
    %cst_76 = arith.constant dense<0.000000e+00> : vector<16x192xf32>
    %199 = tpu.matmul %196, %198, %cst_76 {dimension_numbers = #tpu.dot_dimension_numbers<[1], [0], [0], [1], [0, 0, 1, 1], [], []>} : vector<16x64xbf16>, vector<64x192xbf16>, vector<16x192xf32> -> vector<16x192xf32>
    %c1_77 = arith.constant 1 : index
    %c0_78 = arith.constant 0 : index
    %c0_79 = arith.constant 0 : index
    %200 = vector.load %arg6[%c1_77, %c0_78, %c0_79] : memref<2x1x192xf32, #tpu.memory_space<vmem>>, vector<1x1x192xf32>
    %201 = vector.shape_cast %200 : vector<1x1x192xf32> to vector<1x192xf32>
    %202 = vector.broadcast %201 : vector<1x192xf32> to vector<16x192xf32>
    %203 = arith.addf %199, %202 : vector<16x192xf32>
    %204 = vector.extract_strided_slice %203 {offsets = [0, 0], sizes = [16, 64], strides = [1, 1]} : vector<16x192xf32> to vector<16x64xf32>
    %205 = vector.extract_strided_slice %203 {offsets = [0, 64], sizes = [16, 64], strides = [1, 1]} : vector<16x192xf32> to vector<16x64xf32>
    %206 = vector.extract_strided_slice %203 {offsets = [0, 128], sizes = [16, 64], strides = [1, 1]} : vector<16x192xf32> to vector<16x64xf32>
    %207 = vector.extract_strided_slice %204 {offsets = [0, 0], sizes = [16, 16], strides = [1, 1]} : vector<16x64xf32> to vector<16x16xf32>
    %208 = vector.shape_cast %207 : vector<16x16xf32> to vector<2x8x16xf32>
    %209 = arith.truncf %208 : vector<2x8x16xf32> to vector<2x8x16xbf16>
    %210 = vector.extract_strided_slice %205 {offsets = [0, 0], sizes = [16, 16], strides = [1, 1]} : vector<16x64xf32> to vector<16x16xf32>
    %211 = vector.shape_cast %210 : vector<16x16xf32> to vector<2x8x16xf32>
    %212 = arith.truncf %211 : vector<2x8x16xf32> to vector<2x8x16xbf16>
    %213 = vector.extract_strided_slice %206 {offsets = [0, 0], sizes = [16, 16], strides = [1, 1]} : vector<16x64xf32> to vector<16x16xf32>
    %214 = vector.shape_cast %213 : vector<16x16xf32> to vector<2x8x16xf32>
    %215 = arith.truncf %214 : vector<2x8x16xf32> to vector<2x8x16xbf16>
    "tpu.trace_start"() <{level = 10 : i32, message = "bqd,bkd->bqk"}> : () -> ()
    %cst_80 = arith.constant dense<0.000000e+00> : vector<2x8x8xf32>
    %216 = tpu.matmul %209, %212, %cst_80 {dimension_numbers = #tpu.dot_dimension_numbers<[2], [2], [1], [1], [0, 0, 0, 1, 1, 1], [0], [0]>} : vector<2x8x16xbf16>, vector<2x8x16xbf16>, vector<2x8x8xf32> -> vector<2x8x8xf32>
    "tpu.trace_stop"() : () -> ()
    %cst_81 = arith.constant dense<0xFF800000> : vector<2x8xf32>
    %217 = vector.multi_reduction <maximumf>, %216, %cst_81 [2] : vector<2x8x8xf32> to vector<2x8xf32>
    %218 = vector.shape_cast %217 : vector<2x8xf32> to vector<2x8x1xf32>
    %219 = vector.broadcast %218 : vector<2x8x1xf32> to vector<2x8x8xf32>
    %220 = arith.subf %216, %219 : vector<2x8x8xf32>
    %221 = math.exp %220 : vector<2x8x8xf32>
    %cst_82 = arith.constant dense<0.000000e+00> : vector<2x8xf32>
    %222 = vector.multi_reduction <add>, %221, %cst_82 [2] : vector<2x8x8xf32> to vector<2x8xf32>
    %223 = vector.shape_cast %222 : vector<2x8xf32> to vector<2x8x1xf32>
    %224 = tpu.reciprocal %223 {approx = true} : vector<2x8x1xf32> -> vector<2x8x1xf32>
    %225 = vector.broadcast %224 : vector<2x8x1xf32> to vector<2x8x8xf32>
    %226 = arith.mulf %221, %225 : vector<2x8x8xf32>
    %227 = arith.truncf %226 : vector<2x8x8xf32> to vector<2x8x8xbf16>
    "tpu.trace_start"() <{level = 10 : i32, message = "bqk,bkd->bqd"}> : () -> ()
    %cst_83 = arith.constant dense<0.000000e+00> : vector<2x8x16xf32>
    %228 = tpu.matmul %227, %215, %cst_83 {dimension_numbers = #tpu.dot_dimension_numbers<[2], [1], [1], [2], [0, 0, 0, 1, 1, 2], [0], [0]>} : vector<2x8x8xbf16>, vector<2x8x16xbf16>, vector<2x8x16xf32> -> vector<2x8x16xf32>
    "tpu.trace_stop"() : () -> ()
    %229 = vector.shape_cast %228 : vector<2x8x16xf32> to vector<16x16xf32>
    %230 = vector.extract_strided_slice %204 {offsets = [0, 16], sizes = [16, 16], strides = [1, 1]} : vector<16x64xf32> to vector<16x16xf32>
    %231 = vector.shape_cast %230 : vector<16x16xf32> to vector<2x8x16xf32>
    %232 = arith.truncf %231 : vector<2x8x16xf32> to vector<2x8x16xbf16>
    %233 = vector.extract_strided_slice %205 {offsets = [0, 16], sizes = [16, 16], strides = [1, 1]} : vector<16x64xf32> to vector<16x16xf32>
    %234 = vector.shape_cast %233 : vector<16x16xf32> to vector<2x8x16xf32>
    %235 = arith.truncf %234 : vector<2x8x16xf32> to vector<2x8x16xbf16>
    %236 = vector.extract_strided_slice %206 {offsets = [0, 16], sizes = [16, 16], strides = [1, 1]} : vector<16x64xf32> to vector<16x16xf32>
    %237 = vector.shape_cast %236 : vector<16x16xf32> to vector<2x8x16xf32>
    %238 = arith.truncf %237 : vector<2x8x16xf32> to vector<2x8x16xbf16>
    "tpu.trace_start"() <{level = 10 : i32, message = "bqd,bkd->bqk"}> : () -> ()
    %cst_84 = arith.constant dense<0.000000e+00> : vector<2x8x8xf32>
    %239 = tpu.matmul %232, %235, %cst_84 {dimension_numbers = #tpu.dot_dimension_numbers<[2], [2], [1], [1], [0, 0, 0, 1, 1, 1], [0], [0]>} : vector<2x8x16xbf16>, vector<2x8x16xbf16>, vector<2x8x8xf32> -> vector<2x8x8xf32>
    "tpu.trace_stop"() : () -> ()
    %cst_85 = arith.constant dense<0xFF800000> : vector<2x8xf32>
    %240 = vector.multi_reduction <maximumf>, %239, %cst_85 [2] : vector<2x8x8xf32> to vector<2x8xf32>
    %241 = vector.shape_cast %240 : vector<2x8xf32> to vector<2x8x1xf32>
    %242 = vector.broadcast %241 : vector<2x8x1xf32> to vector<2x8x8xf32>
    %243 = arith.subf %239, %242 : vector<2x8x8xf32>
    %244 = math.exp %243 : vector<2x8x8xf32>
    %cst_86 = arith.constant dense<0.000000e+00> : vector<2x8xf32>
    %245 = vector.multi_reduction <add>, %244, %cst_86 [2] : vector<2x8x8xf32> to vector<2x8xf32>
    %246 = vector.shape_cast %245 : vector<2x8xf32> to vector<2x8x1xf32>
    %247 = tpu.reciprocal %246 {approx = true} : vector<2x8x1xf32> -> vector<2x8x1xf32>
    %248 = vector.broadcast %247 : vector<2x8x1xf32> to vector<2x8x8xf32>
    %249 = arith.mulf %244, %248 : vector<2x8x8xf32>
    %250 = arith.truncf %249 : vector<2x8x8xf32> to vector<2x8x8xbf16>
    "tpu.trace_start"() <{level = 10 : i32, message = "bqk,bkd->bqd"}> : () -> ()
    %cst_87 = arith.constant dense<0.000000e+00> : vector<2x8x16xf32>
    %251 = tpu.matmul %250, %238, %cst_87 {dimension_numbers = #tpu.dot_dimension_numbers<[2], [1], [1], [2], [0, 0, 0, 1, 1, 2], [0], [0]>} : vector<2x8x8xbf16>, vector<2x8x16xbf16>, vector<2x8x16xf32> -> vector<2x8x16xf32>
    "tpu.trace_stop"() : () -> ()
    %252 = vector.shape_cast %251 : vector<2x8x16xf32> to vector<16x16xf32>
    %253 = vector.extract_strided_slice %204 {offsets = [0, 32], sizes = [16, 16], strides = [1, 1]} : vector<16x64xf32> to vector<16x16xf32>
    %254 = vector.shape_cast %253 : vector<16x16xf32> to vector<2x8x16xf32>
    %255 = arith.truncf %254 : vector<2x8x16xf32> to vector<2x8x16xbf16>
    %256 = vector.extract_strided_slice %205 {offsets = [0, 32], sizes = [16, 16], strides = [1, 1]} : vector<16x64xf32> to vector<16x16xf32>
    %257 = vector.shape_cast %256 : vector<16x16xf32> to vector<2x8x16xf32>
    %258 = arith.truncf %257 : vector<2x8x16xf32> to vector<2x8x16xbf16>
    %259 = vector.extract_strided_slice %206 {offsets = [0, 32], sizes = [16, 16], strides = [1, 1]} : vector<16x64xf32> to vector<16x16xf32>
    %260 = vector.shape_cast %259 : vector<16x16xf32> to vector<2x8x16xf32>
    %261 = arith.truncf %260 : vector<2x8x16xf32> to vector<2x8x16xbf16>
    "tpu.trace_start"() <{level = 10 : i32, message = "bqd,bkd->bqk"}> : () -> ()
    %cst_88 = arith.constant dense<0.000000e+00> : vector<2x8x8xf32>
    %262 = tpu.matmul %255, %258, %cst_88 {dimension_numbers = #tpu.dot_dimension_numbers<[2], [2], [1], [1], [0, 0, 0, 1, 1, 1], [0], [0]>} : vector<2x8x16xbf16>, vector<2x8x16xbf16>, vector<2x8x8xf32> -> vector<2x8x8xf32>
    "tpu.trace_stop"() : () -> ()
    %cst_89 = arith.constant dense<0xFF800000> : vector<2x8xf32>
    %263 = vector.multi_reduction <maximumf>, %262, %cst_89 [2] : vector<2x8x8xf32> to vector<2x8xf32>
    %264 = vector.shape_cast %263 : vector<2x8xf32> to vector<2x8x1xf32>
    %265 = vector.broadcast %264 : vector<2x8x1xf32> to vector<2x8x8xf32>
    %266 = arith.subf %262, %265 : vector<2x8x8xf32>
    %267 = math.exp %266 : vector<2x8x8xf32>
    %cst_90 = arith.constant dense<0.000000e+00> : vector<2x8xf32>
    %268 = vector.multi_reduction <add>, %267, %cst_90 [2] : vector<2x8x8xf32> to vector<2x8xf32>
    %269 = vector.shape_cast %268 : vector<2x8xf32> to vector<2x8x1xf32>
    %270 = tpu.reciprocal %269 {approx = true} : vector<2x8x1xf32> -> vector<2x8x1xf32>
    %271 = vector.broadcast %270 : vector<2x8x1xf32> to vector<2x8x8xf32>
    %272 = arith.mulf %267, %271 : vector<2x8x8xf32>
    %273 = arith.truncf %272 : vector<2x8x8xf32> to vector<2x8x8xbf16>
    "tpu.trace_start"() <{level = 10 : i32, message = "bqk,bkd->bqd"}> : () -> ()
    %cst_91 = arith.constant dense<0.000000e+00> : vector<2x8x16xf32>
    %274 = tpu.matmul %273, %261, %cst_91 {dimension_numbers = #tpu.dot_dimension_numbers<[2], [1], [1], [2], [0, 0, 0, 1, 1, 2], [0], [0]>} : vector<2x8x8xbf16>, vector<2x8x16xbf16>, vector<2x8x16xf32> -> vector<2x8x16xf32>
    "tpu.trace_stop"() : () -> ()
    %275 = vector.shape_cast %274 : vector<2x8x16xf32> to vector<16x16xf32>
    %276 = vector.extract_strided_slice %204 {offsets = [0, 48], sizes = [16, 16], strides = [1, 1]} : vector<16x64xf32> to vector<16x16xf32>
    %277 = vector.shape_cast %276 : vector<16x16xf32> to vector<2x8x16xf32>
    %278 = arith.truncf %277 : vector<2x8x16xf32> to vector<2x8x16xbf16>
    %279 = vector.extract_strided_slice %205 {offsets = [0, 48], sizes = [16, 16], strides = [1, 1]} : vector<16x64xf32> to vector<16x16xf32>
    %280 = vector.shape_cast %279 : vector<16x16xf32> to vector<2x8x16xf32>
    %281 = arith.truncf %280 : vector<2x8x16xf32> to vector<2x8x16xbf16>
    %282 = vector.extract_strided_slice %206 {offsets = [0, 48], sizes = [16, 16], strides = [1, 1]} : vector<16x64xf32> to vector<16x16xf32>
    %283 = vector.shape_cast %282 : vector<16x16xf32> to vector<2x8x16xf32>
    %284 = arith.truncf %283 : vector<2x8x16xf32> to vector<2x8x16xbf16>
    "tpu.trace_start"() <{level = 10 : i32, message = "bqd,bkd->bqk"}> : () -> ()
    %cst_92 = arith.constant dense<0.000000e+00> : vector<2x8x8xf32>
    %285 = tpu.matmul %278, %281, %cst_92 {dimension_numbers = #tpu.dot_dimension_numbers<[2], [2], [1], [1], [0, 0, 0, 1, 1, 1], [0], [0]>} : vector<2x8x16xbf16>, vector<2x8x16xbf16>, vector<2x8x8xf32> -> vector<2x8x8xf32>
    "tpu.trace_stop"() : () -> ()
    %cst_93 = arith.constant dense<0xFF800000> : vector<2x8xf32>
    %286 = vector.multi_reduction <maximumf>, %285, %cst_93 [2] : vector<2x8x8xf32> to vector<2x8xf32>
    %287 = vector.shape_cast %286 : vector<2x8xf32> to vector<2x8x1xf32>
    %288 = vector.broadcast %287 : vector<2x8x1xf32> to vector<2x8x8xf32>
    %289 = arith.subf %285, %288 : vector<2x8x8xf32>
    %290 = math.exp %289 : vector<2x8x8xf32>
    %cst_94 = arith.constant dense<0.000000e+00> : vector<2x8xf32>
    %291 = vector.multi_reduction <add>, %290, %cst_94 [2] : vector<2x8x8xf32> to vector<2x8xf32>
    %292 = vector.shape_cast %291 : vector<2x8xf32> to vector<2x8x1xf32>
    %293 = tpu.reciprocal %292 {approx = true} : vector<2x8x1xf32> -> vector<2x8x1xf32>
    %294 = vector.broadcast %293 : vector<2x8x1xf32> to vector<2x8x8xf32>
    %295 = arith.mulf %290, %294 : vector<2x8x8xf32>
    %296 = arith.truncf %295 : vector<2x8x8xf32> to vector<2x8x8xbf16>
    "tpu.trace_start"() <{level = 10 : i32, message = "bqk,bkd->bqd"}> : () -> ()
    %cst_95 = arith.constant dense<0.000000e+00> : vector<2x8x16xf32>
    %297 = tpu.matmul %296, %284, %cst_95 {dimension_numbers = #tpu.dot_dimension_numbers<[2], [1], [1], [2], [0, 0, 0, 1, 1, 2], [0], [0]>} : vector<2x8x8xbf16>, vector<2x8x16xbf16>, vector<2x8x16xf32> -> vector<2x8x16xf32>
    "tpu.trace_stop"() : () -> ()
    %298 = vector.shape_cast %297 : vector<2x8x16xf32> to vector<16x16xf32>
    %299 = tpu.concatenate %229, %252, %275, %298 in 1 : vector<16x16xf32>, vector<16x16xf32>, vector<16x16xf32>, vector<16x16xf32> -> vector<16x64xf32>
    %300 = arith.truncf %299 : vector<16x64xf32> to vector<16x64xbf16>
    %c1_96 = arith.constant 1 : index
    %c0_97 = arith.constant 0 : index
    %c0_98 = arith.constant 0 : index
    %301 = vector.load %arg7[%c1_96, %c0_97, %c0_98] : memref<2x64x64xbf16, #tpu.memory_space<vmem>>, vector<1x64x64xbf16>
    %302 = vector.shape_cast %301 : vector<1x64x64xbf16> to vector<64x64xbf16>
    %cst_99 = arith.constant dense<0.000000e+00> : vector<16x64xf32>
    %303 = tpu.matmul %300, %302, %cst_99 {dimension_numbers = #tpu.dot_dimension_numbers<[1], [0], [0], [1], [0, 0, 1, 1], [], []>} : vector<16x64xbf16>, vector<64x64xbf16>, vector<16x64xf32> -> vector<16x64xf32>
    %c1_100 = arith.constant 1 : index
    %c0_101 = arith.constant 0 : index
    %c0_102 = arith.constant 0 : index
    %304 = vector.load %arg8[%c1_100, %c0_101, %c0_102] : memref<2x1x64xf32, #tpu.memory_space<vmem>>, vector<1x1x64xf32>
    %305 = vector.shape_cast %304 : vector<1x1x64xf32> to vector<1x64xf32>
    %306 = vector.broadcast %305 : vector<1x64xf32> to vector<16x64xf32>
    %307 = arith.addf %303, %306 : vector<16x64xf32>
    %308 = arith.addf %195, %307 : vector<16x64xf32>
    %c1_103 = arith.constant 1 : index
    %c0_104 = arith.constant 0 : index
    %c0_105 = arith.constant 0 : index
    %309 = vector.load %arg9[%c1_103, %c0_104, %c0_105] : memref<2x1x64xf32, #tpu.memory_space<vmem>>, vector<1x1x64xf32>
    %310 = vector.shape_cast %309 : vector<1x1x64xf32> to vector<1x64xf32>
    %c1_106 = arith.constant 1 : index
    %c0_107 = arith.constant 0 : index
    %c0_108 = arith.constant 0 : index
    %311 = vector.load %arg10[%c1_106, %c0_107, %c0_108] : memref<2x1x64xf32, #tpu.memory_space<vmem>>, vector<1x1x64xf32>
    %312 = vector.shape_cast %311 : vector<1x1x64xf32> to vector<1x64xf32>
    %cst_109 = arith.constant dense<0.000000e+00> : vector<16xf32>
    %313 = vector.multi_reduction <add>, %308, %cst_109 [1] : vector<16x64xf32> to vector<16xf32>
    %314 = vector.shape_cast %313 : vector<16xf32> to vector<16x1xf32>
    %cst_110 = arith.constant 6.400000e+01 : f32
    %315 = vector.broadcast %cst_110 : f32 to vector<16x1xf32>
    %316 = arith.divf %314, %315 : vector<16x1xf32>
    %317 = arith.mulf %308, %308 : vector<16x64xf32>
    %cst_111 = arith.constant dense<0.000000e+00> : vector<16xf32>
    %318 = vector.multi_reduction <add>, %317, %cst_111 [1] : vector<16x64xf32> to vector<16xf32>
    %319 = vector.shape_cast %318 : vector<16xf32> to vector<16x1xf32>
    %cst_112 = arith.constant 6.400000e+01 : f32
    %320 = vector.broadcast %cst_112 : f32 to vector<16x1xf32>
    %321 = arith.divf %319, %320 : vector<16x1xf32>
    %322 = arith.mulf %316, %316 : vector<16x1xf32>
    %323 = arith.subf %321, %322 : vector<16x1xf32>
    %324 = vector.broadcast %316 : vector<16x1xf32> to vector<16x64xf32>
    %325 = arith.subf %308, %324 : vector<16x64xf32>
    %cst_113 = arith.constant 9.99999974E-6 : f32
    %326 = vector.broadcast %cst_113 : f32 to vector<16x1xf32>
    %327 = arith.addf %323, %326 : vector<16x1xf32>
    %328 = math.rsqrt %327 : vector<16x1xf32>
    %329 = vector.broadcast %328 : vector<16x1xf32> to vector<16x64xf32>
    %330 = arith.mulf %325, %329 : vector<16x64xf32>
    %331 = vector.broadcast %310 : vector<1x64xf32> to vector<16x64xf32>
    %332 = arith.mulf %330, %331 : vector<16x64xf32>
    %333 = vector.broadcast %312 : vector<1x64xf32> to vector<16x64xf32>
    %334 = arith.addf %332, %333 : vector<16x64xf32>
    %335 = arith.truncf %334 : vector<16x64xf32> to vector<16x64xbf16>
    %c1_114 = arith.constant 1 : index
    %c0_115 = arith.constant 0 : index
    %c0_116 = arith.constant 0 : index
    %336 = vector.load %arg13[%c1_114, %c0_115, %c0_116] : memref<2x64x256xbf16, #tpu.memory_space<vmem>>, vector<1x64x256xbf16>
    %337 = vector.shape_cast %336 : vector<1x64x256xbf16> to vector<64x256xbf16>
    %cst_117 = arith.constant dense<0.000000e+00> : vector<16x256xf32>
    %338 = tpu.matmul %335, %337, %cst_117 {dimension_numbers = #tpu.dot_dimension_numbers<[1], [0], [0], [1], [0, 0, 1, 1], [], []>} : vector<16x64xbf16>, vector<64x256xbf16>, vector<16x256xf32> -> vector<16x256xf32>
    %c1_118 = arith.constant 1 : index
    %c0_119 = arith.constant 0 : index
    %c0_120 = arith.constant 0 : index
    %339 = vector.load %arg14[%c1_118, %c0_119, %c0_120] : memref<2x1x256xf32, #tpu.memory_space<vmem>>, vector<1x1x256xf32>
    %340 = vector.shape_cast %339 : vector<1x1x256xf32> to vector<1x256xf32>
    %341 = vector.broadcast %340 : vector<1x256xf32> to vector<16x256xf32>
    %342 = arith.addf %338, %341 : vector<16x256xf32>
    %cst_121 = arith.constant 0.000000e+00 : f32
    %343 = vector.broadcast %cst_121 : f32 to vector<16x256xf32>
    %344 = arith.maximumf %342, %343 : vector<16x256xf32>
    %345 = arith.truncf %344 : vector<16x256xf32> to vector<16x256xbf16>
    %c1_122 = arith.constant 1 : index
    %c0_123 = arith.constant 0 : index
    %c0_124 = arith.constant 0 : index
    %346 = vector.load %arg15[%c1_122, %c0_123, %c0_124] : memref<2x256x64xbf16, #tpu.memory_space<vmem>>, vector<1x256x64xbf16>
    %347 = vector.shape_cast %346 : vector<1x256x64xbf16> to vector<256x64xbf16>
    %cst_125 = arith.constant dense<0.000000e+00> : vector<16x64xf32>
    %348 = tpu.matmul %345, %347, %cst_125 {dimension_numbers = #tpu.dot_dimension_numbers<[1], [0], [0], [1], [0, 0, 1, 1], [], []>} : vector<16x256xbf16>, vector<256x64xbf16>, vector<16x64xf32> -> vector<16x64xf32>
    %c1_126 = arith.constant 1 : index
    %c0_127 = arith.constant 0 : index
    %c0_128 = arith.constant 0 : index
    %349 = vector.load %arg16[%c1_126, %c0_127, %c0_128] : memref<2x1x64xf32, #tpu.memory_space<vmem>>, vector<1x1x64xf32>
    %350 = vector.shape_cast %349 : vector<1x1x64xf32> to vector<1x64xf32>
    %351 = vector.broadcast %350 : vector<1x64xf32> to vector<16x64xf32>
    %352 = arith.addf %348, %351 : vector<16x64xf32>
    %353 = arith.addf %334, %352 : vector<16x64xf32>
    %c1_129 = arith.constant 1 : index
    %c0_130 = arith.constant 0 : index
    %c0_131 = arith.constant 0 : index
    %354 = vector.load %arg11[%c1_129, %c0_130, %c0_131] : memref<2x1x64xf32, #tpu.memory_space<vmem>>, vector<1x1x64xf32>
    %355 = vector.shape_cast %354 : vector<1x1x64xf32> to vector<1x64xf32>
    %c1_132 = arith.constant 1 : index
    %c0_133 = arith.constant 0 : index
    %c0_134 = arith.constant 0 : index
    %356 = vector.load %arg12[%c1_132, %c0_133, %c0_134] : memref<2x1x64xf32, #tpu.memory_space<vmem>>, vector<1x1x64xf32>
    %357 = vector.shape_cast %356 : vector<1x1x64xf32> to vector<1x64xf32>
    %cst_135 = arith.constant dense<0.000000e+00> : vector<16xf32>
    %358 = vector.multi_reduction <add>, %353, %cst_135 [1] : vector<16x64xf32> to vector<16xf32>
    %359 = vector.shape_cast %358 : vector<16xf32> to vector<16x1xf32>
    %cst_136 = arith.constant 6.400000e+01 : f32
    %360 = vector.broadcast %cst_136 : f32 to vector<16x1xf32>
    %361 = arith.divf %359, %360 : vector<16x1xf32>
    %362 = arith.mulf %353, %353 : vector<16x64xf32>
    %cst_137 = arith.constant dense<0.000000e+00> : vector<16xf32>
    %363 = vector.multi_reduction <add>, %362, %cst_137 [1] : vector<16x64xf32> to vector<16xf32>
    %364 = vector.shape_cast %363 : vector<16xf32> to vector<16x1xf32>
    %cst_138 = arith.constant 6.400000e+01 : f32
    %365 = vector.broadcast %cst_138 : f32 to vector<16x1xf32>
    %366 = arith.divf %364, %365 : vector<16x1xf32>
    %367 = arith.mulf %361, %361 : vector<16x1xf32>
    %368 = arith.subf %366, %367 : vector<16x1xf32>
    %369 = vector.broadcast %361 : vector<16x1xf32> to vector<16x64xf32>
    %370 = arith.subf %353, %369 : vector<16x64xf32>
    %cst_139 = arith.constant 9.99999974E-6 : f32
    %371 = vector.broadcast %cst_139 : f32 to vector<16x1xf32>
    %372 = arith.addf %368, %371 : vector<16x1xf32>
    %373 = math.rsqrt %372 : vector<16x1xf32>
    %374 = vector.broadcast %373 : vector<16x1xf32> to vector<16x64xf32>
    %375 = arith.mulf %370, %374 : vector<16x64xf32>
    %376 = vector.broadcast %355 : vector<1x64xf32> to vector<16x64xf32>
    %377 = arith.mulf %375, %376 : vector<16x64xf32>
    %378 = vector.broadcast %357 : vector<1x64xf32> to vector<16x64xf32>
    %379 = arith.addf %377, %378 : vector<16x64xf32>
    %380 = arith.truncf %379 : vector<16x64xf32> to vector<16x64xbf16>
    %c0_140 = arith.constant 0 : index
    %c0_141 = arith.constant 0 : index
    %381 = vector.load %arg17[%c0_140, %c0_141] : memref<64x128xbf16, #tpu.memory_space<vmem>>, vector<64x128xbf16>
    %cst_142 = arith.constant dense<0.000000e+00> : vector<16x128xf32>
    %382 = tpu.matmul %380, %381, %cst_142 {dimension_numbers = #tpu.dot_dimension_numbers<[1], [0], [0], [1], [0, 0, 1, 1], [], []>} : vector<16x64xbf16>, vector<64x128xbf16>, vector<16x128xf32> -> vector<16x128xf32>
    %c0_143 = arith.constant 0 : index
    %c0_144 = arith.constant 0 : index
    %383 = vector.load %arg18[%c0_143, %c0_144] : memref<1x128xf32, #tpu.memory_space<vmem>>, vector<1x128xf32>
    %384 = vector.broadcast %383 : vector<1x128xf32> to vector<16x128xf32>
    %385 = arith.addf %382, %384 : vector<16x128xf32>
    %c0_145 = arith.constant 0 : index
    %c0_146 = arith.constant 0 : index
    %386 = vector.load %arg19[%c0_145, %c0_146] : memref<16x128xf32, #tpu.memory_space<vmem>>, vector<16x128xf32>
    tpu.vector_store %arg19[%c0_145, %c0_146], %385 {strides = array<i32>} : memref<16x128xf32, #tpu.memory_space<vmem>>, vector<16x128xf32>,
    return
  }
  func.func @transform_0(%arg0: i32) -> (i32, i32) {
    %c0_i32 = arith.constant 0 : i32
    %c0_i32_0 = arith.constant 0 : i32
    return %arg0, %c0_i32 : i32, i32
  }
  func.func @transform_1(%arg0: i32) -> (i32, i32) {
    %c0_i32 = arith.constant 0 : i32
    %c0_i32_0 = arith.constant 0 : i32
    %c0_i32_1 = arith.constant 0 : i32
    return %c0_i32, %c0_i32_0 : i32, i32
  }
  func.func @transform_2(%arg0: i32) -> (i32, i32) {
    %c0_i32 = arith.constant 0 : i32
    %c0_i32_0 = arith.constant 0 : i32
    %c0_i32_1 = arith.constant 0 : i32
    return %c0_i32, %c0_i32_0 : i32, i32
  }
  func.func @transform_3(%arg0: i32) -> (i32, i32) {
    %c0_i32 = arith.constant 0 : i32
    %c0_i32_0 = arith.constant 0 : i32
    %c0_i32_1 = arith.constant 0 : i32
    return %c0_i32, %c0_i32_0 : i32, i32
  }
  func.func @transform_4(%arg0: i32) -> (i32, i32, i32) {
    %c0_i32 = arith.constant 0 : i32
    %c0_i32_0 = arith.constant 0 : i32
    %c0_i32_1 = arith.constant 0 : i32
    %c0_i32_2 = arith.constant 0 : i32
    return %c0_i32, %c0_i32_0, %c0_i32_1 : i32, i32, i32
  }
  func.func @transform_5(%arg0: i32) -> (i32, i32, i32) {
    %c0_i32 = arith.constant 0 : i32
    %c0_i32_0 = arith.constant 0 : i32
    %c0_i32_1 = arith.constant 0 : i32
    %c0_i32_2 = arith.constant 0 : i32
    return %c0_i32, %c0_i32_0, %c0_i32_1 : i32, i32, i32
  }
  func.func @transform_6(%arg0: i32) -> (i32, i32, i32) {
    %c0_i32 = arith.constant 0 : i32
    %c0_i32_0 = arith.constant 0 : i32
    %c0_i32_1 = arith.constant 0 : i32
    %c0_i32_2 = arith.constant 0 : i32
    return %c0_i32, %c0_i32_0, %c0_i32_1 : i32, i32, i32
  }
  func.func @transform_7(%arg0: i32) -> (i32, i32, i32) {
    %c0_i32 = arith.constant 0 : i32
    %c0_i32_0 = arith.constant 0 : i32
    %c0_i32_1 = arith.constant 0 : i32
    %c0_i32_2 = arith.constant 0 : i32
    return %c0_i32, %c0_i32_0, %c0_i32_1 : i32, i32, i32
  }
  func.func @transform_8(%arg0: i32) -> (i32, i32, i32) {
    %c0_i32 = arith.constant 0 : i32
    %c0_i32_0 = arith.constant 0 : i32
    %c0_i32_1 = arith.constant 0 : i32
    %c0_i32_2 = arith.constant 0 : i32
    return %c0_i32, %c0_i32_0, %c0_i32_1 : i32, i32, i32
  }
  func.func @transform_9(%arg0: i32) -> (i32, i32, i32) {
    %c0_i32 = arith.constant 0 : i32
    %c0_i32_0 = arith.constant 0 : i32
    %c0_i32_1 = arith.constant 0 : i32
    %c0_i32_2 = arith.constant 0 : i32
    return %c0_i32, %c0_i32_0, %c0_i32_1 : i32, i32, i32
  }
  func.func @transform_10(%arg0: i32) -> (i32, i32, i32) {
    %c0_i32 = arith.constant 0 : i32
    %c0_i32_0 = arith.constant 0 : i32
    %c0_i32_1 = arith.constant 0 : i32
    %c0_i32_2 = arith.constant 0 : i32
    return %c0_i32, %c0_i32_0, %c0_i32_1 : i32, i32, i32
  }
  func.func @transform_11(%arg0: i32) -> (i32, i32, i32) {
    %c0_i32 = arith.constant 0 : i32
    %c0_i32_0 = arith.constant 0 : i32
    %c0_i32_1 = arith.constant 0 : i32
    %c0_i32_2 = arith.constant 0 : i32
    return %c0_i32, %c0_i32_0, %c0_i32_1 : i32, i32, i32
  }
  func.func @transform_12(%arg0: i32) -> (i32, i32, i32) {
    %c0_i32 = arith.constant 0 : i32
    %c0_i32_0 = arith.constant 0 : i32
    %c0_i32_1 = arith.constant 0 : i32
    %c0_i32_2 = arith.constant 0 : i32
    return %c0_i32, %c0_i32_0, %c0_i32_1 : i32, i32, i32
  }
  func.func @transform_13(%arg0: i32) -> (i32, i32, i32) {
    %c0_i32 = arith.constant 0 : i32
    %c0_i32_0 = arith.constant 0 : i32
    %c0_i32_1 = arith.constant 0 : i32
    %c0_i32_2 = arith.constant 0 : i32
    return %c0_i32, %c0_i32_0, %c0_i32_1 : i32, i32, i32
  }
  func.func @transform_14(%arg0: i32) -> (i32, i32, i32) {
    %c0_i32 = arith.constant 0 : i32
    %c0_i32_0 = arith.constant 0 : i32
    %c0_i32_1 = arith.constant 0 : i32
    %c0_i32_2 = arith.constant 0 : i32
    return %c0_i32, %c0_i32_0, %c0_i32_1 : i32, i32, i32
  }
  func.func @transform_15(%arg0: i32) -> (i32, i32, i32) {
    %c0_i32 = arith.constant 0 : i32
    %c0_i32_0 = arith.constant 0 : i32
    %c0_i32_1 = arith.constant 0 : i32
    %c0_i32_2 = arith.constant 0 : i32
    return %c0_i32, %c0_i32_0, %c0_i32_1 : i32, i32, i32
  }
  func.func @transform_16(%arg0: i32) -> (i32, i32) {
    %c0_i32 = arith.constant 0 : i32
    %c0_i32_0 = arith.constant 0 : i32
    %c0_i32_1 = arith.constant 0 : i32
    return %c0_i32, %c0_i32_0 : i32, i32
  }
  func.func @transform_17(%arg0: i32) -> (i32, i32) {
    %c0_i32 = arith.constant 0 : i32
    %c0_i32_0 = arith.constant 0 : i32
    %c0_i32_1 = arith.constant 0 : i32
    return %c0_i32, %c0_i32_0 : i32, i32
  }
  func.func @transform_18(%arg0: i32) -> (i32, i32) {
    %c0_i32 = arith.constant 0 : i32
    %c0_i32_0 = arith.constant 0 : i32
    return %arg0, %c0_i32 : i32, i32
  }
}

</mosaic_0001>

<llo_original>
// kernel: masked_autoencoder_forward.1
$region0: #{masked_autoencoder_forward.1}
  #allocation0 [shape = 'u32[]', space=smem, size = 0x4, offset = 0x4, fixed_abs, tag = 'smem constant byte address 0x4 - core index']
  #allocation1 [shape = 'u32[144,128]{1,0:T(1,128)}', space=vmem, size = 0x12000, scoped, tag = 'internal scratch']
  %s0 = inlined_call_operand.vmem [shape: bf16[32,8], index: 0, kind: input, shape index: {}]
  %s1 = inlined_call_operand.vmem [shape: f32[8,64], index: 1, kind: input, shape index: {}]
  %s2 = inlined_call_operand.vmem [shape: bf16[8,64], index: 2, kind: input, shape index: {}]
  %s3 = inlined_call_operand.vmem [shape: f32[1,64], index: 3, kind: input, shape index: {}]
  %s4 = inlined_call_operand.vmem [shape: bf16[2,64,192], index: 4, kind: input, shape index: {}]
  %s5 = inlined_call_operand.vmem [shape: f32[2,1,192], index: 5, kind: input, shape index: {}]
  %s6 = inlined_call_operand.vmem [shape: bf16[2,64,64], index: 6, kind: input, shape index: {}]
  %s7 = inlined_call_operand.vmem [shape: f32[2,1,64], index: 7, kind: input, shape index: {}]
  %s8 = inlined_call_operand.vmem [shape: f32[2,1,64], index: 8, kind: input, shape index: {}]
  %s9 = inlined_call_operand.vmem [shape: f32[2,1,64], index: 9, kind: input, shape index: {}]
  %s10 = inlined_call_operand.vmem [shape: f32[2,1,64], index: 10, kind: input, shape index: {}]
  %s11 = inlined_call_operand.vmem [shape: f32[2,1,64], index: 11, kind: input, shape index: {}]
  %s12 = inlined_call_operand.vmem [shape: bf16[2,64,256], index: 12, kind: input, shape index: {}]
  %s13 = inlined_call_operand.vmem [shape: f32[2,1,256], index: 13, kind: input, shape index: {}]
  %s14 = inlined_call_operand.vmem [shape: bf16[2,256,64], index: 14, kind: input, shape index: {}]
  %s15 = inlined_call_operand.vmem [shape: f32[2,1,64], index: 15, kind: input, shape index: {}]
  %s16 = inlined_call_operand.vmem [shape: bf16[64,128], index: 16, kind: input, shape index: {}]
  %s17 = inlined_call_operand.vmem [shape: f32[1,128], index: 17, kind: input, shape index: {}]
  %s18 = inlined_call_operand.vmem [shape: f32[32,128], index: 18, kind: output, shape index: {}]
  %s19 = sld [smem:[#allocation0]]
  $region105: #{masked_autoencoder_forward.1} parent=0
    _
  %s21 = ssub.s32 1, %s19
  %s22 = scalar_select 0, %s21, %s19
  loop: start=0, step=1, limit=4
  $region2: #{masked_autoencoder_forward.1} parent=0 // loop_pre_header
    _
  $region3: #{masked_autoencoder_forward.1} parent=0 // loop_header
    %s24 = sphi 0, %s28
    %p25 = scmp.ge.s32.totalorder %s24, 4
    %s34 = sphi 0, %s36
    %s37 = sphi 0, %s34
    %s38 = sphi 0, %s37
    %s54 = sphi 0, %s38
    %s58 = sphi 0, %s58
    %s60 = sphi 0, %s58
    %s61 = sphi 0, %s60
    %s75 = sphi 0, %s61
    %s79 = sphi 0, %s79
    %s81 = sphi 0, %s79
    %s82 = sphi 0, %s81
    %s96 = sphi 0, %s82
    %s100 = sphi 0, %s100
    %s102 = sphi 0, %s100
    %s103 = sphi 0, %s102
    %s117 = sphi 0, %s103
    %s121 = sphi 0, %s121
    %s123 = sphi 0, %s121
    %s124 = sphi 0, %s123
    %s138 = sphi 0, %s124
    %s142 = sphi 0, %s142
    %s144 = sphi 0, %s142
    %s145 = sphi 0, %s144
    %s159 = sphi 0, %s145
    %s163 = sphi 0, %s163
    %s165 = sphi 0, %s163
    %s166 = sphi 0, %s165
    %s180 = sphi 0, %s166
    %s184 = sphi 0, %s184
    %s186 = sphi 0, %s184
    %s187 = sphi 0, %s186
    %s201 = sphi 0, %s187
    %s205 = sphi 0, %s205
    %s207 = sphi 0, %s205
    %s208 = sphi 0, %s207
    %s222 = sphi 0, %s208
    %s226 = sphi 0, %s226
    %s228 = sphi 0, %s226
    %s229 = sphi 0, %s228
    %s243 = sphi 0, %s229
    %s247 = sphi 0, %s247
    %s249 = sphi 0, %s247
    %s250 = sphi 0, %s249
    %s264 = sphi 0, %s250
    %s268 = sphi 0, %s268
    %s270 = sphi 0, %s268
    %s271 = sphi 0, %s270
    %s285 = sphi 0, %s271
    %s289 = sphi 0, %s289
    %s291 = sphi 0, %s289
    %s292 = sphi 0, %s291
    %s306 = sphi 0, %s292
    %s310 = sphi 0, %s310
    %s312 = sphi 0, %s310
    %s313 = sphi 0, %s312
    %s327 = sphi 0, %s313
    %s331 = sphi 0, %s331
    %s333 = sphi 0, %s331
    %s334 = sphi 0, %s333
    %s348 = sphi 0, %s334
    %s352 = sphi 0, %s352
    %s354 = sphi 0, %s352
    %s355 = sphi 0, %s354
    %s369 = sphi 0, %s355
    %s373 = sphi 0, %s373
    %s375 = sphi 0, %s373
    %s376 = sphi 0, %s375
    %s390 = sphi 0, %s376
    %s394 = sphi 0, %s394
    %s396 = sphi 0, %s394
    %s397 = sphi 0, %s396
    %s411 = sphi 0, %s397
    %s417 = sphi 0, %s419
    %s420 = sphi 0, %s417
    %s421 = sphi 0, %s420
    %s437 = sphi 0, %s421
  $region4: #{masked_autoencoder_forward.1} parent=0 // loop_header_branch
    %27 = sbr.rel (%p25) target = $region8
  $region5: #{masked_autoencoder_forward.1} parent=0 // loop_body
    %s29 = ssub.s32 %s24, 1
    %s30 = ssub.s32 %s24, 2
    %s31 = sadd.s32 %s24, 1
    %s32 = ssub.s32 %s24, %s31
    %p33 = scmp.eq.s32.totalorder %s32, 0
    %s35 = sadd.s32 %s34, 1
    %s36 = scalar_select %p33, %s34, %s35
    %p39 = pneg %p33
    %p40 = scmp.eq.s32.totalorder %s24, 1
    %p41 = por %p39, %p40
    %p42 = scmp.ne.s32.totalorder %s34, %s37
    %p43 = scmp.eq.s32.totalorder %s24, 0
    %p44 = por %p42, %p43
    %p45 = scmp.ne.s32.totalorder %s34, %s37
    %p46 = scmp.eq.s32.totalorder %s29, 1
    %p47 = por %p45, %p46
    %p48 = scmp.ne.s32.totalorder %s37, %s38
    %p49 = scmp.eq.s32.totalorder %s29, 0
    %p50 = por %p48, %p49
    %p51 = scmp.ne.s32.totalorder %s37, %s38
    %p52 = scmp.eq.s32.totalorder %s30, 1
    %p53 = por %p51, %p52
    %p55 = scmp.ne.s32.totalorder %s38, %s54
    %p56 = scmp.eq.s32.totalorder %s30, 0
    %p57 = por %p55, %p56
    %s59 = sadd.s32 %s58, 1
    %p62 = scmp.eq.s32.totalorder %s24, 1
    %p63 = scmp.ne.s32.totalorder %s58, %s60
    %p64 = scmp.eq.s32.totalorder %s24, 0
    %p65 = por %p63, %p64
    %p66 = scmp.ne.s32.totalorder %s58, %s60
    %p67 = scmp.eq.s32.totalorder %s29, 1
    %p68 = por %p66, %p67
    %p69 = scmp.ne.s32.totalorder %s60, %s61
    %p70 = scmp.eq.s32.totalorder %s29, 0
    %p71 = por %p69, %p70
    %p72 = scmp.ne.s32.totalorder %s60, %s61
    %p73 = scmp.eq.s32.totalorder %s30, 1
    %p74 = por %p72, %p73
    %p76 = scmp.ne.s32.totalorder %s61, %s75
    %p77 = scmp.eq.s32.totalorder %s30, 0
    %p78 = por %p76, %p77
    %s80 = sadd.s32 %s79, 1
    %p83 = scmp.eq.s32.totalorder %s24, 1
    %p84 = scmp.ne.s32.totalorder %s79, %s81
    %p85 = scmp.eq.s32.totalorder %s24, 0
    %p86 = por %p84, %p85
    %p87 = scmp.ne.s32.totalorder %s79, %s81
    %p88 = scmp.eq.s32.totalorder %s29, 1
    %p89 = por %p87, %p88
    %p90 = scmp.ne.s32.totalorder %s81, %s82
    %p91 = scmp.eq.s32.totalorder %s29, 0
    %p92 = por %p90, %p91
    %p93 = scmp.ne.s32.totalorder %s81, %s82
    %p94 = scmp.eq.s32.totalorder %s30, 1
    %p95 = por %p93, %p94
    %p97 = scmp.ne.s32.totalorder %s82, %s96
    %p98 = scmp.eq.s32.totalorder %s30, 0
    %p99 = por %p97, %p98
    %s101 = sadd.s32 %s100, 1
    %p104 = scmp.eq.s32.totalorder %s24, 1
    %p105 = scmp.ne.s32.totalorder %s100, %s102
    %p106 = scmp.eq.s32.totalorder %s24, 0
    %p107 = por %p105, %p106
    %p108 = scmp.ne.s32.totalorder %s100, %s102
    %p109 = scmp.eq.s32.totalorder %s29, 1
    %p110 = por %p108, %p109
    %p111 = scmp.ne.s32.totalorder %s102, %s103
    %p112 = scmp.eq.s32.totalorder %s29, 0
    %p113 = por %p111, %p112
    %p114 = scmp.ne.s32.totalorder %s102, %s103
    %p115 = scmp.eq.s32.totalorder %s30, 1
    %p116 = por %p114, %p115
    %p118 = scmp.ne.s32.totalorder %s103, %s117
    %p119 = scmp.eq.s32.totalorder %s30, 0
    %p120 = por %p118, %p119
    %s122 = sadd.s32 %s121, 1
    %p125 = scmp.eq.s32.totalorder %s24, 1
    %p126 = scmp.ne.s32.totalorder %s121, %s123
    %p127 = scmp.eq.s32.totalorder %s24, 0
    %p128 = por %p126, %p127
    %p129 = scmp.ne.s32.totalorder %s121, %s123
    %p130 = scmp.eq.s32.totalorder %s29, 1
    %p131 = por %p129, %p130
    %p132 = scmp.ne.s32.totalorder %s123, %s124
    %p133 = scmp.eq.s32.totalorder %s29, 0
    %p134 = por %p132, %p133
    %p135 = scmp.ne.s32.totalorder %s123, %s124
    %p136 = scmp.eq.s32.totalorder %s30, 1
    %p137 = por %p135, %p136
    %p139 = scmp.ne.s32.totalorder %s124, %s138
    %p140 = scmp.eq.s32.totalorder %s30, 0
    %p141 = por %p139, %p140
    %s143 = sadd.s32 %s142, 1
    %p146 = scmp.eq.s32.totalorder %s24, 1
    %p147 = scmp.ne.s32.totalorder %s142, %s144
    %p148 = scmp.eq.s32.totalorder %s24, 0
    %p149 = por %p147, %p148
    %p150 = scmp.ne.s32.totalorder %s142, %s144
    %p151 = scmp.eq.s32.totalorder %s29, 1
    %p152 = por %p150, %p151
    %p153 = scmp.ne.s32.totalorder %s144, %s145
    %p154 = scmp.eq.s32.totalorder %s29, 0
    %p155 = por %p153, %p154
    %p156 = scmp.ne.s32.totalorder %s144, %s145
    %p157 = scmp.eq.s32.totalorder %s30, 1
    %p158 = por %p156, %p157
    %p160 = scmp.ne.s32.totalorder %s145, %s159
    %p161 = scmp.eq.s32.totalorder %s30, 0
    %p162 = por %p160, %p161
    %s164 = sadd.s32 %s163, 1
    %p167 = scmp.eq.s32.totalorder %s24, 1
    %p168 = scmp.ne.s32.totalorder %s163, %s165
    %p169 = scmp.eq.s32.totalorder %s24, 0
    %p170 = por %p168, %p169
    %p171 = scmp.ne.s32.totalorder %s163, %s165
    %p172 = scmp.eq.s32.totalorder %s29, 1
    %p173 = por %p171, %p172
    %p174 = scmp.ne.s32.totalorder %s165, %s166
    %p175 = scmp.eq.s32.totalorder %s29, 0
    %p176 = por %p174, %p175
    %p177 = scmp.ne.s32.totalorder %s165, %s166
    %p178 = scmp.eq.s32.totalorder %s30, 1
    %p179 = por %p177, %p178
    %p181 = scmp.ne.s32.totalorder %s166, %s180
    %p182 = scmp.eq.s32.totalorder %s30, 0
    %p183 = por %p181, %p182
    %s185 = sadd.s32 %s184, 1
    %p188 = scmp.eq.s32.totalorder %s24, 1
    %p189 = scmp.ne.s32.totalorder %s184, %s186
    %p190 = scmp.eq.s32.totalorder %s24, 0
    %p191 = por %p189, %p190
    %p192 = scmp.ne.s32.totalorder %s184, %s186
    %p193 = scmp.eq.s32.totalorder %s29, 1
    %p194 = por %p192, %p193
    %p195 = scmp.ne.s32.totalorder %s186, %s187
    %p196 = scmp.eq.s32.totalorder %s29, 0
    %p197 = por %p195, %p196
    %p198 = scmp.ne.s32.totalorder %s186, %s187
    %p199 = scmp.eq.s32.totalorder %s30, 1
    %p200 = por %p198, %p199
    %p202 = scmp.ne.s32.totalorder %s187, %s201
    %p203 = scmp.eq.s32.totalorder %s30, 0
    %p204 = por %p202, %p203
    %s206 = sadd.s32 %s205, 1
    %p209 = scmp.eq.s32.totalorder %s24, 1
    %p210 = scmp.ne.s32.totalorder %s205, %s207
    %p211 = scmp.eq.s32.totalorder %s24, 0
    %p212 = por %p210, %p211
    %p213 = scmp.ne.s32.totalorder %s205, %s207
    %p214 = scmp.eq.s32.totalorder %s29, 1
    %p215 = por %p213, %p214
    %p216 = scmp.ne.s32.totalorder %s207, %s208
    %p217 = scmp.eq.s32.totalorder %s29, 0
    %p218 = por %p216, %p217
    %p219 = scmp.ne.s32.totalorder %s207, %s208
    %p220 = scmp.eq.s32.totalorder %s30, 1
    %p221 = por %p219, %p220
    %p223 = scmp.ne.s32.totalorder %s208, %s222
    %p224 = scmp.eq.s32.totalorder %s30, 0
    %p225 = por %p223, %p224
    %s227 = sadd.s32 %s226, 1
    %p230 = scmp.eq.s32.totalorder %s24, 1
    %p231 = scmp.ne.s32.totalorder %s226, %s228
    %p232 = scmp.eq.s32.totalorder %s24, 0
    %p233 = por %p231, %p232
    %p234 = scmp.ne.s32.totalorder %s226, %s228
    %p235 = scmp.eq.s32.totalorder %s29, 1
    %p236 = por %p234, %p235
    %p237 = scmp.ne.s32.totalorder %s228, %s229
    %p238 = scmp.eq.s32.totalorder %s29, 0
    %p239 = por %p237, %p238
    %p240 = scmp.ne.s32.totalorder %s228, %s229
    %p241 = scmp.eq.s32.totalorder %s30, 1
    %p242 = por %p240, %p241
    %p244 = scmp.ne.s32.totalorder %s229, %s243
    %p245 = scmp.eq.s32.totalorder %s30, 0
    %p246 = por %p244, %p245
    %s248 = sadd.s32 %s247, 1
    %p251 = scmp.eq.s32.totalorder %s24, 1
    %p252 = scmp.ne.s32.totalorder %s247, %s249
    %p253 = scmp.eq.s32.totalorder %s24, 0
    %p254 = por %p252, %p253
    %p255 = scmp.ne.s32.totalorder %s247, %s249
    %p256 = scmp.eq.s32.totalorder %s29, 1
    %p257 = por %p255, %p256
    %p258 = scmp.ne.s32.totalorder %s249, %s250
    %p259 = scmp.eq.s32.totalorder %s29, 0
    %p260 = por %p258, %p259
    %p261 = scmp.ne.s32.totalorder %s249, %s250
    %p262 = scmp.eq.s32.totalorder %s30, 1
    %p263 = por %p261, %p262
    %p265 = scmp.ne.s32.totalorder %s250, %s264
    %p266 = scmp.eq.s32.totalorder %s30, 0
    %p267 = por %p265, %p266
    %s269 = sadd.s32 %s268, 1
    %p272 = scmp.eq.s32.totalorder %s24, 1
    %p273 = scmp.ne.s32.totalorder %s268, %s270
    %p274 = scmp.eq.s32.totalorder %s24, 0
    %p275 = por %p273, %p274
    %p276 = scmp.ne.s32.totalorder %s268, %s270
    %p277 = scmp.eq.s32.totalorder %s29, 1
    %p278 = por %p276, %p277
    %p279 = scmp.ne.s32.totalorder %s270, %s271
    %p280 = scmp.eq.s32.totalorder %s29, 0
    %p281 = por %p279, %p280
    %p282 = scmp.ne.s32.totalorder %s270, %s271
    %p283 = scmp.eq.s32.totalorder %s30, 1
    %p284 = por %p282, %p283
    %p286 = scmp.ne.s32.totalorder %s271, %s285
    %p287 = scmp.eq.s32.totalorder %s30, 0
    %p288 = por %p286, %p287
    %s290 = sadd.s32 %s289, 1
    %p293 = scmp.eq.s32.totalorder %s24, 1
    %p294 = scmp.ne.s32.totalorder %s289, %s291
    %p295 = scmp.eq.s32.totalorder %s24, 0
    %p296 = por %p294, %p295
    %p297 = scmp.ne.s32.totalorder %s289, %s291
    %p298 = scmp.eq.s32.totalorder %s29, 1
    %p299 = por %p297, %p298
    %p300 = scmp.ne.s32.totalorder %s291, %s292
    %p301 = scmp.eq.s32.totalorder %s29, 0
    %p302 = por %p300, %p301
    %p303 = scmp.ne.s32.totalorder %s291, %s292
    %p304 = scmp.eq.s32.totalorder %s30, 1
    %p305 = por %p303, %p304
    %p307 = scmp.ne.s32.totalorder %s292, %s306
    %p308 = scmp.eq.s32.totalorder %s30, 0
    %p309 = por %p307, %p308
    %s311 = sadd.s32 %s310, 1
    %p314 = scmp.eq.s32.totalorder %s24, 1
    %p315 = scmp.ne.s32.totalorder %s310, %s312
    %p316 = scmp.eq.s32.totalorder %s24, 0
    %p317 = por %p315, %p316
    %p318 = scmp.ne.s32.totalorder %s310, %s312
    %p319 = scmp.eq.s32.totalorder %s29, 1
    %p320 = por %p318, %p319
    %p321 = scmp.ne.s32.totalorder %s312, %s313
    %p322 = scmp.eq.s32.totalorder %s29, 0
    %p323 = por %p321, %p322
    %p324 = scmp.ne.s32.totalorder %s312, %s313
    %p325 = scmp.eq.s32.totalorder %s30, 1
    %p326 = por %p324, %p325
    %p328 = scmp.ne.s32.totalorder %s313, %s327
    %p329 = scmp.eq.s32.totalorder %s30, 0
    %p330 = por %p328, %p329
    %s332 = sadd.s32 %s331, 1
    %p335 = scmp.eq.s32.totalorder %s24, 1
    %p336 = scmp.ne.s32.totalorder %s331, %s333
    %p337 = scmp.eq.s32.totalorder %s24, 0
    %p338 = por %p336, %p337
    %p339 = scmp.ne.s32.totalorder %s331, %s333
    %p340 = scmp.eq.s32.totalorder %s29, 1
    %p341 = por %p339, %p340
    %p342 = scmp.ne.s32.totalorder %s333, %s334
    %p343 = scmp.eq.s32.totalorder %s29, 0
    %p344 = por %p342, %p343
    %p345 = scmp.ne.s32.totalorder %s333, %s334
    %p346 = scmp.eq.s32.totalorder %s30, 1
    %p347 = por %p345, %p346
    %p349 = scmp.ne.s32.totalorder %s334, %s348
    %p350 = scmp.eq.s32.totalorder %s30, 0
    %p351 = por %p349, %p350
    %s353 = sadd.s32 %s352, 1
    %p356 = scmp.eq.s32.totalorder %s24, 1
    %p357 = scmp.ne.s32.totalorder %s352, %s354
    %p358 = scmp.eq.s32.totalorder %s24, 0
    %p359 = por %p357, %p358
    %p360 = scmp.ne.s32.totalorder %s352, %s354
    %p361 = scmp.eq.s32.totalorder %s29, 1
    %p362 = por %p360, %p361
    %p363 = scmp.ne.s32.totalorder %s354, %s355
    %p364 = scmp.eq.s32.totalorder %s29, 0
    %p365 = por %p363, %p364
    %p366 = scmp.ne.s32.totalorder %s354, %s355
    %p367 = scmp.eq.s32.totalorder %s30, 1
    %p368 = por %p366, %p367
    %p370 = scmp.ne.s32.totalorder %s355, %s369
    %p371 = scmp.eq.s32.totalorder %s30, 0
    %p372 = por %p370, %p371
    %s374 = sadd.s32 %s373, 1
    %p377 = scmp.eq.s32.totalorder %s24, 1
    %p378 = scmp.ne.s32.totalorder %s373, %s375
    %p379 = scmp.eq.s32.totalorder %s24, 0
    %p380 = por %p378, %p379
    %p381 = scmp.ne.s32.totalorder %s373, %s375
    %p382 = scmp.eq.s32.totalorder %s29, 1
    %p383 = por %p381, %p382
    %p384 = scmp.ne.s32.totalorder %s375, %s376
    %p385 = scmp.eq.s32.totalorder %s29, 0
    %p386 = por %p384, %p385
    %p387 = scmp.ne.s32.totalorder %s375, %s376
    %p388 = scmp.eq.s32.totalorder %s30, 1
    %p389 = por %p387, %p388
    %p391 = scmp.ne.s32.totalorder %s376, %s390
    %p392 = scmp.eq.s32.totalorder %s30, 0
    %p393 = por %p391, %p392
    %s395 = sadd.s32 %s394, 1
    %p398 = scmp.eq.s32.totalorder %s24, 1
    %p399 = scmp.ne.s32.totalorder %s394, %s396
    %p400 = scmp.eq.s32.totalorder %s24, 0
    %p401 = por %p399, %p400
    %p402 = scmp.ne.s32.totalorder %s394, %s396
    %p403 = scmp.eq.s32.totalorder %s29, 1
    %p404 = por %p402, %p403
    %p405 = scmp.ne.s32.totalorder %s396, %s397
    %p406 = scmp.eq.s32.totalorder %s29, 0
    %p407 = por %p405, %p406
    %p408 = scmp.ne.s32.totalorder %s396, %s397
    %p409 = scmp.eq.s32.totalorder %s30, 1
    %p410 = por %p408, %p409
    %p412 = scmp.ne.s32.totalorder %s397, %s411
    %p413 = scmp.eq.s32.totalorder %s30, 0
    %p414 = por %p412, %p413
    %s415 = ssub.s32 %s24, %s31
    %p416 = scmp.eq.s32.totalorder %s415, 0
    %s418 = sadd.s32 %s417, 1
    %s419 = scalar_select %p416, %s417, %s418
    %p422 = pneg %p416
    %p423 = scmp.eq.s32.totalorder %s24, 1
    %p424 = por %p422, %p423
    %p425 = scmp.ne.s32.totalorder %s417, %s420
    %p426 = scmp.eq.s32.totalorder %s24, 0
    %p427 = por %p425, %p426
    %p428 = scmp.ne.s32.totalorder %s417, %s420
    %p429 = scmp.eq.s32.totalorder %s29, 1
    %p430 = por %p428, %p429
    %p431 = scmp.ne.s32.totalorder %s420, %s421
    %p432 = scmp.eq.s32.totalorder %s29, 0
    %p433 = por %p431, %p432
    %p434 = scmp.ne.s32.totalorder %s420, %s421
    %p435 = scmp.eq.s32.totalorder %s30, 1
    %p436 = por %p434, %p435
    %p438 = scmp.ne.s32.totalorder %s421, %s437
    %p439 = scmp.eq.s32.totalorder %s30, 0
    %p440 = por %p438, %p439
    %p441 = scmp.le.s32.totalorder 1, %s24
    %p442 = scmp.lt.s32.totalorder %s24, 3
    %p443 = pnand %p441, %p442
    %p444 = pneg %p443
    // Predicated region
    $region9: #{masked_autoencoder_forward.1} parent=5 // pred_check
      _
    $region10: #{masked_autoencoder_forward.1} parent=5 // pred_check_branch
      %446 = sbr.rel (%p443) target = $region12
    $region11: #{masked_autoencoder_forward.1} parent=5 // pred_region
      %s447 = ssub.s32 %s24, 1
      // Predicated region
      $region13: #{masked_autoencoder_forward.1} parent=11 // pred_check
        %p448 = pneg %p71
      $region14: #{masked_autoencoder_forward.1} parent=11 // pred_check_branch
        %450 = sbr.rel (%p448) target = $region16
      $region15: #{masked_autoencoder_forward.1} parent=11 // pred_region
        _
      $region16: #{masked_autoencoder_forward.1} parent=11 // pred_fallthru
        _
      // Predicated region
      $region17: #{masked_autoencoder_forward.1} parent=11 // pred_check
        %p451 = pneg %p92
      $region18: #{masked_autoencoder_forward.1} parent=11 // pred_check_branch
        %453 = sbr.rel (%p451) target = $region20
      $region19: #{masked_autoencoder_forward.1} parent=11 // pred_region
        _
      $region20: #{masked_autoencoder_forward.1} parent=11 // pred_fallthru
        _
      // Predicated region
      $region21: #{masked_autoencoder_forward.1} parent=11 // pred_check
        %p454 = pneg %p113
      $region22: #{masked_autoencoder_forward.1} parent=11 // pred_check_branch
        %456 = sbr.rel (%p454) target = $region24
      $region23: #{masked_autoencoder_forward.1} parent=11 // pred_region
        _
      $region24: #{masked_autoencoder_forward.1} parent=11 // pred_fallthru
        _
      // Predicated region
      $region25: #{masked_autoencoder_forward.1} parent=11 // pred_check
        %p457 = pneg %p134
      $region26: #{masked_autoencoder_forward.1} parent=11 // pred_check_branch
        %459 = sbr.rel (%p457) target = $region28
      $region27: #{masked_autoencoder_forward.1} parent=11 // pred_region
        _
      $region28: #{masked_autoencoder_forward.1} parent=11 // pred_fallthru
        _
      // Predicated region
      $region29: #{masked_autoencoder_forward.1} parent=11 // pred_check
        %p460 = pneg %p155
      $region30: #{masked_autoencoder_forward.1} parent=11 // pred_check_branch
        %462 = sbr.rel (%p460) target = $region32
      $region31: #{masked_autoencoder_forward.1} parent=11 // pred_region
        _
      $region32: #{masked_autoencoder_forward.1} parent=11 // pred_fallthru
        _
      // Predicated region
      $region33: #{masked_autoencoder_forward.1} parent=11 // pred_check
        %p463 = pneg %p176
      $region34: #{masked_autoencoder_forward.1} parent=11 // pred_check_branch
        %465 = sbr.rel (%p463) target = $region36
      $region35: #{masked_autoencoder_forward.1} parent=11 // pred_region
        _
      $region36: #{masked_autoencoder_forward.1} parent=11 // pred_fallthru
        _
      // Predicated region
      $region37: #{masked_autoencoder_forward.1} parent=11 // pred_check
        %p466 = pneg %p197
      $region38: #{masked_autoencoder_forward.1} parent=11 // pred_check_branch
        %468 = sbr.rel (%p466) target = $region40
      $region39: #{masked_autoencoder_forward.1} parent=11 // pred_region
        _
      $region40: #{masked_autoencoder_forward.1} parent=11 // pred_fallthru
        _
      // Predicated region
      $region41: #{masked_autoencoder_forward.1} parent=11 // pred_check
        %p469 = pneg %p218
      $region42: #{masked_autoencoder_forward.1} parent=11 // pred_check_branch
        %471 = sbr.rel (%p469) target = $region44
      $region43: #{masked_autoencoder_forward.1} parent=11 // pred_region
        _
      $region44: #{masked_autoencoder_forward.1} parent=11 // pred_fallthru
        _
      // Predicated region
      $region45: #{masked_autoencoder_forward.1} parent=11 // pred_check
        %p472 = pneg %p239
      $region46: #{masked_autoencoder_forward.1} parent=11 // pred_check_branch
        %474 = sbr.rel (%p472) target = $region48
      $region47: #{masked_autoencoder_forward.1} parent=11 // pred_region
        _
      $region48: #{masked_autoencoder_forward.1} parent=11 // pred_fallthru
        _
      // Predicated region
      $region49: #{masked_autoencoder_forward.1} parent=11 // pred_check
        %p475 = pneg %p260
      $region50: #{masked_autoencoder_forward.1} parent=11 // pred_check_branch
        %477 = sbr.rel (%p475) target = $region52
      $region51: #{masked_autoencoder_forward.1} parent=11 // pred_region
        _
      $region52: #{masked_autoencoder_forward.1} parent=11 // pred_fallthru
        _
      // Predicated region
      $region53: #{masked_autoencoder_forward.1} parent=11 // pred_check
        %p478 = pneg %p281
      $region54: #{masked_autoencoder_forward.1} parent=11 // pred_check_branch
        %480 = sbr.rel (%p478) target = $region56
      $region55: #{masked_autoencoder_forward.1} parent=11 // pred_region
        _
      $region56: #{masked_autoencoder_forward.1} parent=11 // pred_fallthru
        _
      // Predicated region
      $region57: #{masked_autoencoder_forward.1} parent=11 // pred_check
        %p481 = pneg %p302
      $region58: #{masked_autoencoder_forward.1} parent=11 // pred_check_branch
        %483 = sbr.rel (%p481) target = $region60
      $region59: #{masked_autoencoder_forward.1} parent=11 // pred_region
        _
      $region60: #{masked_autoencoder_forward.1} parent=11 // pred_fallthru
        _
      // Predicated region
      $region61: #{masked_autoencoder_forward.1} parent=11 // pred_check
        %p484 = pneg %p323
      $region62: #{masked_autoencoder_forward.1} parent=11 // pred_check_branch
        %486 = sbr.rel (%p484) target = $region64
      $region63: #{masked_autoencoder_forward.1} parent=11 // pred_region
        _
      $region64: #{masked_autoencoder_forward.1} parent=11 // pred_fallthru
        _
      // Predicated region
      $region65: #{masked_autoencoder_forward.1} parent=11 // pred_check
        %p487 = pneg %p344
      $region66: #{masked_autoencoder_forward.1} parent=11 // pred_check_branch
        %489 = sbr.rel (%p487) target = $region68
      $region67: #{masked_autoencoder_forward.1} parent=11 // pred_region
        _
      $region68: #{masked_autoencoder_forward.1} parent=11 // pred_fallthru
        _
      // Predicated region
      $region69: #{masked_autoencoder_forward.1} parent=11 // pred_check
        %p490 = pneg %p365
      $region70: #{masked_autoencoder_forward.1} parent=11 // pred_check_branch
        %492 = sbr.rel (%p490) target = $region72
      $region71: #{masked_autoencoder_forward.1} parent=11 // pred_region
        _
      $region72: #{masked_autoencoder_forward.1} parent=11 // pred_fallthru
        _
      // Predicated region
      $region73: #{masked_autoencoder_forward.1} parent=11 // pred_check
        %p493 = pneg %p386
      $region74: #{masked_autoencoder_forward.1} parent=11 // pred_check_branch
        %495 = sbr.rel (%p493) target = $region76
      $region75: #{masked_autoencoder_forward.1} parent=11 // pred_region
        _
      $region76: #{masked_autoencoder_forward.1} parent=11 // pred_fallthru
        _
      // Predicated region
      $region77: #{masked_autoencoder_forward.1} parent=11 // pred_check
        %p496 = pneg %p407
      $region78: #{masked_autoencoder_forward.1} parent=11 // pred_check_branch
        %498 = sbr.rel (%p496) target = $region80
      $region79: #{masked_autoencoder_forward.1} parent=11 // pred_region
        _
      $region80: #{masked_autoencoder_forward.1} parent=11 // pred_fallthru
        _
    $region12: #{masked_autoencoder_forward.1} parent=5 // pred_fallthru
      _
    %p499 = scmp.lt.s32.totalorder %s24, 2
    // Predicated region
    $region81: #{masked_autoencoder_forward.1} parent=5 // pred_check
      %p500 = pneg %p499
    $region82: #{masked_autoencoder_forward.1} parent=5 // pred_check_branch
      %502 = sbr.rel (%p500) target = $region84
    $region83: #{masked_autoencoder_forward.1} parent=5 // pred_region
      // Predicated region
      $region85: #{masked_autoencoder_forward.1} parent=83 // pred_check
        %p503 = pneg %p44
      $region86: #{masked_autoencoder_forward.1} parent=83 // pred_check_branch
        %505 = sbr.rel (%p503) target = $region88
      $region87: #{masked_autoencoder_forward.1} parent=83 // pred_region
        %s506 = smul.u32 2, %s24
        %p507 = scmp.lt.s32.totalorder %s506, 3
        %s508 = scalar_select %p507, %s506, 3
        %s509 = smul.addr %s508, 4
        %s510 = scalar_lea.vmem %s0, %s509
        %s511 = smul.u32 2, %s24
      $region88: #{masked_autoencoder_forward.1} parent=83 // pred_fallthru
        _
    $region84: #{masked_autoencoder_forward.1} parent=5 // pred_fallthru
      _
    %p512 = scmp.le.s32.totalorder 1, %s24
    %p513 = scmp.lt.s32.totalorder %s24, 3
    %p514 = pnand %p512, %p513
    %p515 = pneg %p514
    // Predicated region
    $region89: #{masked_autoencoder_forward.1} parent=5 // pred_check
      _
    $region90: #{masked_autoencoder_forward.1} parent=5 // pred_check_branch
      %517 = sbr.rel (%p514) target = $region92
    $region91: #{masked_autoencoder_forward.1} parent=5 // pred_region
      %s518 = ssub.s32 %s24, 1
      %s519 = smul.u32 2, %s29
      %p520 = scmp.lt.s32.totalorder %s519, 3
      %s521 = scalar_select %p520, %s519, 3
      %s522 = smul.addr %s521, 4
      %s523 = scalar_lea.vmem %s0, %s522
      %p524 = pneg %p50
      %p525 = pneg %p47
      %p526 = pneg %p71
      %p527 = pneg %p68
      %p528 = pneg %p92
      %p529 = pneg %p89
      %p530 = pneg %p113
      %p531 = pneg %p110
      %p532 = pneg %p134
      %p533 = pneg %p131
      %p534 = pneg %p155
      %p535 = pneg %p152
      %p536 = pneg %p176
      %p537 = pneg %p173
      %p538 = pneg %p197
      %p539 = pneg %p194
      %p540 = pneg %p218
      %p541 = pneg %p215
      %p542 = pneg %p239
      %p543 = pneg %p236
      %p544 = pneg %p260
      %p545 = pneg %p257
      %p546 = pneg %p281
      %p547 = pneg %p278
      %p548 = pneg %p302
      %p549 = pneg %p299
      %p550 = pneg %p323
      %p551 = pneg %p320
      %p552 = pneg %p344
      %p553 = pneg %p341
      %p554 = pneg %p365
      %p555 = pneg %p362
      %p556 = pneg %p386
      %p557 = pneg %p383
      %p558 = pneg %p407
      %p559 = pneg %p404
      %p560 = pneg %p433
      %p561 = pneg %p430
      %s562 = smul.u32 2, %s29
      %p563 = scmp.lt.s32.totalorder %s562, 3
      %s564 = scalar_select %p563, %s562, 3
      %s565 = smul.addr %s564, 8
      %s566 = scalar_lea.vmem %s18, %s565
      %s567 = smul.u32 2, %s29
      %p568 = scmp.lt.s32.totalorder %s567, 3
      %s569 = scalar_select %p568, %s567, 3
      %s570 = smul.addr %s569, 4
      %s571 = scalar_lea.vmem %s0, %s570
      %s572 = smul.u32 2, %s29
      %s573 = smul.u32 2, %s29
      %p574 = scmp.lt.s32.totalorder %s573, 3
      %s575 = scalar_select %p574, %s573, 3
      %s576 = smul.addr %s575, 8
      %s577 = scalar_lea.vmem %s18, %s576
      %s578 = smul.u32 2, %s29
      %v580 = vld [vmem:[%s571] sm:$0xf]
      %v581 = vld [vmem:[%s571 + $0x4] sm:$0xf]
      %v582 = vld [vmem:[%s2] sm:$0xf]
      %v583 = vld [vmem:[%s3] sm:$0x1]
      %v585 = vlaneseq
      %v586 = vshrl.u32 %v585, 7
      %v587 = vsub.s32 0, %v586
      %v588 = vrot.slane %v583, %v587
      %v592 = vunpack.c.l.b16 %v580
      %v593 = vunpack.c.l.b16 %v581
      %v594 = vpack.c.b16 %v593, %v592
      %vm595 = vcmask 64512
      %v597 = vsel %vm595, %v594, 0
      %vm599 = vcmask 1043456
      %v601 = vsel %vm599, %v582, 0
      %603 = vmatprep.subr.bf16.mxu0 0
      %604 = vmatpush1.bf16.msra.mxu0 %v601
      %605 = vmatprep.subr.bf16.mxu0 0
      %606 = vmatpush1.bf16.msra.mxu0 0
      %607 = vmatprep.subr.bf16.mxu0 0
      %608 = vmatpush1.bf16.msra.mxu0 0
      %609 = vmatprep.subr.bf16.mxu0 0
      %610 = vmatpush1.bf16.msra.mxu0 0
      %611 = vmatprep.subr.bf16.mxu0 0
      %612 = vmatpush1.bf16.msra.mxu0 0
      %613 = vmatprep.subr.bf16.mxu0 0
      %614 = vmatpush1.bf16.msra.mxu0 0
      %615 = vmatprep.subr.bf16.mxu0 0
      %616 = vmatpush1.bf16.msra.mxu0 0
      %617 = vmatprep.subr.bf16.mxu0 0
      %618 = vmatpush1.bf16.msra.mxu0 0
      %619 = vmatprep.subr.bf16.mxu0 0
      %620 = vmatpush1.bf16.msra.mxu0 0
      %621 = vmatprep.subr.bf16.mxu0 0
      %622 = vmatpush1.bf16.msra.mxu0 0
      %623 = vmatprep.subr.bf16.mxu0 0
      %624 = vmatpush1.bf16.msra.mxu0 0
      %625 = vmatprep.subr.bf16.mxu0 0
      %626 = vmatpush1.bf16.msra.mxu0 0
      %627 = vmatprep.subr.bf16.mxu0 0
      %628 = vmatpush1.bf16.msra.mxu0 0
      %629 = vmatprep.subr.bf16.mxu0 0
      %630 = vmatpush1.bf16.msra.mxu0 0
      %631 = vmatprep.subr.bf16.mxu0 0
      %632 = vmatpush1.bf16.msra.mxu0 0
      %633 = vmatprep.subr.bf16.mxu0 0
      %634 = vmatpush1.bf16.msra.mxu0 0
      %635 = vmatprep.mubr.bf16.mxu0 0
      %636 = vmatmul.mubr.bf16.gmra.mrb[0].mxu0 %v597
      %v637 = vpop.f32.mrb[0].mxu0
      %v638 = vadd.f32 %v588, %v637
      %v639 = vpop.f32.mrb[0].mxu0
      %v640 = vpop.f32.mrb[0].mxu0
      %v641 = vadd.f32 %v588, %v640
      %v642 = vpop.f32.mrb[0].mxu0
      %643 = vdwg.mxu0
      %v644 = vld [vmem:[%s1] sm:$0xff]
      %v645 = vadd.f32 %v638, %v644
      %v646 = vadd.f32 %v641, %v644
      %v647 = vpack.c.bf16 %v646, %v645
      %v648 = vld [vmem:[%s4] sm:$0xff]
      %v649 = vld [vmem:[%s4 + $0x8] sm:$0xff]
      %v650 = vld [vmem:[%s4 + $0x10] sm:$0xff]
      %v651 = vld [vmem:[%s4 + $0x18] sm:$0xff]
      %v652 = vld [vmem:[%s4 + $0x20] sm:$0xff]
      %v653 = vld [vmem:[%s4 + $0x28] sm:$0xff]
      %v654 = vld [vmem:[%s4 + $0x30] sm:$0xff]
      %v655 = vld [vmem:[%s4 + $0x38] sm:$0xff]
      %v656 = vld [vmem:[%s5] sm:$0x3]
      %v658 = vlaneseq
      %v659 = vshrl.u32 %v658, 7
      %v660 = vsub.s32 0, %v659
      %v661 = vrot.slane %v656, %v660
      %v662 = vlaneseq
      %v663 = vshrl.u32 %v662, 7
      %v664 = vsub.s32 1, %v663
      %v665 = vrot.slane %v656, %v664
      %v676 = vunpack.c.l.b16 %v648
      %v677 = vunpack.c.h.b16 %v648
      %v678 = vunpack.c.l.b16 %v649
      %v679 = vunpack.c.h.b16 %v649
      %v680 = vunpack.c.l.b16 %v650
      %v681 = vunpack.c.h.b16 %v650
      %v682 = vunpack.c.l.b16 %v651
      %v683 = vunpack.c.h.b16 %v651
      %v684 = vunpack.c.l.b16 %v652
      %v685 = vunpack.c.h.b16 %v652
      %v686 = vunpack.c.l.b16 %v653
      %v687 = vunpack.c.h.b16 %v653
      %v688 = vunpack.c.l.b16 %v654
      %v689 = vunpack.c.h.b16 %v654
      %v690 = vunpack.c.l.b16 %v655
      %v691 = vunpack.c.h.b16 %v655
      %v692 = vpack.c.b16 %v678, %v676
      %v693 = vpack.c.b16 %v679, %v677
      %v694 = vpack.c.b16 %v682, %v680
      %v695 = vpack.c.b16 %v683, %v681
      %v696 = vpack.c.b16 %v686, %v684
      %v697 = vpack.c.b16 %v687, %v685
      %v698 = vpack.c.b16 %v690, %v688
      %v699 = vpack.c.b16 %v691, %v689
      %vm708 = vcmask 523264
      %v710 = vsel %vm708, %v647, 0
      %712 = vmatprep.subr.bf16.mxu0 %v693
      %713 = vmatpush1.bf16.msra.mxu0 %v692
      %714 = vmatprep.subr.bf16.mxu0 %v695
      %715 = vmatpush1.bf16.msra.mxu0 %v694
      %716 = vmatprep.subr.bf16.mxu0 %v697
      %717 = vmatpush1.bf16.msra.mxu0 %v696
      %718 = vmatprep.subr.bf16.mxu0 %v699
      %719 = vmatpush1.bf16.msra.mxu0 %v698
      %720 = vmatprep.subr.bf16.mxu0 0
      %721 = vmatpush1.bf16.msra.mxu0 0
      %722 = vmatprep.subr.bf16.mxu0 0
      %723 = vmatpush1.bf16.msra.mxu0 0
      %724 = vmatprep.subr.bf16.mxu0 0
      %725 = vmatpush1.bf16.msra.mxu0 0
      %726 = vmatprep.subr.bf16.mxu0 0
      %727 = vmatpush1.bf16.msra.mxu0 0
      %728 = vmatprep.subr.bf16.mxu0 0
      %729 = vmatpush1.bf16.msra.mxu0 0
      %730 = vmatprep.subr.bf16.mxu0 0
      %731 = vmatpush1.bf16.msra.mxu0 0
      %732 = vmatprep.subr.bf16.mxu0 0
      %733 = vmatpush1.bf16.msra.mxu0 0
      %734 = vmatprep.subr.bf16.mxu0 0
      %735 = vmatpush1.bf16.msra.mxu0 0
      %736 = vmatprep.subr.bf16.mxu0 0
      %737 = vmatpush1.bf16.msra.mxu0 0
      %738 = vmatprep.subr.bf16.mxu0 0
      %739 = vmatpush1.bf16.msra.mxu0 0
      %740 = vmatprep.subr.bf16.mxu0 0
      %741 = vmatpush1.bf16.msra.mxu0 0
      %742 = vmatprep.subr.bf16.mxu0 0
      %743 = vmatpush1.bf16.msra.mxu0 0
      %744 = vmatprep.mubr.bf16.mxu0 0
      %745 = vmatmul.mubr.bf16.gmra.mrb[0].mxu0 %v710
      %v746 = vpop.f32.mrb[0].mxu0
      %v747 = vadd.f32 %v661, %v746
      %v748 = vpop.f32.mrb[0].mxu0
      %v749 = vadd.f32 %v665, %v748
      %v750 = vpop.f32.mrb[0].mxu0
      %v751 = vadd.f32 %v661, %v750
      %v752 = vpop.f32.mrb[0].mxu0
      %v753 = vadd.f32 %v665, %v752
      %754 = vdwg.mxu0
      %v755 = vpack.c.bf16 %v747, %v747
      %v756 = vpack.c.bf16 %v751, %v751
      %v757 = vpack.c.bf16 %v749, %v749
      %v758 = vpack.c.bf16 %v753, %v753
      %760 = vrot.lane.b32.xlu0 %v755, 64
      %v761 = vpop.permute.xlu0 %760
      %vm762 = vcmask 130048
      %v764 = vsel %vm762, %v755, 0
      %v767 = vsel %vm762, %v761, 0
      %769 = vmatprep.subr.bf16.mxu0 0
      %770 = vmatpush1.bf16.xpose.msra.mxu0 %v767
      %771 = vmatprep.subr.bf16.mxu0 0
      %772 = vmatpush1.bf16.xpose.msra.mxu0 0
      %773 = vmatprep.subr.bf16.mxu0 0
      %774 = vmatpush1.bf16.xpose.msra.mxu0 0
      %775 = vmatprep.subr.bf16.mxu0 0
      %776 = vmatpush1.bf16.xpose.msra.mxu0 0
      %777 = vmatprep.subr.bf16.mxu0 0
      %778 = vmatpush1.bf16.xpose.msra.mxu0 0
      %779 = vmatprep.subr.bf16.mxu0 0
      %780 = vmatpush1.bf16.xpose.msra.mxu0 0
      %781 = vmatprep.subr.bf16.mxu0 0
      %782 = vmatpush1.bf16.xpose.msra.mxu0 0
      %783 = vmatprep.subr.bf16.mxu0 0
      %784 = vmatpush1.bf16.xpose.msra.mxu0 0
      %785 = vmatprep.subr.bf16.mxu0 0
      %786 = vmatpush1.bf16.xpose.msra.mxu0 0
      %787 = vmatprep.subr.bf16.mxu0 0
      %788 = vmatpush1.bf16.xpose.msra.mxu0 0
      %789 = vmatprep.subr.bf16.mxu0 0
      %790 = vmatpush1.bf16.xpose.msra.mxu0 0
      %791 = vmatprep.subr.bf16.mxu0 0
      %792 = vmatpush1.bf16.xpose.msra.mxu0 0
      %793 = vmatprep.subr.bf16.mxu0 0
      %794 = vmatpush1.bf16.xpose.msra.mxu0 0
      %795 = vmatprep.subr.bf16.mxu0 0
      %796 = vmatpush1.bf16.xpose.msra.mxu0 0
      %797 = vmatprep.subr.bf16.mxu0 0
      %798 = vmatpush1.bf16.xpose.msra.mxu0 0
      %799 = vmatprep.subr.bf16.mxu0 0
      %800 = vmatpush1.bf16.xpose.msra.mxu0 0
      %801 = vmatprep.mubr.bf16.mxu0 0
      %802 = vmatmul.mubr.bf16.gmra.mrb[0].mxu0 %v764
      %v803 = vpop.f32.mrb[0].mxu0
      %v804 = vadd.f32 0.0, %v803
      %v805 = vpop.f32.mrb[0].mxu0
      %v806 = vpop.f32.mrb[0].mxu0
      %v807 = vpop.f32.mrb[0].mxu0
      %808 = vdwg.mxu0
      %810 = vrot.lane.b32.xlu0 %v756, 64
      %v811 = vpop.permute.xlu0 %810
      %v813 = vsel %vm762, %v756, 0
      %v816 = vsel %vm762, %v811, 0
      %818 = vmatprep.subr.bf16.mxu0 0
      %819 = vmatpush1.bf16.xpose.msra.mxu0 %v816
      %820 = vmatprep.subr.bf16.mxu0 0
      %821 = vmatpush1.bf16.xpose.msra.mxu0 0
      %822 = vmatprep.subr.bf16.mxu0 0
      %823 = vmatpush1.bf16.xpose.msra.mxu0 0
      %824 = vmatprep.subr.bf16.mxu0 0
      %825 = vmatpush1.bf16.xpose.msra.mxu0 0
      %826 = vmatprep.subr.bf16.mxu0 0
      %827 = vmatpush1.bf16.xpose.msra.mxu0 0
      %828 = vmatprep.subr.bf16.mxu0 0
      %829 = vmatpush1.bf16.xpose.msra.mxu0 0
      %830 = vmatprep.subr.bf16.mxu0 0
      %831 = vmatpush1.bf16.xpose.msra.mxu0 0
      %832 = vmatprep.subr.bf16.mxu0 0
      %833 = vmatpush1.bf16.xpose.msra.mxu0 0
      %834 = vmatprep.subr.bf16.mxu0 0
      %835 = vmatpush1.bf16.xpose.msra.mxu0 0
      %836 = vmatprep.subr.bf16.mxu0 0
      %837 = vmatpush1.bf16.xpose.msra.mxu0 0
      %838 = vmatprep.subr.bf16.mxu0 0
      %839 = vmatpush1.bf16.xpose.msra.mxu0 0
      %840 = vmatprep.subr.bf16.mxu0 0
      %841 = vmatpush1.bf16.xpose.msra.mxu0 0
      %842 = vmatprep.subr.bf16.mxu0 0
      %843 = vmatpush1.bf16.xpose.msra.mxu0 0
      %844 = vmatprep.subr.bf16.mxu0 0
      %845 = vmatpush1.bf16.xpose.msra.mxu0 0
      %846 = vmatprep.subr.bf16.mxu0 0
      %847 = vmatpush1.bf16.xpose.msra.mxu0 0
      %848 = vmatprep.subr.bf16.mxu0 0
      %849 = vmatpush1.bf16.xpose.msra.mxu0 0
      %850 = vmatprep.mubr.bf16.mxu0 0
      %851 = vmatmul.mubr.bf16.gmra.mrb[0].mxu0 %v813
      %v852 = vpop.f32.mrb[0].mxu0
      %v853 = vadd.f32 0.0, %v852
      %v854 = vpop.f32.mrb[0].mxu0
      %v855 = vpop.f32.mrb[0].mxu0
      %v856 = vpop.f32.mrb[0].mxu0
      %857 = vdwg.mxu0
      %v858 = vsel %vm595, %v804, -inf
      %859 = vmax.xlane.f32.xlu0 %v858
      %v860 = vpop.xlane.xlu0 %859
      %v861 = vsel %vm595, %v853, -inf
      %862 = vmax.xlane.f32.xlu0 %v861
      %v863 = vpop.xlane.xlu0 %862
      %v864 = vsub.f32 %v804, %v860
      %v865 = vsub.f32 %v853, %v863
      %v866 = vmul.f32 %v864, 1.442695
      %v867 = vpow.pop %v866
      %v868 = vmul.f32 %v865, 1.442695
      %v869 = vpow.pop %v868
      %v870 = vsel %vm595, %v867, 0.0
      %871 = vadd.xlane.f32.xlu0 %v870
      %v872 = vpop.xlane.xlu0 %871
      %v873 = vsel %vm595, %v869, 0.0
      %874 = vadd.xlane.f32.xlu0 %v873
      %v875 = vpop.xlane.xlu0 %874
      %v876 = vrcp.pop %v872
      %v877 = vrcp.pop %v875
      %v878 = vmul.f32 %v867, %v876
      %v879 = vmul.f32 %v869, %v877
      %v880 = vpack.c.bf16 %v878, %v878
      %v881 = vpack.c.bf16 %v879, %v879
      %v883 = vsel %vm595, %v880, 0
      %v886 = vsel %vm599, %v757, 0
      %888 = vmatprep.subr.bf16.mxu0 0
      %889 = vmatpush1.bf16.msra.mxu0 %v886
      %890 = vmatprep.subr.bf16.mxu0 0
      %891 = vmatpush1.bf16.msra.mxu0 0
      %892 = vmatprep.subr.bf16.mxu0 0
      %893 = vmatpush1.bf16.msra.mxu0 0
      %894 = vmatprep.subr.bf16.mxu0 0
      %895 = vmatpush1.bf16.msra.mxu0 0
      %896 = vmatprep.subr.bf16.mxu0 0
      %897 = vmatpush1.bf16.msra.mxu0 0
      %898 = vmatprep.subr.bf16.mxu0 0
      %899 = vmatpush1.bf16.msra.mxu0 0
      %900 = vmatprep.subr.bf16.mxu0 0
      %901 = vmatpush1.bf16.msra.mxu0 0
      %902 = vmatprep.subr.bf16.mxu0 0
      %903 = vmatpush1.bf16.msra.mxu0 0
      %904 = vmatprep.subr.bf16.mxu0 0
      %905 = vmatpush1.bf16.msra.mxu0 0
      %906 = vmatprep.subr.bf16.mxu0 0
      %907 = vmatpush1.bf16.msra.mxu0 0
      %908 = vmatprep.subr.bf16.mxu0 0
      %909 = vmatpush1.bf16.msra.mxu0 0
      %910 = vmatprep.subr.bf16.mxu0 0
      %911 = vmatpush1.bf16.msra.mxu0 0
      %912 = vmatprep.subr.bf16.mxu0 0
      %913 = vmatpush1.bf16.msra.mxu0 0
      %914 = vmatprep.subr.bf16.mxu0 0
      %915 = vmatpush1.bf16.msra.mxu0 0
      %916 = vmatprep.subr.bf16.mxu0 0
      %917 = vmatpush1.bf16.msra.mxu0 0
      %918 = vmatprep.subr.bf16.mxu0 0
      %919 = vmatpush1.bf16.msra.mxu0 0
      %920 = vmatprep.mubr.bf16.mxu0 0
      %921 = vmatmul.mubr.bf16.gmra.mrb[0].mxu0 %v883
      %v922 = vpop.f32.mrb[0].mxu0
      %v923 = vadd.f32 0.0, %v922
      %v924 = vpop.f32.mrb[0].mxu0
      %v925 = vpop.f32.mrb[0].mxu0
      %v926 = vpop.f32.mrb[0].mxu0
      %927 = vdwg.mxu0
      %v929 = vsel %vm595, %v881, 0
      %v932 = vsel %vm599, %v758, 0
      %934 = vmatprep.subr.bf16.mxu0 0
      %935 = vmatpush1.bf16.msra.mxu0 %v932
      %936 = vmatprep.subr.bf16.mxu0 0
      %937 = vmatpush1.bf16.msra.mxu0 0
      %938 = vmatprep.subr.bf16.mxu0 0
      %939 = vmatpush1.bf16.msra.mxu0 0
      %940 = vmatprep.subr.bf16.mxu0 0
      %941 = vmatpush1.bf16.msra.mxu0 0
      %942 = vmatprep.subr.bf16.mxu0 0
      %943 = vmatpush1.bf16.msra.mxu0 0
      %944 = vmatprep.subr.bf16.mxu0 0
      %945 = vmatpush1.bf16.msra.mxu0 0
      %946 = vmatprep.subr.bf16.mxu0 0
      %947 = vmatpush1.bf16.msra.mxu0 0
      %948 = vmatprep.subr.bf16.mxu0 0
      %949 = vmatpush1.bf16.msra.mxu0 0
      %950 = vmatprep.subr.bf16.mxu0 0
      %951 = vmatpush1.bf16.msra.mxu0 0
      %952 = vmatprep.subr.bf16.mxu0 0
      %953 = vmatpush1.bf16.msra.mxu0 0
      %954 = vmatprep.subr.bf16.mxu0 0
      %955 = vmatpush1.bf16.msra.mxu0 0
      %956 = vmatprep.subr.bf16.mxu0 0
      %957 = vmatpush1.bf16.msra.mxu0 0
      %958 = vmatprep.subr.bf16.mxu0 0
      %959 = vmatpush1.bf16.msra.mxu0 0
      %960 = vmatprep.subr.bf16.mxu0 0
      %961 = vmatpush1.bf16.msra.mxu0 0
      %962 = vmatprep.subr.bf16.mxu0 0
      %963 = vmatpush1.bf16.msra.mxu0 0
      %964 = vmatprep.subr.bf16.mxu0 0
      %965 = vmatpush1.bf16.msra.mxu0 0
      %966 = vmatprep.mubr.bf16.mxu0 0
      %967 = vmatmul.mubr.bf16.gmra.mrb[0].mxu0 %v929
      %v968 = vpop.f32.mrb[0].mxu0
      %v969 = vadd.f32 0.0, %v968
      %v970 = vpop.f32.mrb[0].mxu0
      %v971 = vpop.f32.mrb[0].mxu0
      %v972 = vpop.f32.mrb[0].mxu0
      %973 = vdwg.mxu0
      %974 = vrot.lane.b32.xlu0 %v755, 112
      %v975 = vpop.permute.xlu0 %974
      %976 = vrot.lane.b32.xlu0 %v755, 48
      %v977 = vpop.permute.xlu0 %976
      %v979 = vsel %vm762, %v975, 0
      %v982 = vsel %vm762, %v977, 0
      %984 = vmatprep.subr.bf16.mxu0 0
      %985 = vmatpush1.bf16.xpose.msra.mxu0 %v982
      %986 = vmatprep.subr.bf16.mxu0 0
      %987 = vmatpush1.bf16.xpose.msra.mxu0 0
      %988 = vmatprep.subr.bf16.mxu0 0
      %989 = vmatpush1.bf16.xpose.msra.mxu0 0
      %990 = vmatprep.subr.bf16.mxu0 0
      %991 = vmatpush1.bf16.xpose.msra.mxu0 0
      %992 = vmatprep.subr.bf16.mxu0 0
      %993 = vmatpush1.bf16.xpose.msra.mxu0 0
      %994 = vmatprep.subr.bf16.mxu0 0
      %995 = vmatpush1.bf16.xpose.msra.mxu0 0
      %996 = vmatprep.subr.bf16.mxu0 0
      %997 = vmatpush1.bf16.xpose.msra.mxu0 0
      %998 = vmatprep.subr.bf16.mxu0 0
      %999 = vmatpush1.bf16.xpose.msra.mxu0 0
      %1000 = vmatprep.subr.bf16.mxu0 0
      %1001 = vmatpush1.bf16.xpose.msra.mxu0 0
      %1002 = vmatprep.subr.bf16.mxu0 0
      %1003 = vmatpush1.bf16.xpose.msra.mxu0 0
      %1004 = vmatprep.subr.bf16.mxu0 0
      %1005 = vmatpush1.bf16.xpose.msra.mxu0 0
      %1006 = vmatprep.subr.bf16.mxu0 0
      %1007 = vmatpush1.bf16.xpose.msra.mxu0 0
      %1008 = vmatprep.subr.bf16.mxu0 0
      %1009 = vmatpush1.bf16.xpose.msra.mxu0 0
      %1010 = vmatprep.subr.bf16.mxu0 0
      %1011 = vmatpush1.bf16.xpose.msra.mxu0 0
      %1012 = vmatprep.subr.bf16.mxu0 0
      %1013 = vmatpush1.bf16.xpose.msra.mxu0 0
      %1014 = vmatprep.subr.bf16.mxu0 0
      %1015 = vmatpush1.bf16.xpose.msra.mxu0 0
      %1016 = vmatprep.mubr.bf16.mxu0 0
      %1017 = vmatmul.mubr.bf16.gmra.mrb[0].mxu0 %v979
      %v1018 = vpop.f32.mrb[0].mxu0
      %v1019 = vadd.f32 0.0, %v1018
      %v1020 = vpop.f32.mrb[0].mxu0
      %v1021 = vpop.f32.mrb[0].mxu0
      %v1022 = vpop.f32.mrb[0].mxu0
      %1023 = vdwg.mxu0
      %1024 = vrot.lane.b32.xlu0 %v756, 112
      %v1025 = vpop.permute.xlu0 %1024
      %1026 = vrot.lane.b32.xlu0 %v756, 48
      %v1027 = vpop.permute.xlu0 %1026
      %v1029 = vsel %vm762, %v1025, 0
      %v1032 = vsel %vm762, %v1027, 0
      %1034 = vmatprep.subr.bf16.mxu0 0
      %1035 = vmatpush1.bf16.xpose.msra.mxu0 %v1032
      %1036 = vmatprep.subr.bf16.mxu0 0
      %1037 = vmatpush1.bf16.xpose.msra.mxu0 0
      %1038 = vmatprep.subr.bf16.mxu0 0
      %1039 = vmatpush1.bf16.xpose.msra.mxu0 0
      %1040 = vmatprep.subr.bf16.mxu0 0
      %1041 = vmatpush1.bf16.xpose.msra.mxu0 0
      %1042 = vmatprep.subr.bf16.mxu0 0
      %1043 = vmatpush1.bf16.xpose.msra.mxu0 0
      %1044 = vmatprep.subr.bf16.mxu0 0
      %1045 = vmatpush1.bf16.xpose.msra.mxu0 0
      %1046 = vmatprep.subr.bf16.mxu0 0
      %1047 = vmatpush1.bf16.xpose.msra.mxu0 0
      %1048 = vmatprep.subr.bf16.mxu0 0
      %1049 = vmatpush1.bf16.xpose.msra.mxu0 0
      %1050 = vmatprep.subr.bf16.mxu0 0
      %1051 = vmatpush1.bf16.xpose.msra.mxu0 0
      %1052 = vmatprep.subr.bf16.mxu0 0
      %1053 = vmatpush1.bf16.xpose.msra.mxu0 0
      %1054 = vmatprep.subr.bf16.mxu0 0
      %1055 = vmatpush1.bf16.xpose.msra.mxu0 0
      %1056 = vmatprep.subr.bf16.mxu0 0
      %1057 = vmatpush1.bf16.xpose.msra.mxu0 0
      %1058 = vmatprep.subr.bf16.mxu0 0
      %1059 = vmatpush1.bf16.xpose.msra.mxu0 0
      %1060 = vmatprep.subr.bf16.mxu0 0
      %1061 = vmatpush1.bf16.xpose.msra.mxu0 0
      %1062 = vmatprep.subr.bf16.mxu0 0
      %1063 = vmatpush1.bf16.xpose.msra.mxu0 0
      %1064 = vmatprep.subr.bf16.mxu0 0
      %1065 = vmatpush1.bf16.xpose.msra.mxu0 0
      %1066 = vmatprep.mubr.bf16.mxu0 0
      %1067 = vmatmul.mubr.bf16.gmra.mrb[0].mxu0 %v1029
      %v1068 = vpop.f32.mrb[0].mxu0
      %v1069 = vadd.f32 0.0, %v1068
      %v1070 = vpop.f32.mrb[0].mxu0
      %v1071 = vpop.f32.mrb[0].mxu0
      %v1072 = vpop.f32.mrb[0].mxu0
      %1073 = vdwg.mxu0
      %v1074 = vsel %vm595, %v1019, -inf
      %1075 = vmax.xlane.f32.xlu0 %v1074
      %v1076 = vpop.xlane.xlu0 %1075
      %v1077 = vsel %vm595, %v1069, -inf
      %1078 = vmax.xlane.f32.xlu0 %v1077
      %v1079 = vpop.xlane.xlu0 %1078
      %v1080 = vsub.f32 %v1019, %v1076
      %v1081 = vsub.f32 %v1069, %v1079
      %v1082 = vmul.f32 %v1080, 1.442695
      %v1083 = vpow.pop %v1082
      %v1084 = vmul.f32 %v1081, 1.442695
      %v1085 = vpow.pop %v1084
      %v1086 = vsel %vm595, %v1083, 0.0
      %1087 = vadd.xlane.f32.xlu0 %v1086
      %v1088 = vpop.xlane.xlu0 %1087
      %v1089 = vsel %vm595, %v1085, 0.0
      %1090 = vadd.xlane.f32.xlu0 %v1089
      %v1091 = vpop.xlane.xlu0 %1090
      %v1092 = vrcp.pop %v1088
      %v1093 = vrcp.pop %v1091
      %v1094 = vmul.f32 %v1083, %v1092
      %v1095 = vmul.f32 %v1085, %v1093
      %v1096 = vpack.c.bf16 %v1094, %v1094
      %v1097 = vpack.c.bf16 %v1095, %v1095
      %1099 = vrot.lane.b32.xlu0 %v757, 112
      %v1100 = vpop.permute.xlu0 %1099
      %v1102 = vsel %vm595, %v1096, 0
      %v1105 = vsel %vm599, %v1100, 0
      %1107 = vmatprep.subr.bf16.mxu0 0
      %1108 = vmatpush1.bf16.msra.mxu0 %v1105
      %1109 = vmatprep.subr.bf16.mxu0 0
      %1110 = vmatpush1.bf16.msra.mxu0 0
      %1111 = vmatprep.subr.bf16.mxu0 0
      %1112 = vmatpush1.bf16.msra.mxu0 0
      %1113 = vmatprep.subr.bf16.mxu0 0
      %1114 = vmatpush1.bf16.msra.mxu0 0
      %1115 = vmatprep.subr.bf16.mxu0 0
      %1116 = vmatpush1.bf16.msra.mxu0 0
      %1117 = vmatprep.subr.bf16.mxu0 0
      %1118 = vmatpush1.bf16.msra.mxu0 0
      %1119 = vmatprep.subr.bf16.mxu0 0
      %1120 = vmatpush1.bf16.msra.mxu0 0
      %1121 = vmatprep.subr.bf16.mxu0 0
      %1122 = vmatpush1.bf16.msra.mxu0 0
      %1123 = vmatprep.subr.bf16.mxu0 0
      %1124 = vmatpush1.bf16.msra.mxu0 0
      %1125 = vmatprep.subr.bf16.mxu0 0
      %1126 = vmatpush1.bf16.msra.mxu0 0
      %1127 = vmatprep.subr.bf16.mxu0 0
      %1128 = vmatpush1.bf16.msra.mxu0 0
      %1129 = vmatprep.subr.bf16.mxu0 0
      %1130 = vmatpush1.bf16.msra.mxu0 0
      %1131 = vmatprep.subr.bf16.mxu0 0
      %1132 = vmatpush1.bf16.msra.mxu0 0
      %1133 = vmatprep.subr.bf16.mxu0 0
      %1134 = vmatpush1.bf16.msra.mxu0 0
      %1135 = vmatprep.subr.bf16.mxu0 0
      %1136 = vmatpush1.bf16.msra.mxu0 0
      %1137 = vmatprep.subr.bf16.mxu0 0
      %1138 = vmatpush1.bf16.msra.mxu0 0
      %1139 = vmatprep.mubr.bf16.mxu0 0
      %1140 = vmatmul.mubr.bf16.gmra.mrb[0].mxu0 %v1102
      %v1141 = vpop.f32.mrb[0].mxu0
      %v1142 = vadd.f32 0.0, %v1141
      %v1143 = vpop.f32.mrb[0].mxu0
      %v1144 = vpop.f32.mrb[0].mxu0
      %v1145 = vpop.f32.mrb[0].mxu0
      %1146 = vdwg.mxu0
      %1148 = vrot.lane.b32.xlu0 %v758, 112
      %v1149 = vpop.permute.xlu0 %1148
      %v1151 = vsel %vm595, %v1097, 0
      %v1154 = vsel %vm599, %v1149, 0
      %1156 = vmatprep.subr.bf16.mxu0 0
      %1157 = vmatpush1.bf16.msra.mxu0 %v1154
      %1158 = vmatprep.subr.bf16.mxu0 0
      %1159 = vmatpush1.bf16.msra.mxu0 0
      %1160 = vmatprep.subr.bf16.mxu0 0
      %1161 = vmatpush1.bf16.msra.mxu0 0
      %1162 = vmatprep.subr.bf16.mxu0 0
      %1163 = vmatpush1.bf16.msra.mxu0 0
      %1164 = vmatprep.subr.bf16.mxu0 0
      %1165 = vmatpush1.bf16.msra.mxu0 0
      %1166 = vmatprep.subr.bf16.mxu0 0
      %1167 = vmatpush1.bf16.msra.mxu0 0
      %1168 = vmatprep.subr.bf16.mxu0 0
      %1169 = vmatpush1.bf16.msra.mxu0 0
      %1170 = vmatprep.subr.bf16.mxu0 0
      %1171 = vmatpush1.bf16.msra.mxu0 0
      %1172 = vmatprep.subr.bf16.mxu0 0
      %1173 = vmatpush1.bf16.msra.mxu0 0
      %1174 = vmatprep.subr.bf16.mxu0 0
      %1175 = vmatpush1.bf16.msra.mxu0 0
      %1176 = vmatprep.subr.bf16.mxu0 0
      %1177 = vmatpush1.bf16.msra.mxu0 0
      %1178 = vmatprep.subr.bf16.mxu0 0
      %1179 = vmatpush1.bf16.msra.mxu0 0
      %1180 = vmatprep.subr.bf16.mxu0 0
      %1181 = vmatpush1.bf16.msra.mxu0 0
      %1182 = vmatprep.subr.bf16.mxu0 0
      %1183 = vmatpush1.bf16.msra.mxu0 0
      %1184 = vmatprep.subr.bf16.mxu0 0
      %1185 = vmatpush1.bf16.msra.mxu0 0
      %1186 = vmatprep.subr.bf16.mxu0 0
      %1187 = vmatpush1.bf16.msra.mxu0 0
      %1188 = vmatprep.mubr.bf16.mxu0 0
      %1189 = vmatmul.mubr.bf16.gmra.mrb[0].mxu0 %v1151
      %v1190 = vpop.f32.mrb[0].mxu0
      %v1191 = vadd.f32 0.0, %v1190
      %v1192 = vpop.f32.mrb[0].mxu0
      %v1193 = vpop.f32.mrb[0].mxu0
      %v1194 = vpop.f32.mrb[0].mxu0
      %1195 = vdwg.mxu0
      %1196 = vrot.lane.b32.xlu0 %v755, 96
      %v1197 = vpop.permute.xlu0 %1196
      %1198 = vrot.lane.b32.xlu0 %v755, 32
      %v1199 = vpop.permute.xlu0 %1198
      %v1201 = vsel %vm762, %v1197, 0
      %v1204 = vsel %vm762, %v1199, 0
      %1206 = vmatprep.subr.bf16.mxu0 0
      %1207 = vmatpush1.bf16.xpose.msra.mxu0 %v1204
      %1208 = vmatprep.subr.bf16.mxu0 0
      %1209 = vmatpush1.bf16.xpose.msra.mxu0 0
      %1210 = vmatprep.subr.bf16.mxu0 0
      %1211 = vmatpush1.bf16.xpose.msra.mxu0 0
      %1212 = vmatprep.subr.bf16.mxu0 0
      %1213 = vmatpush1.bf16.xpose.msra.mxu0 0
      %1214 = vmatprep.subr.bf16.mxu0 0
      %1215 = vmatpush1.bf16.xpose.msra.mxu0 0
      %1216 = vmatprep.subr.bf16.mxu0 0
      %1217 = vmatpush1.bf16.xpose.msra.mxu0 0
      %1218 = vmatprep.subr.bf16.mxu0 0
      %1219 = vmatpush1.bf16.xpose.msra.mxu0 0
      %1220 = vmatprep.subr.bf16.mxu0 0
      %1221 = vmatpush1.bf16.xpose.msra.mxu0 0
      %1222 = vmatprep.subr.bf16.mxu0 0
      %1223 = vmatpush1.bf16.xpose.msra.mxu0 0
      %1224 = vmatprep.subr.bf16.mxu0 0
      %1225 = vmatpush1.bf16.xpose.msra.mxu0 0
      %1226 = vmatprep.subr.bf16.mxu0 0
      %1227 = vmatpush1.bf16.xpose.msra.mxu0 0
      %1228 = vmatprep.subr.bf16.mxu0 0
      %1229 = vmatpush1.bf16.xpose.msra.mxu0 0
      %1230 = vmatprep.subr.bf16.mxu0 0
      %1231 = vmatpush1.bf16.xpose.msra.mxu0 0
      %1232 = vmatprep.subr.bf16.mxu0 0
      %1233 = vmatpush1.bf16.xpose.msra.mxu0 0
      %1234 = vmatprep.subr.bf16.mxu0 0
      %1235 = vmatpush1.bf16.xpose.msra.mxu0 0
      %1236 = vmatprep.subr.bf16.mxu0 0
      %1237 = vmatpush1.bf16.xpose.msra.mxu0 0
      %1238 = vmatprep.mubr.bf16.mxu0 0
      %1239 = vmatmul.mubr.bf16.gmra.mrb[0].mxu0 %v1201
      %v1240 = vpop.f32.mrb[0].mxu0
      %v1241 = vadd.f32 0.0, %v1240
      %v1242 = vpop.f32.mrb[0].mxu0
      %v1243 = vpop.f32.mrb[0].mxu0
      %v1244 = vpop.f32.mrb[0].mxu0
      %1245 = vdwg.mxu0
      %1246 = vrot.lane.b32.xlu0 %v756, 96
      %v1247 = vpop.permute.xlu0 %1246
      %1248 = vrot.lane.b32.xlu0 %v756, 32
      %v1249 = vpop.permute.xlu0 %1248
      %v1251 = vsel %vm762, %v1247, 0
      %v1254 = vsel %vm762, %v1249, 0
      %1256 = vmatprep.subr.bf16.mxu0 0
      %1257 = vmatpush1.bf16.xpose.msra.mxu0 %v1254
      %1258 = vmatprep.subr.bf16.mxu0 0
      %1259 = vmatpush1.bf16.xpose.msra.mxu0 0
      %1260 = vmatprep.subr.bf16.mxu0 0
      %1261 = vmatpush1.bf16.xpose.msra.mxu0 0
      %1262 = vmatprep.subr.bf16.mxu0 0
      %1263 = vmatpush1.bf16.xpose.msra.mxu0 0
      %1264 = vmatprep.subr.bf16.mxu0 0
      %1265 = vmatpush1.bf16.xpose.msra.mxu0 0
      %1266 = vmatprep.subr.bf16.mxu0 0
      %1267 = vmatpush1.bf16.xpose.msra.mxu0 0
      %1268 = vmatprep.subr.bf16.mxu0 0
      %1269 = vmatpush1.bf16.xpose.msra.mxu0 0
      %1270 = vmatprep.subr.bf16.mxu0 0
      %1271 = vmatpush1.bf16.xpose.msra.mxu0 0
      %1272 = vmatprep.subr.bf16.mxu0 0
      %1273 = vmatpush1.bf16.xpose.msra.mxu0 0
      %1274 = vmatprep.subr.bf16.mxu0 0
      %1275 = vmatpush1.bf16.xpose.msra.mxu0 0
      %1276 = vmatprep.subr.bf16.mxu0 0
      %1277 = vmatpush1.bf16.xpose.msra.mxu0 0
      %1278 = vmatprep.subr.bf16.mxu0 0
      %1279 = vmatpush1.bf16.xpose.msra.mxu0 0
      %1280 = vmatprep.subr.bf16.mxu0 0
      %1281 = vmatpush1.bf16.xpose.msra.mxu0 0
      %1282 = vmatprep.subr.bf16.mxu0 0
      %1283 = vmatpush1.bf16.xpose.msra.mxu0 0
      %1284 = vmatprep.subr.bf16.mxu0 0
      %1285 = vmatpush1.bf16.xpose.msra.mxu0 0
      %1286 = vmatprep.subr.bf16.mxu0 0
      %1287 = vmatpush1.bf16.xpose.msra.mxu0 0
      %1288 = vmatprep.mubr.bf16.mxu0 0
      %1289 = vmatmul.mubr.bf16.gmra.mrb[0].mxu0 %v1251
      %v1290 = vpop.f32.mrb[0].mxu0
      %v1291 = vadd.f32 0.0, %v1290
      %v1292 = vpop.f32.mrb[0].mxu0
      %v1293 = vpop.f32.mrb[0].mxu0
      %v1294 = vpop.f32.mrb[0].mxu0
      %1295 = vdwg.mxu0
      %v1296 = vsel %vm595, %v1241, -inf
      %1297 = vmax.xlane.f32.xlu0 %v1296
      %v1298 = vpop.xlane.xlu0 %1297
      %v1299 = vsel %vm595, %v1291, -inf
      %1300 = vmax.xlane.f32.xlu0 %v1299
      %v1301 = vpop.xlane.xlu0 %1300
      %v1302 = vsub.f32 %v1241, %v1298
      %v1303 = vsub.f32 %v1291, %v1301
      %v1304 = vmul.f32 %v1302, 1.442695
      %v1305 = vpow.pop %v1304
      %v1306 = vmul.f32 %v1303, 1.442695
      %v1307 = vpow.pop %v1306
      %v1308 = vsel %vm595, %v1305, 0.0
      %1309 = vadd.xlane.f32.xlu0 %v1308
      %v1310 = vpop.xlane.xlu0 %1309
      %v1311 = vsel %vm595, %v1307, 0.0
      %1312 = vadd.xlane.f32.xlu0 %v1311
      %v1313 = vpop.xlane.xlu0 %1312
      %v1314 = vrcp.pop %v1310
      %v1315 = vrcp.pop %v1313
      %v1316 = vmul.f32 %v1305, %v1314
      %v1317 = vmul.f32 %v1307, %v1315
      %v1318 = vpack.c.bf16 %v1316, %v1316
      %v1319 = vpack.c.bf16 %v1317, %v1317
      %1320 = vrot.lane.b32.xlu0 %v757, 96
      %v1321 = vpop.permute.xlu0 %1320
      %v1323 = vsel %vm595, %v1318, 0
      %v1326 = vsel %vm599, %v1321, 0
      %1328 = vmatprep.subr.bf16.mxu0 0
      %1329 = vmatpush1.bf16.msra.mxu0 %v1326
      %1330 = vmatprep.subr.bf16.mxu0 0
      %1331 = vmatpush1.bf16.msra.mxu0 0
      %1332 = vmatprep.subr.bf16.mxu0 0
      %1333 = vmatpush1.bf16.msra.mxu0 0
      %1334 = vmatprep.subr.bf16.mxu0 0
      %1335 = vmatpush1.bf16.msra.mxu0 0
      %1336 = vmatprep.subr.bf16.mxu0 0
      %1337 = vmatpush1.bf16.msra.mxu0 0
      %1338 = vmatprep.subr.bf16.mxu0 0
      %1339 = vmatpush1.bf16.msra.mxu0 0
      %1340 = vmatprep.subr.bf16.mxu0 0
      %1341 = vmatpush1.bf16.msra.mxu0 0
      %1342 = vmatprep.subr.bf16.mxu0 0
      %1343 = vmatpush1.bf16.msra.mxu0 0
      %1344 = vmatprep.subr.bf16.mxu0 0
      %1345 = vmatpush1.bf16.msra.mxu0 0
      %1346 = vmatprep.subr.bf16.mxu0 0
      %1347 = vmatpush1.bf16.msra.mxu0 0
      %1348 = vmatprep.subr.bf16.mxu0 0
      %1349 = vmatpush1.bf16.msra.mxu0 0
      %1350 = vmatprep.subr.bf16.mxu0 0
      %1351 = vmatpush1.bf16.msra.mxu0 0
      %1352 = vmatprep.subr.bf16.mxu0 0
      %1353 = vmatpush1.bf16.msra.mxu0 0
      %1354 = vmatprep.subr.bf16.mxu0 0
      %1355 = vmatpush1.bf16.msra.mxu0 0
      %1356 = vmatprep.subr.bf16.mxu0 0
      %1357 = vmatpush1.bf16.msra.mxu0 0
      %1358 = vmatprep.subr.bf16.mxu0 0
      %1359 = vmatpush1.bf16.msra.mxu0 0
      %1360 = vmatprep.mubr.bf16.mxu0 0
      %1361 = vmatmul.mubr.bf16.gmra.mrb[0].mxu0 %v1323
      %v1362 = vpop.f32.mrb[0].mxu0
      %v1363 = vadd.f32 0.0, %v1362
      %v1364 = vpop.f32.mrb[0].mxu0
      %v1365 = vpop.f32.mrb[0].mxu0
      %v1366 = vpop.f32.mrb[0].mxu0
      %1367 = vdwg.mxu0
      %1368 = vrot.lane.b32.xlu0 %v758, 96
      %v1369 = vpop.permute.xlu0 %1368
      %v1371 = vsel %vm595, %v1319, 0
      %v1374 = vsel %vm599, %v1369, 0
      %1376 = vmatprep.subr.bf16.mxu0 0
      %1377 = vmatpush1.bf16.msra.mxu0 %v1374
      %1378 = vmatprep.subr.bf16.mxu0 0
      %1379 = vmatpush1.bf16.msra.mxu0 0
      %1380 = vmatprep.subr.bf16.mxu0 0
      %1381 = vmatpush1.bf16.msra.mxu0 0
      %1382 = vmatprep.subr.bf16.mxu0 0
      %1383 = vmatpush1.bf16.msra.mxu0 0
      %1384 = vmatprep.subr.bf16.mxu0 0
      %1385 = vmatpush1.bf16.msra.mxu0 0
      %1386 = vmatprep.subr.bf16.mxu0 0
      %1387 = vmatpush1.bf16.msra.mxu0 0
      %1388 = vmatprep.subr.bf16.mxu0 0
      %1389 = vmatpush1.bf16.msra.mxu0 0
      %1390 = vmatprep.subr.bf16.mxu0 0
      %1391 = vmatpush1.bf16.msra.mxu0 0
      %1392 = vmatprep.subr.bf16.mxu0 0
      %1393 = vmatpush1.bf16.msra.mxu0 0
      %1394 = vmatprep.subr.bf16.mxu0 0
      %1395 = vmatpush1.bf16.msra.mxu0 0
      %1396 = vmatprep.subr.bf16.mxu0 0
      %1397 = vmatpush1.bf16.msra.mxu0 0
      %1398 = vmatprep.subr.bf16.mxu0 0
      %1399 = vmatpush1.bf16.msra.mxu0 0
      %1400 = vmatprep.subr.bf16.mxu0 0
      %1401 = vmatpush1.bf16.msra.mxu0 0
      %1402 = vmatprep.subr.bf16.mxu0 0
      %1403 = vmatpush1.bf16.msra.mxu0 0
      %1404 = vmatprep.subr.bf16.mxu0 0
      %1405 = vmatpush1.bf16.msra.mxu0 0
      %1406 = vmatprep.subr.bf16.mxu0 0
      %1407 = vmatpush1.bf16.msra.mxu0 0
      %1408 = vmatprep.mubr.bf16.mxu0 0
      %1409 = vmatmul.mubr.bf16.gmra.mrb[0].mxu0 %v1371
      %v1410 = vpop.f32.mrb[0].mxu0
      %v1411 = vadd.f32 0.0, %v1410
      %v1412 = vpop.f32.mrb[0].mxu0
      %v1413 = vpop.f32.mrb[0].mxu0
      %v1414 = vpop.f32.mrb[0].mxu0
      %1415 = vdwg.mxu0
      %1416 = vrot.lane.b32.xlu0 %v755, 80
      %v1417 = vpop.permute.xlu0 %1416
      %1418 = vrot.lane.b32.xlu0 %v755, 16
      %v1419 = vpop.permute.xlu0 %1418
      %v1421 = vsel %vm762, %v1417, 0
      %v1424 = vsel %vm762, %v1419, 0
      %1426 = vmatprep.subr.bf16.mxu0 0
      %1427 = vmatpush1.bf16.xpose.msra.mxu0 %v1424
      %1428 = vmatprep.subr.bf16.mxu0 0
      %1429 = vmatpush1.bf16.xpose.msra.mxu0 0
      %1430 = vmatprep.subr.bf16.mxu0 0
      %1431 = vmatpush1.bf16.xpose.msra.mxu0 0
      %1432 = vmatprep.subr.bf16.mxu0 0
      %1433 = vmatpush1.bf16.xpose.msra.mxu0 0
      %1434 = vmatprep.subr.bf16.mxu0 0
      %1435 = vmatpush1.bf16.xpose.msra.mxu0 0
      %1436 = vmatprep.subr.bf16.mxu0 0
      %1437 = vmatpush1.bf16.xpose.msra.mxu0 0
      %1438 = vmatprep.subr.bf16.mxu0 0
      %1439 = vmatpush1.bf16.xpose.msra.mxu0 0
      %1440 = vmatprep.subr.bf16.mxu0 0
      %1441 = vmatpush1.bf16.xpose.msra.mxu0 0
      %1442 = vmatprep.subr.bf16.mxu0 0
      %1443 = vmatpush1.bf16.xpose.msra.mxu0 0
      %1444 = vmatprep.subr.bf16.mxu0 0
      %1445 = vmatpush1.bf16.xpose.msra.mxu0 0
      %1446 = vmatprep.subr.bf16.mxu0 0
      %1447 = vmatpush1.bf16.xpose.msra.mxu0 0
      %1448 = vmatprep.subr.bf16.mxu0 0
      %1449 = vmatpush1.bf16.xpose.msra.mxu0 0
      %1450 = vmatprep.subr.bf16.mxu0 0
      %1451 = vmatpush1.bf16.xpose.msra.mxu0 0
      %1452 = vmatprep.subr.bf16.mxu0 0
      %1453 = vmatpush1.bf16.xpose.msra.mxu0 0
      %1454 = vmatprep.subr.bf16.mxu0 0
      %1455 = vmatpush1.bf16.xpose.msra.mxu0 0
      %1456 = vmatprep.subr.bf16.mxu0 0
      %1457 = vmatpush1.bf16.xpose.msra.mxu0 0
      %1458 = vmatprep.mubr.bf16.mxu0 0
      %1459 = vmatmul.mubr.bf16.gmra.mrb[0].mxu0 %v1421
      %v1460 = vpop.f32.mrb[0].mxu0
      %v1461 = vadd.f32 0.0, %v1460
      %v1462 = vpop.f32.mrb[0].mxu0
      %v1463 = vpop.f32.mrb[0].mxu0
      %v1464 = vpop.f32.mrb[0].mxu0
      %1465 = vdwg.mxu0
      %1466 = vrot.lane.b32.xlu0 %v756, 80
      %v1467 = vpop.permute.xlu0 %1466
      %1468 = vrot.lane.b32.xlu0 %v756, 16
      %v1469 = vpop.permute.xlu0 %1468
      %v1471 = vsel %vm762, %v1467, 0
      %v1474 = vsel %vm762, %v1469, 0
      %1476 = vmatprep.subr.bf16.mxu0 0
      %1477 = vmatpush1.bf16.xpose.msra.mxu0 %v1474
      %1478 = vmatprep.subr.bf16.mxu0 0
      %1479 = vmatpush1.bf16.xpose.msra.mxu0 0
      %1480 = vmatprep.subr.bf16.mxu0 0
      %1481 = vmatpush1.bf16.xpose.msra.mxu0 0
      %1482 = vmatprep.subr.bf16.mxu0 0
      %1483 = vmatpush1.bf16.xpose.msra.mxu0 0
      %1484 = vmatprep.subr.bf16.mxu0 0
      %1485 = vmatpush1.bf16.xpose.msra.mxu0 0
      %1486 = vmatprep.subr.bf16.mxu0 0
      %1487 = vmatpush1.bf16.xpose.msra.mxu0 0
      %1488 = vmatprep.subr.bf16.mxu0 0
      %1489 = vmatpush1.bf16.xpose.msra.mxu0 0
      %1490 = vmatprep.subr.bf16.mxu0 0
      %1491 = vmatpush1.bf16.xpose.msra.mxu0 0
      %1492 = vmatprep.subr.bf16.mxu0 0
      %1493 = vmatpush1.bf16.xpose.msra.mxu0 0
      %1494 = vmatprep.subr.bf16.mxu0 0
      %1495 = vmatpush1.bf16.xpose.msra.mxu0 0
      %1496 = vmatprep.subr.bf16.mxu0 0
      %1497 = vmatpush1.bf16.xpose.msra.mxu0 0
      %1498 = vmatprep.subr.bf16.mxu0 0
      %1499 = vmatpush1.bf16.xpose.msra.mxu0 0
      %1500 = vmatprep.subr.bf16.mxu0 0
      %1501 = vmatpush1.bf16.xpose.msra.mxu0 0
      %1502 = vmatprep.subr.bf16.mxu0 0
      %1503 = vmatpush1.bf16.xpose.msra.mxu0 0
      %1504 = vmatprep.subr.bf16.mxu0 0
      %1505 = vmatpush1.bf16.xpose.msra.mxu0 0
      %1506 = vmatprep.subr.bf16.mxu0 0
      %1507 = vmatpush1.bf16.xpose.msra.mxu0 0
      %1508 = vmatprep.mubr.bf16.mxu0 0
      %1509 = vmatmul.mubr.bf16.gmra.mrb[0].mxu0 %v1471
      %v1510 = vpop.f32.mrb[0].mxu0
      %v1511 = vadd.f32 0.0, %v1510
      %v1512 = vpop.f32.mrb[0].mxu0
      %v1513 = vpop.f32.mrb[0].mxu0
      %v1514 = vpop.f32.mrb[0].mxu0
      %1515 = vdwg.mxu0
      %v1516 = vsel %vm595, %v1461, -inf
      %1517 = vmax.xlane.f32.xlu0 %v1516
      %v1518 = vpop.xlane.xlu0 %1517
      %v1519 = vsel %vm595, %v1511, -inf
      %1520 = vmax.xlane.f32.xlu0 %v1519
      %v1521 = vpop.xlane.xlu0 %1520
      %v1522 = vsub.f32 %v1461, %v1518
      %v1523 = vsub.f32 %v1511, %v1521
      %v1524 = vmul.f32 %v1522, 1.442695
      %v1525 = vpow.pop %v1524
      %v1526 = vmul.f32 %v1523, 1.442695
      %v1527 = vpow.pop %v1526
      %v1528 = vsel %vm595, %v1525, 0.0
      %1529 = vadd.xlane.f32.xlu0 %v1528
      %v1530 = vpop.xlane.xlu0 %1529
      %v1531 = vsel %vm595, %v1527, 0.0
      %1532 = vadd.xlane.f32.xlu0 %v1531
      %v1533 = vpop.xlane.xlu0 %1532
      %v1534 = vrcp.pop %v1530
      %v1535 = vrcp.pop %v1533
      %v1536 = vmul.f32 %v1525, %v1534
      %v1537 = vmul.f32 %v1527, %v1535
      %v1538 = vpack.c.bf16 %v1536, %v1536
      %v1539 = vpack.c.bf16 %v1537, %v1537
      %1540 = vrot.lane.b32.xlu0 %v757, 80
      %v1541 = vpop.permute.xlu0 %1540
      %v1543 = vsel %vm595, %v1538, 0
      %v1546 = vsel %vm599, %v1541, 0
      %1548 = vmatprep.subr.bf16.mxu0 0
      %1549 = vmatpush1.bf16.msra.mxu0 %v1546
      %1550 = vmatprep.subr.bf16.mxu0 0
      %1551 = vmatpush1.bf16.msra.mxu0 0
      %1552 = vmatprep.subr.bf16.mxu0 0
      %1553 = vmatpush1.bf16.msra.mxu0 0
      %1554 = vmatprep.subr.bf16.mxu0 0
      %1555 = vmatpush1.bf16.msra.mxu0 0
      %1556 = vmatprep.subr.bf16.mxu0 0
      %1557 = vmatpush1.bf16.msra.mxu0 0
      %1558 = vmatprep.subr.bf16.mxu0 0
      %1559 = vmatpush1.bf16.msra.mxu0 0
      %1560 = vmatprep.subr.bf16.mxu0 0
      %1561 = vmatpush1.bf16.msra.mxu0 0
      %1562 = vmatprep.subr.bf16.mxu0 0
      %1563 = vmatpush1.bf16.msra.mxu0 0
      %1564 = vmatprep.subr.bf16.mxu0 0
      %1565 = vmatpush1.bf16.msra.mxu0 0
      %1566 = vmatprep.subr.bf16.mxu0 0
      %1567 = vmatpush1.bf16.msra.mxu0 0
      %1568 = vmatprep.subr.bf16.mxu0 0
      %1569 = vmatpush1.bf16.msra.mxu0 0
      %1570 = vmatprep.subr.bf16.mxu0 0
      %1571 = vmatpush1.bf16.msra.mxu0 0
      %1572 = vmatprep.subr.bf16.mxu0 0
      %1573 = vmatpush1.bf16.msra.mxu0 0
      %1574 = vmatprep.subr.bf16.mxu0 0
      %1575 = vmatpush1.bf16.msra.mxu0 0
      %1576 = vmatprep.subr.bf16.mxu0 0
      %1577 = vmatpush1.bf16.msra.mxu0 0
      %1578 = vmatprep.subr.bf16.mxu0 0
      %1579 = vmatpush1.bf16.msra.mxu0 0
      %1580 = vmatprep.mubr.bf16.mxu0 0
      %1581 = vmatmul.mubr.bf16.gmra.mrb[0].mxu0 %v1543
      %v1582 = vpop.f32.mrb[0].mxu0
      %v1583 = vadd.f32 0.0, %v1582
      %v1584 = vpop.f32.mrb[0].mxu0
      %v1585 = vpop.f32.mrb[0].mxu0
      %v1586 = vpop.f32.mrb[0].mxu0
      %1587 = vdwg.mxu0
      %1588 = vrot.lane.b32.xlu0 %v758, 80
      %v1589 = vpop.permute.xlu0 %1588
      %v1591 = vsel %vm595, %v1539, 0
      %v1594 = vsel %vm599, %v1589, 0
      %1596 = vmatprep.subr.bf16.mxu0 0
      %1597 = vmatpush1.bf16.msra.mxu0 %v1594
      %1598 = vmatprep.subr.bf16.mxu0 0
      %1599 = vmatpush1.bf16.msra.mxu0 0
      %1600 = vmatprep.subr.bf16.mxu0 0
      %1601 = vmatpush1.bf16.msra.mxu0 0
      %1602 = vmatprep.subr.bf16.mxu0 0
      %1603 = vmatpush1.bf16.msra.mxu0 0
      %1604 = vmatprep.subr.bf16.mxu0 0
      %1605 = vmatpush1.bf16.msra.mxu0 0
      %1606 = vmatprep.subr.bf16.mxu0 0
      %1607 = vmatpush1.bf16.msra.mxu0 0
      %1608 = vmatprep.subr.bf16.mxu0 0
      %1609 = vmatpush1.bf16.msra.mxu0 0
      %1610 = vmatprep.subr.bf16.mxu0 0
      %1611 = vmatpush1.bf16.msra.mxu0 0
      %1612 = vmatprep.subr.bf16.mxu0 0
      %1613 = vmatpush1.bf16.msra.mxu0 0
      %1614 = vmatprep.subr.bf16.mxu0 0
      %1615 = vmatpush1.bf16.msra.mxu0 0
      %1616 = vmatprep.subr.bf16.mxu0 0
      %1617 = vmatpush1.bf16.msra.mxu0 0
      %1618 = vmatprep.subr.bf16.mxu0 0
      %1619 = vmatpush1.bf16.msra.mxu0 0
      %1620 = vmatprep.subr.bf16.mxu0 0
      %1621 = vmatpush1.bf16.msra.mxu0 0
      %1622 = vmatprep.subr.bf16.mxu0 0
      %1623 = vmatpush1.bf16.msra.mxu0 0
      %1624 = vmatprep.subr.bf16.mxu0 0
      %1625 = vmatpush1.bf16.msra.mxu0 0
      %1626 = vmatprep.subr.bf16.mxu0 0
      %1627 = vmatpush1.bf16.msra.mxu0 0
      %1628 = vmatprep.mubr.bf16.mxu0 0
      %1629 = vmatmul.mubr.bf16.gmra.mrb[0].mxu0 %v1591
      %v1630 = vpop.f32.mrb[0].mxu0
      %v1631 = vadd.f32 0.0, %v1630
      %v1632 = vpop.f32.mrb[0].mxu0
      %v1633 = vpop.f32.mrb[0].mxu0
      %v1634 = vpop.f32.mrb[0].mxu0
      %1635 = vdwg.mxu0
      %1638 = vrot.lane.b32.xlu0 %v1142, 16
      %v1639 = vpop.permute.xlu0 %1638
      %1640 = vrot.lane.b32.xlu0 %v1191, 16
      %v1641 = vpop.permute.xlu0 %1640
      %1646 = vrot.lane.b32.xlu0 %v1363, 32
      %v1647 = vpop.permute.xlu0 %1646
      %1648 = vrot.lane.b32.xlu0 %v1411, 32
      %v1649 = vpop.permute.xlu0 %1648
      %1654 = vrot.lane.b32.xlu0 %v1583, 48
      %v1655 = vpop.permute.xlu0 %1654
      %1656 = vrot.lane.b32.xlu0 %v1631, 48
      %v1657 = vpop.permute.xlu0 %1656
      %v1660 = vsel %vm762, %v923, %v1639
      %v1661 = vsel %vm762, %v969, %v1641
      %vm1662 = vcmask 261120
      %v1663 = vsel %vm1662, %v1660, %v1647
      %v1664 = vsel %vm1662, %v1661, %v1649
      %vm1665 = vcmask 392192
      %v1666 = vsel %vm1665, %v1663, %v1655
      %v1667 = vsel %vm1665, %v1664, %v1657
      %v1668 = vpack.c.bf16 %v1667, %v1666
      %v1669 = vld [vmem:[%s6] sm:$0xf]
      %v1670 = vld [vmem:[%s6 + $0x4] sm:$0xf]
      %v1671 = vld [vmem:[%s6 + $0x8] sm:$0xf]
      %v1672 = vld [vmem:[%s6 + $0xc] sm:$0xf]
      %v1673 = vld [vmem:[%s6 + $0x10] sm:$0xf]
      %v1674 = vld [vmem:[%s6 + $0x14] sm:$0xf]
      %v1675 = vld [vmem:[%s6 + $0x18] sm:$0xf]
      %v1676 = vld [vmem:[%s6 + $0x1c] sm:$0xf]
      %v1677 = vld [vmem:[%s7] sm:$0x1]
      %v1679 = vlaneseq
      %v1680 = vshrl.u32 %v1679, 7
      %v1681 = vsub.s32 0, %v1680
      %v1682 = vrot.slane %v1677, %v1681
      %v1692 = vunpack.c.l.b16 %v1669
      %v1693 = vunpack.c.l.b16 %v1670
      %v1694 = vunpack.c.l.b16 %v1671
      %v1695 = vunpack.c.l.b16 %v1672
      %v1696 = vunpack.c.l.b16 %v1673
      %v1697 = vunpack.c.l.b16 %v1674
      %v1698 = vunpack.c.l.b16 %v1675
      %v1699 = vunpack.c.l.b16 %v1676
      %v1700 = vpack.c.b16 %v1693, %v1692
      %v1701 = vpack.c.b16 %v1695, %v1694
      %v1702 = vpack.c.b16 %v1697, %v1696
      %v1703 = vpack.c.b16 %v1699, %v1698
      %v1709 = vsel %vm708, %v1668, 0
      %1711 = vmatprep.subr.bf16.mxu0 0
      %1712 = vmatpush1.bf16.msra.mxu0 %v1700
      %1713 = vmatprep.subr.bf16.mxu0 0
      %1714 = vmatpush1.bf16.msra.mxu0 %v1701
      %1715 = vmatprep.subr.bf16.mxu0 0
      %1716 = vmatpush1.bf16.msra.mxu0 %v1702
      %1717 = vmatprep.subr.bf16.mxu0 0
      %1718 = vmatpush1.bf16.msra.mxu0 %v1703
      %1719 = vmatprep.subr.bf16.mxu0 0
      %1720 = vmatpush1.bf16.msra.mxu0 0
      %1721 = vmatprep.subr.bf16.mxu0 0
      %1722 = vmatpush1.bf16.msra.mxu0 0
      %1723 = vmatprep.subr.bf16.mxu0 0
      %1724 = vmatpush1.bf16.msra.mxu0 0
      %1725 = vmatprep.subr.bf16.mxu0 0
      %1726 = vmatpush1.bf16.msra.mxu0 0
      %1727 = vmatprep.subr.bf16.mxu0 0
      %1728 = vmatpush1.bf16.msra.mxu0 0
      %1729 = vmatprep.subr.bf16.mxu0 0
      %1730 = vmatpush1.bf16.msra.mxu0 0
      %1731 = vmatprep.subr.bf16.mxu0 0
      %1732 = vmatpush1.bf16.msra.mxu0 0
      %1733 = vmatprep.subr.bf16.mxu0 0
      %1734 = vmatpush1.bf16.msra.mxu0 0
      %1735 = vmatprep.subr.bf16.mxu0 0
      %1736 = vmatpush1.bf16.msra.mxu0 0
      %1737 = vmatprep.subr.bf16.mxu0 0
      %1738 = vmatpush1.bf16.msra.mxu0 0
      %1739 = vmatprep.subr.bf16.mxu0 0
      %1740 = vmatpush1.bf16.msra.mxu0 0
      %1741 = vmatprep.subr.bf16.mxu0 0
      %1742 = vmatpush1.bf16.msra.mxu0 0
      %1743 = vmatprep.mubr.bf16.mxu0 0
      %1744 = vmatmul.mubr.bf16.gmra.mrb[0].mxu0 %v1709
      %v1745 = vpop.f32.mrb[0].mxu0
      %v1746 = vadd.f32 %v1682, %v1745
      %v1747 = vpop.f32.mrb[0].mxu0
      %v1748 = vpop.f32.mrb[0].mxu0
      %v1749 = vadd.f32 %v1682, %v1748
      %v1750 = vpop.f32.mrb[0].mxu0
      %1751 = vdwg.mxu0
      %v1752 = vadd.f32 %v645, %v1746
      %v1753 = vadd.f32 %v646, %v1749
      %v1754 = vld [vmem:[%s8] sm:$0x1]
      %v1755 = vld [vmem:[%s9] sm:$0x1]
      %v1756 = vsel %vm708, %v1752, 0.0
      %1757 = vadd.xlane.f32.xlu0 %v1756
      %v1758 = vpop.xlane.xlu0 %1757
      %v1759 = vsel %vm708, %v1753, 0.0
      %1760 = vadd.xlane.f32.xlu0 %v1759
      %v1761 = vpop.xlane.xlu0 %1760
      %v1762 = vrcp.pop 64.0
      %v1763 = vmul.f32 %v1758, %v1762
      %v1764 = vmul.f32 %v1761, %v1762
      %v1765 = vmul.f32 %v1752, %v1752
      %v1766 = vmul.f32 %v1753, %v1753
      %v1767 = vsel %vm708, %v1765, 0.0
      %1768 = vadd.xlane.f32.xlu0 %v1767
      %v1769 = vpop.xlane.xlu0 %1768
      %v1770 = vsel %vm708, %v1766, 0.0
      %1771 = vadd.xlane.f32.xlu0 %v1770
      %v1772 = vpop.xlane.xlu0 %1771
      %v1773 = vmul.f32 %v1769, %v1762
      %v1774 = vmul.f32 %v1772, %v1762
      %v1775 = vmul.f32 %v1763, %v1763
      %v1776 = vmul.f32 %v1764, %v1764
      %v1777 = vsub.f32 %v1773, %v1775
      %v1778 = vsub.f32 %v1774, %v1776
      %v1779 = vsub.f32 %v1752, %v1763
      %v1780 = vsub.f32 %v1753, %v1764
      %v1781 = vadd.f32 %v1777, 1e-05
      %v1782 = vadd.f32 %v1778, 1e-05
      %v1783 = vrsqrt.pop %v1781
      %v1784 = vrsqrt.pop %v1782
      %v1785 = vmul.f32 %v1779, %v1783
      %v1786 = vmul.f32 %v1780, %v1784
      %v1788 = vlaneseq
      %v1789 = vshrl.u32 %v1788, 7
      %v1790 = vsub.s32 0, %v1789
      %v1791 = vrot.slane %v1754, %v1790
      %v1793 = vmul.f32 %v1785, %v1791
      %v1794 = vmul.f32 %v1786, %v1791
      %v1796 = vlaneseq
      %v1797 = vshrl.u32 %v1796, 7
      %v1798 = vsub.s32 0, %v1797
      %v1799 = vrot.slane %v1755, %v1798
      %v1801 = vadd.f32 %v1793, %v1799
      %v1802 = vadd.f32 %v1794, %v1799
      %v1803 = vpack.c.bf16 %v1802, %v1801
      %v1804 = vld [vmem:[%s12] sm:$0xff]
      %v1805 = vld [vmem:[%s12 + $0x8] sm:$0xff]
      %v1806 = vld [vmem:[%s12 + $0x10] sm:$0xff]
      %v1807 = vld [vmem:[%s12 + $0x18] sm:$0xff]
      %v1808 = vld [vmem:[%s12 + $0x20] sm:$0xff]
      %v1809 = vld [vmem:[%s12 + $0x28] sm:$0xff]
      %v1810 = vld [vmem:[%s12 + $0x30] sm:$0xff]
      %v1811 = vld [vmem:[%s12 + $0x38] sm:$0xff]
      %v1812 = vld [vmem:[%s13] sm:$0x3]
      %v1814 = vlaneseq
      %v1815 = vshrl.u32 %v1814, 7
      %v1816 = vsub.s32 0, %v1815
      %v1817 = vrot.slane %v1812, %v1816
      %v1818 = vlaneseq
      %v1819 = vshrl.u32 %v1818, 7
      %v1820 = vsub.s32 1, %v1819
      %v1821 = vrot.slane %v1812, %v1820
      %v1832 = vunpack.c.l.b16 %v1804
      %v1833 = vunpack.c.h.b16 %v1804
      %v1834 = vunpack.c.l.b16 %v1805
      %v1835 = vunpack.c.h.b16 %v1805
      %v1836 = vunpack.c.l.b16 %v1806
      %v1837 = vunpack.c.h.b16 %v1806
      %v1838 = vunpack.c.l.b16 %v1807
      %v1839 = vunpack.c.h.b16 %v1807
      %v1840 = vunpack.c.l.b16 %v1808
      %v1841 = vunpack.c.h.b16 %v1808
      %v1842 = vunpack.c.l.b16 %v1809
      %v1843 = vunpack.c.h.b16 %v1809
      %v1844 = vunpack.c.l.b16 %v1810
      %v1845 = vunpack.c.h.b16 %v1810
      %v1846 = vunpack.c.l.b16 %v1811
      %v1847 = vunpack.c.h.b16 %v1811
      %v1848 = vpack.c.b16 %v1834, %v1832
      %v1849 = vpack.c.b16 %v1835, %v1833
      %v1850 = vpack.c.b16 %v1838, %v1836
      %v1851 = vpack.c.b16 %v1839, %v1837
      %v1852 = vpack.c.b16 %v1842, %v1840
      %v1853 = vpack.c.b16 %v1843, %v1841
      %v1854 = vpack.c.b16 %v1846, %v1844
      %v1855 = vpack.c.b16 %v1847, %v1845
      %v1865 = vsel %vm708, %v1803, 0
      %1867 = vmatprep.subr.bf16.mxu0 %v1849
      %1868 = vmatpush1.bf16.msra.mxu0 %v1848
      %1869 = vmatprep.subr.bf16.mxu0 %v1851
      %1870 = vmatpush1.bf16.msra.mxu0 %v1850
      %1871 = vmatprep.subr.bf16.mxu0 %v1853
      %1872 = vmatpush1.bf16.msra.mxu0 %v1852
      %1873 = vmatprep.subr.bf16.mxu0 %v1855
      %1874 = vmatpush1.bf16.msra.mxu0 %v1854
      %1875 = vmatprep.subr.bf16.mxu0 0
      %1876 = vmatpush1.bf16.msra.mxu0 0
      %1877 = vmatprep.subr.bf16.mxu0 0
      %1878 = vmatpush1.bf16.msra.mxu0 0
      %1879 = vmatprep.subr.bf16.mxu0 0
      %1880 = vmatpush1.bf16.msra.mxu0 0
      %1881 = vmatprep.subr.bf16.mxu0 0
      %1882 = vmatpush1.bf16.msra.mxu0 0
      %1883 = vmatprep.subr.bf16.mxu0 0
      %1884 = vmatpush1.bf16.msra.mxu0 0
      %1885 = vmatprep.subr.bf16.mxu0 0
      %1886 = vmatpush1.bf16.msra.mxu0 0
      %1887 = vmatprep.subr.bf16.mxu0 0
      %1888 = vmatpush1.bf16.msra.mxu0 0
      %1889 = vmatprep.subr.bf16.mxu0 0
      %1890 = vmatpush1.bf16.msra.mxu0 0
      %1891 = vmatprep.subr.bf16.mxu0 0
      %1892 = vmatpush1.bf16.msra.mxu0 0
      %1893 = vmatprep.subr.bf16.mxu0 0
      %1894 = vmatpush1.bf16.msra.mxu0 0
      %1895 = vmatprep.subr.bf16.mxu0 0
      %1896 = vmatpush1.bf16.msra.mxu0 0
      %1897 = vmatprep.subr.bf16.mxu0 0
      %1898 = vmatpush1.bf16.msra.mxu0 0
      %1899 = vmatprep.mubr.bf16.mxu0 0
      %1900 = vmatmul.mubr.bf16.gmra.mrb[0].mxu0 %v1865
      %v1901 = vpop.f32.mrb[0].mxu0
      %v1902 = vadd.f32 %v1817, %v1901
      %v1903 = vpop.f32.mrb[0].mxu0
      %v1904 = vadd.f32 %v1821, %v1903
      %v1905 = vpop.f32.mrb[0].mxu0
      %v1906 = vadd.f32 %v1817, %v1905
      %v1907 = vpop.f32.mrb[0].mxu0
      %v1908 = vadd.f32 %v1821, %v1907
      %1909 = vdwg.mxu0
      %v1910 = vmax.f32 %v1902, 0.0
      %v1911 = vmax.f32 %v1904, 0.0
      %v1912 = vmax.f32 %v1906, 0.0
      %v1913 = vmax.f32 %v1908, 0.0
      %v1914 = vpack.c.bf16 %v1912, %v1910
      %v1915 = vpack.c.bf16 %v1913, %v1911
      %v1916 = vld [vmem:[%s14] sm:$0xf]
      %v1917 = vld [vmem:[%s14 + $0x4] sm:$0xf]
      %v1918 = vld [vmem:[%s14 + $0x8] sm:$0xf]
      %v1919 = vld [vmem:[%s14 + $0xc] sm:$0xf]
      %v1920 = vld [vmem:[%s14 + $0x10] sm:$0xf]
      %v1921 = vld [vmem:[%s14 + $0x14] sm:$0xf]
      %v1922 = vld [vmem:[%s14 + $0x18] sm:$0xf]
      %v1923 = vld [vmem:[%s14 + $0x1c] sm:$0xf]
      %v1924 = vld [vmem:[%s14 + $0x20] sm:$0xf]
      %v1925 = vld [vmem:[%s14 + $0x24] sm:$0xf]
      %v1926 = vld [vmem:[%s14 + $0x28] sm:$0xf]
      %v1927 = vld [vmem:[%s14 + $0x2c] sm:$0xf]
      %v1928 = vld [vmem:[%s14 + $0x30] sm:$0xf]
      %v1929 = vld [vmem:[%s14 + $0x34] sm:$0xf]
      %v1930 = vld [vmem:[%s14 + $0x38] sm:$0xf]
      %v1931 = vld [vmem:[%s14 + $0x3c] sm:$0xf]
      %v1932 = vld [vmem:[%s14 + $0x40] sm:$0xf]
      %v1933 = vld [vmem:[%s14 + $0x44] sm:$0xf]
      %v1934 = vld [vmem:[%s14 + $0x48] sm:$0xf]
      %v1935 = vld [vmem:[%s14 + $0x4c] sm:$0xf]
      %v1936 = vld [vmem:[%s14 + $0x50] sm:$0xf]
      %v1937 = vld [vmem:[%s14 + $0x54] sm:$0xf]
      %v1938 = vld [vmem:[%s14 + $0x58] sm:$0xf]
      %v1939 = vld [vmem:[%s14 + $0x5c] sm:$0xf]
      %v1940 = vld [vmem:[%s14 + $0x60] sm:$0xf]
      %v1941 = vld [vmem:[%s14 + $0x64] sm:$0xf]
      %v1942 = vld [vmem:[%s14 + $0x68] sm:$0xf]
      %v1943 = vld [vmem:[%s14 + $0x6c] sm:$0xf]
      %v1944 = vld [vmem:[%s14 + $0x70] sm:$0xf]
      %v1945 = vld [vmem:[%s14 + $0x74] sm:$0xf]
      %v1946 = vld [vmem:[%s14 + $0x78] sm:$0xf]
      %v1947 = vld [vmem:[%s14 + $0x7c] sm:$0xf]
      %v1948 = vld [vmem:[%s15] sm:$0x1]
      %v1950 = vlaneseq
      %v1951 = vshrl.u32 %v1950, 7
      %v1952 = vsub.s32 0, %v1951
      %v1953 = vrot.slane %v1948, %v1952
      %v1987 = vunpack.c.l.b16 %v1916
      %v1988 = vunpack.c.l.b16 %v1917
      %v1989 = vunpack.c.l.b16 %v1918
      %v1990 = vunpack.c.l.b16 %v1919
      %v1991 = vunpack.c.l.b16 %v1920
      %v1992 = vunpack.c.l.b16 %v1921
      %v1993 = vunpack.c.l.b16 %v1922
      %v1994 = vunpack.c.l.b16 %v1923
      %v1995 = vunpack.c.l.b16 %v1924
      %v1996 = vunpack.c.l.b16 %v1925
      %v1997 = vunpack.c.l.b16 %v1926
      %v1998 = vunpack.c.l.b16 %v1927
      %v1999 = vunpack.c.l.b16 %v1928
      %v2000 = vunpack.c.l.b16 %v1929
      %v2001 = vunpack.c.l.b16 %v1930
      %v2002 = vunpack.c.l.b16 %v1931
      %v2003 = vunpack.c.l.b16 %v1932
      %v2004 = vunpack.c.l.b16 %v1933
      %v2005 = vunpack.c.l.b16 %v1934
      %v2006 = vunpack.c.l.b16 %v1935
      %v2007 = vunpack.c.l.b16 %v1936
      %v2008 = vunpack.c.l.b16 %v1937
      %v2009 = vunpack.c.l.b16 %v1938
      %v2010 = vunpack.c.l.b16 %v1939
      %v2011 = vunpack.c.l.b16 %v1940
      %v2012 = vunpack.c.l.b16 %v1941
      %v2013 = vunpack.c.l.b16 %v1942
      %v2014 = vunpack.c.l.b16 %v1943
      %v2015 = vunpack.c.l.b16 %v1944
      %v2016 = vunpack.c.l.b16 %v1945
      %v2017 = vunpack.c.l.b16 %v1946
      %v2018 = vunpack.c.l.b16 %v1947
      %v2019 = vpack.c.b16 %v1988, %v1987
      %v2020 = vpack.c.b16 %v1990, %v1989
      %v2021 = vpack.c.b16 %v1992, %v1991
      %v2022 = vpack.c.b16 %v1994, %v1993
      %v2023 = vpack.c.b16 %v1996, %v1995
      %v2024 = vpack.c.b16 %v1998, %v1997
      %v2025 = vpack.c.b16 %v2000, %v1999
      %v2026 = vpack.c.b16 %v2002, %v2001
      %v2027 = vpack.c.b16 %v2004, %v2003
      %v2028 = vpack.c.b16 %v2006, %v2005
      %v2029 = vpack.c.b16 %v2008, %v2007
      %v2030 = vpack.c.b16 %v2010, %v2009
      %v2031 = vpack.c.b16 %v2012, %v2011
      %v2032 = vpack.c.b16 %v2014, %v2013
      %v2033 = vpack.c.b16 %v2016, %v2015
      %v2034 = vpack.c.b16 %v2018, %v2017
      %2051 = vmatprep.subr.bf16.mxu0 0
      %2052 = vmatpush1.bf16.msra.mxu0 %v2019
      %2053 = vmatprep.subr.bf16.mxu0 0
      %2054 = vmatpush1.bf16.msra.mxu0 %v2020
      %2055 = vmatprep.subr.bf16.mxu0 0
      %2056 = vmatpush1.bf16.msra.mxu0 %v2021
      %2057 = vmatprep.subr.bf16.mxu0 0
      %2058 = vmatpush1.bf16.msra.mxu0 %v2022
      %2059 = vmatprep.subr.bf16.mxu0 0
      %2060 = vmatpush1.bf16.msra.mxu0 %v2023
      %2061 = vmatprep.subr.bf16.mxu0 0
      %2062 = vmatpush1.bf16.msra.mxu0 %v2024
      %2063 = vmatprep.subr.bf16.mxu0 0
      %2064 = vmatpush1.bf16.msra.mxu0 %v2025
      %2065 = vmatprep.subr.bf16.mxu0 0
      %2066 = vmatpush1.bf16.msra.mxu0 %v2026
      %2067 = vmatprep.subr.bf16.mxu0 0
      %2068 = vmatpush1.bf16.msra.mxu0 %v2027
      %2069 = vmatprep.subr.bf16.mxu0 0
      %2070 = vmatpush1.bf16.msra.mxu0 %v2028
      %2071 = vmatprep.subr.bf16.mxu0 0
      %2072 = vmatpush1.bf16.msra.mxu0 %v2029
      %2073 = vmatprep.subr.bf16.mxu0 0
      %2074 = vmatpush1.bf16.msra.mxu0 %v2030
      %2075 = vmatprep.subr.bf16.mxu0 0
      %2076 = vmatpush1.bf16.msra.mxu0 %v2031
      %2077 = vmatprep.subr.bf16.mxu0 0
      %2078 = vmatpush1.bf16.msra.mxu0 %v2032
      %2079 = vmatprep.subr.bf16.mxu0 0
      %2080 = vmatpush1.bf16.msra.mxu0 %v2033
      %2081 = vmatprep.subr.bf16.mxu0 0
      %2082 = vmatpush1.bf16.msra.mxu0 %v2034
      %2083 = vmatprep.mubr.bf16.mxu0 %v1915
      %2084 = vmatmul.mubr.bf16.gmra.mrb[0].mxu0 %v1914
      %v2085 = vpop.f32.mrb[0].mxu0
      %v2086 = vadd.f32 %v1953, %v2085
      %v2087 = vpop.f32.mrb[0].mxu0
      %v2088 = vpop.f32.mrb[0].mxu0
      %v2089 = vadd.f32 %v1953, %v2088
      %v2090 = vpop.f32.mrb[0].mxu0
      %2091 = vdwg.mxu0
      %v2092 = vadd.f32 %v1801, %v2086
      %v2093 = vadd.f32 %v1802, %v2089
      %v2094 = vld [vmem:[%s10] sm:$0x1]
      %v2095 = vld [vmem:[%s11] sm:$0x1]
      %v2096 = vsel %vm708, %v2092, 0.0
      %2097 = vadd.xlane.f32.xlu0 %v2096
      %v2098 = vpop.xlane.xlu0 %2097
      %v2099 = vsel %vm708, %v2093, 0.0
      %2100 = vadd.xlane.f32.xlu0 %v2099
      %v2101 = vpop.xlane.xlu0 %2100
      %v2102 = vmul.f32 %v2098, %v1762
      %v2103 = vmul.f32 %v2101, %v1762
      %v2104 = vmul.f32 %v2092, %v2092
      %v2105 = vmul.f32 %v2093, %v2093
      %v2106 = vsel %vm708, %v2104, 0.0
      %2107 = vadd.xlane.f32.xlu0 %v2106
      %v2108 = vpop.xlane.xlu0 %2107
      %v2109 = vsel %vm708, %v2105, 0.0
      %2110 = vadd.xlane.f32.xlu0 %v2109
      %v2111 = vpop.xlane.xlu0 %2110
      %v2112 = vmul.f32 %v2108, %v1762
      %v2113 = vmul.f32 %v2111, %v1762
      %v2114 = vmul.f32 %v2102, %v2102
      %v2115 = vmul.f32 %v2103, %v2103
      %v2116 = vsub.f32 %v2112, %v2114
      %v2117 = vsub.f32 %v2113, %v2115
      %v2118 = vsub.f32 %v2092, %v2102
      %v2119 = vsub.f32 %v2093, %v2103
      %v2120 = vadd.f32 %v2116, 1e-05
      %v2121 = vadd.f32 %v2117, 1e-05
      %v2122 = vrsqrt.pop %v2120
      %v2123 = vrsqrt.pop %v2121
      %v2124 = vmul.f32 %v2118, %v2122
      %v2125 = vmul.f32 %v2119, %v2123
      %v2127 = vlaneseq
      %v2128 = vshrl.u32 %v2127, 7
      %v2129 = vsub.s32 0, %v2128
      %v2130 = vrot.slane %v2094, %v2129
      %v2132 = vmul.f32 %v2124, %v2130
      %v2133 = vmul.f32 %v2125, %v2130
      %v2135 = vlaneseq
      %v2136 = vshrl.u32 %v2135, 7
      %v2137 = vsub.s32 0, %v2136
      %v2138 = vrot.slane %v2095, %v2137
      %v2140 = vadd.f32 %v2132, %v2138
      %v2141 = vadd.f32 %v2133, %v2138
      %v2142 = vpack.c.bf16 %v2141, %v2140
      %s2143 = scalar_lea.vmem %s4, 64
      %v2144 = vld [vmem:[%s2143] sm:$0xff]
      %v2145 = vld [vmem:[%s2143 + $0x8] sm:$0xff]
      %v2146 = vld [vmem:[%s2143 + $0x10] sm:$0xff]
      %v2147 = vld [vmem:[%s2143 + $0x18] sm:$0xff]
      %v2148 = vld [vmem:[%s2143 + $0x20] sm:$0xff]
      %v2149 = vld [vmem:[%s2143 + $0x28] sm:$0xff]
      %v2150 = vld [vmem:[%s2143 + $0x30] sm:$0xff]
      %v2151 = vld [vmem:[%s2143 + $0x38] sm:$0xff]
      %s2152 = scalar_lea.vmem %s5, 2
      %v2153 = vld [vmem:[%s2152] sm:$0x3]
      %v2155 = vlaneseq
      %v2156 = vshrl.u32 %v2155, 7
      %v2157 = vsub.s32 0, %v2156
      %v2158 = vrot.slane %v2153, %v2157
      %v2159 = vlaneseq
      %v2160 = vshrl.u32 %v2159, 7
      %v2161 = vsub.s32 1, %v2160
      %v2162 = vrot.slane %v2153, %v2161
      %v2173 = vunpack.c.l.b16 %v2144
      %v2174 = vunpack.c.h.b16 %v2144
      %v2175 = vunpack.c.l.b16 %v2145
      %v2176 = vunpack.c.h.b16 %v2145
      %v2177 = vunpack.c.l.b16 %v2146
      %v2178 = vunpack.c.h.b16 %v2146
      %v2179 = vunpack.c.l.b16 %v2147
      %v2180 = vunpack.c.h.b16 %v2147
      %v2181 = vunpack.c.l.b16 %v2148
      %v2182 = vunpack.c.h.b16 %v2148
      %v2183 = vunpack.c.l.b16 %v2149
      %v2184 = vunpack.c.h.b16 %v2149
      %v2185 = vunpack.c.l.b16 %v2150
      %v2186 = vunpack.c.h.b16 %v2150
      %v2187 = vunpack.c.l.b16 %v2151
      %v2188 = vunpack.c.h.b16 %v2151
      %v2189 = vpack.c.b16 %v2175, %v2173
      %v2190 = vpack.c.b16 %v2176, %v2174
      %v2191 = vpack.c.b16 %v2179, %v2177
      %v2192 = vpack.c.b16 %v2180, %v2178
      %v2193 = vpack.c.b16 %v2183, %v2181
      %v2194 = vpack.c.b16 %v2184, %v2182
      %v2195 = vpack.c.b16 %v2187, %v2185
      %v2196 = vpack.c.b16 %v2188, %v2186
      %v2206 = vsel %vm708, %v2142, 0
      %2208 = vmatprep.subr.bf16.mxu0 %v2190
      %2209 = vmatpush1.bf16.msra.mxu0 %v2189
      %2210 = vmatprep.subr.bf16.mxu0 %v2192
      %2211 = vmatpush1.bf16.msra.mxu0 %v2191
      %2212 = vmatprep.subr.bf16.mxu0 %v2194
      %2213 = vmatpush1.bf16.msra.mxu0 %v2193
      %2214 = vmatprep.subr.bf16.mxu0 %v2196
      %2215 = vmatpush1.bf16.msra.mxu0 %v2195
      %2216 = vmatprep.subr.bf16.mxu0 0
      %2217 = vmatpush1.bf16.msra.mxu0 0
      %2218 = vmatprep.subr.bf16.mxu0 0
      %2219 = vmatpush1.bf16.msra.mxu0 0
      %2220 = vmatprep.subr.bf16.mxu0 0
      %2221 = vmatpush1.bf16.msra.mxu0 0
      %2222 = vmatprep.subr.bf16.mxu0 0
      %2223 = vmatpush1.bf16.msra.mxu0 0
      %2224 = vmatprep.subr.bf16.mxu0 0
      %2225 = vmatpush1.bf16.msra.mxu0 0
      %2226 = vmatprep.subr.bf16.mxu0 0
      %2227 = vmatpush1.bf16.msra.mxu0 0
      %2228 = vmatprep.subr.bf16.mxu0 0
      %2229 = vmatpush1.bf16.msra.mxu0 0
      %2230 = vmatprep.subr.bf16.mxu0 0
      %2231 = vmatpush1.bf16.msra.mxu0 0
      %2232 = vmatprep.subr.bf16.mxu0 0
      %2233 = vmatpush1.bf16.msra.mxu0 0
      %2234 = vmatprep.subr.bf16.mxu0 0
      %2235 = vmatpush1.bf16.msra.mxu0 0
      %2236 = vmatprep.subr.bf16.mxu0 0
      %2237 = vmatpush1.bf16.msra.mxu0 0
      %2238 = vmatprep.subr.bf16.mxu0 0
      %2239 = vmatpush1.bf16.msra.mxu0 0
      %2240 = vmatprep.mubr.bf16.mxu0 0
      %2241 = vmatmul.mubr.bf16.gmra.mrb[0].mxu0 %v2206
      %v2242 = vpop.f32.mrb[0].mxu0
      %v2243 = vadd.f32 %v2158, %v2242
      %v2244 = vpop.f32.mrb[0].mxu0
      %v2245 = vadd.f32 %v2162, %v2244
      %v2246 = vpop.f32.mrb[0].mxu0
      %v2247 = vadd.f32 %v2158, %v2246
      %v2248 = vpop.f32.mrb[0].mxu0
      %v2249 = vadd.f32 %v2162, %v2248
      %2250 = vdwg.mxu0
      %v2251 = vpack.c.bf16 %v2243, %v2243
      %v2252 = vpack.c.bf16 %v2247, %v2247
      %v2253 = vpack.c.bf16 %v2245, %v2245
      %v2254 = vpack.c.bf16 %v2249, %v2249
      %2256 = vrot.lane.b32.xlu0 %v2251, 64
      %v2257 = vpop.permute.xlu0 %2256
      %v2259 = vsel %vm762, %v2251, 0
      %v2262 = vsel %vm762, %v2257, 0
      %2264 = vmatprep.subr.bf16.mxu0 0
      %2265 = vmatpush1.bf16.xpose.msra.mxu0 %v2262
      %2266 = vmatprep.subr.bf16.mxu0 0
      %2267 = vmatpush1.bf16.xpose.msra.mxu0 0
      %2268 = vmatprep.subr.bf16.mxu0 0
      %2269 = vmatpush1.bf16.xpose.msra.mxu0 0
      %2270 = vmatprep.subr.bf16.mxu0 0
      %2271 = vmatpush1.bf16.xpose.msra.mxu0 0
      %2272 = vmatprep.subr.bf16.mxu0 0
      %2273 = vmatpush1.bf16.xpose.msra.mxu0 0
      %2274 = vmatprep.subr.bf16.mxu0 0
      %2275 = vmatpush1.bf16.xpose.msra.mxu0 0
      %2276 = vmatprep.subr.bf16.mxu0 0
      %2277 = vmatpush1.bf16.xpose.msra.mxu0 0
      %2278 = vmatprep.subr.bf16.mxu0 0
      %2279 = vmatpush1.bf16.xpose.msra.mxu0 0
      %2280 = vmatprep.subr.bf16.mxu0 0
      %2281 = vmatpush1.bf16.xpose.msra.mxu0 0
      %2282 = vmatprep.subr.bf16.mxu0 0
      %2283 = vmatpush1.bf16.xpose.msra.mxu0 0
      %2284 = vmatprep.subr.bf16.mxu0 0
      %2285 = vmatpush1.bf16.xpose.msra.mxu0 0
      %2286 = vmatprep.subr.bf16.mxu0 0
      %2287 = vmatpush1.bf16.xpose.msra.mxu0 0
      %2288 = vmatprep.subr.bf16.mxu0 0
      %2289 = vmatpush1.bf16.xpose.msra.mxu0 0
      %2290 = vmatprep.subr.bf16.mxu0 0
      %2291 = vmatpush1.bf16.xpose.msra.mxu0 0
      %2292 = vmatprep.subr.bf16.mxu0 0
      %2293 = vmatpush1.bf16.xpose.msra.mxu0 0
      %2294 = vmatprep.subr.bf16.mxu0 0
      %2295 = vmatpush1.bf16.xpose.msra.mxu0 0
      %2296 = vmatprep.mubr.bf16.mxu0 0
      %2297 = vmatmul.mubr.bf16.gmra.mrb[0].mxu0 %v2259
      %v2298 = vpop.f32.mrb[0].mxu0
      %v2299 = vadd.f32 0.0, %v2298
      %v2300 = vpop.f32.mrb[0].mxu0
      %v2301 = vpop.f32.mrb[0].mxu0
      %v2302 = vpop.f32.mrb[0].mxu0
      %2303 = vdwg.mxu0
      %2305 = vrot.lane.b32.xlu0 %v2252, 64
      %v2306 = vpop.permute.xlu0 %2305
      %v2308 = vsel %vm762, %v2252, 0
      %v2311 = vsel %vm762, %v2306, 0
      %2313 = vmatprep.subr.bf16.mxu0 0
      %2314 = vmatpush1.bf16.xpose.msra.mxu0 %v2311
      %2315 = vmatprep.subr.bf16.mxu0 0
      %2316 = vmatpush1.bf16.xpose.msra.mxu0 0
      %2317 = vmatprep.subr.bf16.mxu0 0
      %2318 = vmatpush1.bf16.xpose.msra.mxu0 0
      %2319 = vmatprep.subr.bf16.mxu0 0
      %2320 = vmatpush1.bf16.xpose.msra.mxu0 0
      %2321 = vmatprep.subr.bf16.mxu0 0
      %2322 = vmatpush1.bf16.xpose.msra.mxu0 0
      %2323 = vmatprep.subr.bf16.mxu0 0
      %2324 = vmatpush1.bf16.xpose.msra.mxu0 0
      %2325 = vmatprep.subr.bf16.mxu0 0
      %2326 = vmatpush1.bf16.xpose.msra.mxu0 0
      %2327 = vmatprep.subr.bf16.mxu0 0
      %2328 = vmatpush1.bf16.xpose.msra.mxu0 0
      %2329 = vmatprep.subr.bf16.mxu0 0
      %2330 = vmatpush1.bf16.xpose.msra.mxu0 0
      %2331 = vmatprep.subr.bf16.mxu0 0
      %2332 = vmatpush1.bf16.xpose.msra.mxu0 0
      %2333 = vmatprep.subr.bf16.mxu0 0
      %2334 = vmatpush1.bf16.xpose.msra.mxu0 0
      %2335 = vmatprep.subr.bf16.mxu0 0
      %2336 = vmatpush1.bf16.xpose.msra.mxu0 0
      %2337 = vmatprep.subr.bf16.mxu0 0
      %2338 = vmatpush1.bf16.xpose.msra.mxu0 0
      %2339 = vmatprep.subr.bf16.mxu0 0
      %2340 = vmatpush1.bf16.xpose.msra.mxu0 0
      %2341 = vmatprep.subr.bf16.mxu0 0
      %2342 = vmatpush1.bf16.xpose.msra.mxu0 0
      %2343 = vmatprep.subr.bf16.mxu0 0
      %2344 = vmatpush1.bf16.xpose.msra.mxu0 0
      %2345 = vmatprep.mubr.bf16.mxu0 0
      %2346 = vmatmul.mubr.bf16.gmra.mrb[0].mxu0 %v2308
      %v2347 = vpop.f32.mrb[0].mxu0
      %v2348 = vadd.f32 0.0, %v2347
      %v2349 = vpop.f32.mrb[0].mxu0
      %v2350 = vpop.f32.mrb[0].mxu0
      %v2351 = vpop.f32.mrb[0].mxu0
      %2352 = vdwg.mxu0
      %v2353 = vsel %vm595, %v2299, -inf
      %2354 = vmax.xlane.f32.xlu0 %v2353
      %v2355 = vpop.xlane.xlu0 %2354
      %v2356 = vsel %vm595, %v2348, -inf
      %2357 = vmax.xlane.f32.xlu0 %v2356
      %v2358 = vpop.xlane.xlu0 %2357
      %v2359 = vsub.f32 %v2299, %v2355
      %v2360 = vsub.f32 %v2348, %v2358
      %v2361 = vmul.f32 %v2359, 1.442695
      %v2362 = vpow.pop %v2361
      %v2363 = vmul.f32 %v2360, 1.442695
      %v2364 = vpow.pop %v2363
      %v2365 = vsel %vm595, %v2362, 0.0
      %2366 = vadd.xlane.f32.xlu0 %v2365
      %v2367 = vpop.xlane.xlu0 %2366
      %v2368 = vsel %vm595, %v2364, 0.0
      %2369 = vadd.xlane.f32.xlu0 %v2368
      %v2370 = vpop.xlane.xlu0 %2369
      %v2371 = vrcp.pop %v2367
      %v2372 = vrcp.pop %v2370
      %v2373 = vmul.f32 %v2362, %v2371
      %v2374 = vmul.f32 %v2364, %v2372
      %v2375 = vpack.c.bf16 %v2373, %v2373
      %v2376 = vpack.c.bf16 %v2374, %v2374
      %v2378 = vsel %vm595, %v2375, 0
      %v2381 = vsel %vm599, %v2253, 0
      %2383 = vmatprep.subr.bf16.mxu0 0
      %2384 = vmatpush1.bf16.msra.mxu0 %v2381
      %2385 = vmatprep.subr.bf16.mxu0 0
      %2386 = vmatpush1.bf16.msra.mxu0 0
      %2387 = vmatprep.subr.bf16.mxu0 0
      %2388 = vmatpush1.bf16.msra.mxu0 0
      %2389 = vmatprep.subr.bf16.mxu0 0
      %2390 = vmatpush1.bf16.msra.mxu0 0
      %2391 = vmatprep.subr.bf16.mxu0 0
      %2392 = vmatpush1.bf16.msra.mxu0 0
      %2393 = vmatprep.subr.bf16.mxu0 0
      %2394 = vmatpush1.bf16.msra.mxu0 0
      %2395 = vmatprep.subr.bf16.mxu0 0
      %2396 = vmatpush1.bf16.msra.mxu0 0
      %2397 = vmatprep.subr.bf16.mxu0 0
      %2398 = vmatpush1.bf16.msra.mxu0 0
      %2399 = vmatprep.subr.bf16.mxu0 0
      %2400 = vmatpush1.bf16.msra.mxu0 0
      %2401 = vmatprep.subr.bf16.mxu0 0
      %2402 = vmatpush1.bf16.msra.mxu0 0
      %2403 = vmatprep.subr.bf16.mxu0 0
      %2404 = vmatpush1.bf16.msra.mxu0 0
      %2405 = vmatprep.subr.bf16.mxu0 0
      %2406 = vmatpush1.bf16.msra.mxu0 0
      %2407 = vmatprep.subr.bf16.mxu0 0
      %2408 = vmatpush1.bf16.msra.mxu0 0
      %2409 = vmatprep.subr.bf16.mxu0 0
      %2410 = vmatpush1.bf16.msra.mxu0 0
      %2411 = vmatprep.subr.bf16.mxu0 0
      %2412 = vmatpush1.bf16.msra.mxu0 0
      %2413 = vmatprep.subr.bf16.mxu0 0
      %2414 = vmatpush1.bf16.msra.mxu0 0
      %2415 = vmatprep.mubr.bf16.mxu0 0
      %2416 = vmatmul.mubr.bf16.gmra.mrb[0].mxu0 %v2378
      %v2417 = vpop.f32.mrb[0].mxu0
      %v2418 = vadd.f32 0.0, %v2417
      %v2419 = vpop.f32.mrb[0].mxu0
      %v2420 = vpop.f32.mrb[0].mxu0
      %v2421 = vpop.f32.mrb[0].mxu0
      %2422 = vdwg.mxu0
      %v2424 = vsel %vm595, %v2376, 0
      %v2427 = vsel %vm599, %v2254, 0
      %2429 = vmatprep.subr.bf16.mxu0 0
      %2430 = vmatpush1.bf16.msra.mxu0 %v2427
      %2431 = vmatprep.subr.bf16.mxu0 0
      %2432 = vmatpush1.bf16.msra.mxu0 0
      %2433 = vmatprep.subr.bf16.mxu0 0
      %2434 = vmatpush1.bf16.msra.mxu0 0
      %2435 = vmatprep.subr.bf16.mxu0 0
      %2436 = vmatpush1.bf16.msra.mxu0 0
      %2437 = vmatprep.subr.bf16.mxu0 0
      %2438 = vmatpush1.bf16.msra.mxu0 0
      %2439 = vmatprep.subr.bf16.mxu0 0
      %2440 = vmatpush1.bf16.msra.mxu0 0
      %2441 = vmatprep.subr.bf16.mxu0 0
      %2442 = vmatpush1.bf16.msra.mxu0 0
      %2443 = vmatprep.subr.bf16.mxu0 0
      %2444 = vmatpush1.bf16.msra.mxu0 0
      %2445 = vmatprep.subr.bf16.mxu0 0
      %2446 = vmatpush1.bf16.msra.mxu0 0
      %2447 = vmatprep.subr.bf16.mxu0 0
      %2448 = vmatpush1.bf16.msra.mxu0 0
      %2449 = vmatprep.subr.bf16.mxu0 0
      %2450 = vmatpush1.bf16.msra.mxu0 0
      %2451 = vmatprep.subr.bf16.mxu0 0
      %2452 = vmatpush1.bf16.msra.mxu0 0
      %2453 = vmatprep.subr.bf16.mxu0 0
      %2454 = vmatpush1.bf16.msra.mxu0 0
      %2455 = vmatprep.subr.bf16.mxu0 0
      %2456 = vmatpush1.bf16.msra.mxu0 0
      %2457 = vmatprep.subr.bf16.mxu0 0
      %2458 = vmatpush1.bf16.msra.mxu0 0
      %2459 = vmatprep.subr.bf16.mxu0 0
      %2460 = vmatpush1.bf16.msra.mxu0 0
      %2461 = vmatprep.mubr.bf16.mxu0 0
      %2462 = vmatmul.mubr.bf16.gmra.mrb[0].mxu0 %v2424
      %v2463 = vpop.f32.mrb[0].mxu0
      %v2464 = vadd.f32 0.0, %v2463
      %v2465 = vpop.f32.mrb[0].mxu0
      %v2466 = vpop.f32.mrb[0].mxu0
      %v2467 = vpop.f32.mrb[0].mxu0
      %2468 = vdwg.mxu0
      %2469 = vrot.lane.b32.xlu0 %v2251, 112
      %v2470 = vpop.permute.xlu0 %2469
      %2471 = vrot.lane.b32.xlu0 %v2251, 48
      %v2472 = vpop.permute.xlu0 %2471
      %v2474 = vsel %vm762, %v2470, 0
      %v2477 = vsel %vm762, %v2472, 0
      %2479 = vmatprep.subr.bf16.mxu0 0
      %2480 = vmatpush1.bf16.xpose.msra.mxu0 %v2477
      %2481 = vmatprep.subr.bf16.mxu0 0
      %2482 = vmatpush1.bf16.xpose.msra.mxu0 0
      %2483 = vmatprep.subr.bf16.mxu0 0
      %2484 = vmatpush1.bf16.xpose.msra.mxu0 0
      %2485 = vmatprep.subr.bf16.mxu0 0
      %2486 = vmatpush1.bf16.xpose.msra.mxu0 0
      %2487 = vmatprep.subr.bf16.mxu0 0
      %2488 = vmatpush1.bf16.xpose.msra.mxu0 0
      %2489 = vmatprep.subr.bf16.mxu0 0
      %2490 = vmatpush1.bf16.xpose.msra.mxu0 0
      %2491 = vmatprep.subr.bf16.mxu0 0
      %2492 = vmatpush1.bf16.xpose.msra.mxu0 0
      %2493 = vmatprep.subr.bf16.mxu0 0
      %2494 = vmatpush1.bf16.xpose.msra.mxu0 0
      %2495 = vmatprep.subr.bf16.mxu0 0
      %2496 = vmatpush1.bf16.xpose.msra.mxu0 0
      %2497 = vmatprep.subr.bf16.mxu0 0
      %2498 = vmatpush1.bf16.xpose.msra.mxu0 0
      %2499 = vmatprep.subr.bf16.mxu0 0
      %2500 = vmatpush1.bf16.xpose.msra.mxu0 0
      %2501 = vmatprep.subr.bf16.mxu0 0
      %2502 = vmatpush1.bf16.xpose.msra.mxu0 0
      %2503 = vmatprep.subr.bf16.mxu0 0
      %2504 = vmatpush1.bf16.xpose.msra.mxu0 0
      %2505 = vmatprep.subr.bf16.mxu0 0
      %2506 = vmatpush1.bf16.xpose.msra.mxu0 0
      %2507 = vmatprep.subr.bf16.mxu0 0
      %2508 = vmatpush1.bf16.xpose.msra.mxu0 0
      %2509 = vmatprep.subr.bf16.mxu0 0
      %2510 = vmatpush1.bf16.xpose.msra.mxu0 0
      %2511 = vmatprep.mubr.bf16.mxu0 0
      %2512 = vmatmul.mubr.bf16.gmra.mrb[0].mxu0 %v2474
      %v2513 = vpop.f32.mrb[0].mxu0
      %v2514 = vadd.f32 0.0, %v2513
      %v2515 = vpop.f32.mrb[0].mxu0
      %v2516 = vpop.f32.mrb[0].mxu0
      %v2517 = vpop.f32.mrb[0].mxu0
      %2518 = vdwg.mxu0
      %2519 = vrot.lane.b32.xlu0 %v2252, 112
      %v2520 = vpop.permute.xlu0 %2519
      %2521 = vrot.lane.b32.xlu0 %v2252, 48
      %v2522 = vpop.permute.xlu0 %2521
      %v2524 = vsel %vm762, %v2520, 0
      %v2527 = vsel %vm762, %v2522, 0
      %2529 = vmatprep.subr.bf16.mxu0 0
      %2530 = vmatpush1.bf16.xpose.msra.mxu0 %v2527
      %2531 = vmatprep.subr.bf16.mxu0 0
      %2532 = vmatpush1.bf16.xpose.msra.mxu0 0
      %2533 = vmatprep.subr.bf16.mxu0 0
      %2534 = vmatpush1.bf16.xpose.msra.mxu0 0
      %2535 = vmatprep.subr.bf16.mxu0 0
      %2536 = vmatpush1.bf16.xpose.msra.mxu0 0
      %2537 = vmatprep.subr.bf16.mxu0 0
      %2538 = vmatpush1.bf16.xpose.msra.mxu0 0
      %2539 = vmatprep.subr.bf16.mxu0 0
      %2540 = vmatpush1.bf16.xpose.msra.mxu0 0
      %2541 = vmatprep.subr.bf16.mxu0 0
      %2542 = vmatpush1.bf16.xpose.msra.mxu0 0
      %2543 = vmatprep.subr.bf16.mxu0 0
      %2544 = vmatpush1.bf16.xpose.msra.mxu0 0
      %2545 = vmatprep.subr.bf16.mxu0 0
      %2546 = vmatpush1.bf16.xpose.msra.mxu0 0
      %2547 = vmatprep.subr.bf16.mxu0 0
      %2548 = vmatpush1.bf16.xpose.msra.mxu0 0
      %2549 = vmatprep.subr.bf16.mxu0 0
      %2550 = vmatpush1.bf16.xpose.msra.mxu0 0
      %2551 = vmatprep.subr.bf16.mxu0 0
      %2552 = vmatpush1.bf16.xpose.msra.mxu0 0
      %2553 = vmatprep.subr.bf16.mxu0 0
      %2554 = vmatpush1.bf16.xpose.msra.mxu0 0
      %2555 = vmatprep.subr.bf16.mxu0 0
      %2556 = vmatpush1.bf16.xpose.msra.mxu0 0
      %2557 = vmatprep.subr.bf16.mxu0 0
      %2558 = vmatpush1.bf16.xpose.msra.mxu0 0
      %2559 = vmatprep.subr.bf16.mxu0 0
      %2560 = vmatpush1.bf16.xpose.msra.mxu0 0
      %2561 = vmatprep.mubr.bf16.mxu0 0
      %2562 = vmatmul.mubr.bf16.gmra.mrb[0].mxu0 %v2524
      %v2563 = vpop.f32.mrb[0].mxu0
      %v2564 = vadd.f32 0.0, %v2563
      %v2565 = vpop.f32.mrb[0].mxu0
      %v2566 = vpop.f32.mrb[0].mxu0
      %v2567 = vpop.f32.mrb[0].mxu0
      %2568 = vdwg.mxu0
      %v2569 = vsel %vm595, %v2514, -inf
      %2570 = vmax.xlane.f32.xlu0 %v2569
      %v2571 = vpop.xlane.xlu0 %2570
      %v2572 = vsel %vm595, %v2564, -inf
      %2573 = vmax.xlane.f32.xlu0 %v2572
      %v2574 = vpop.xlane.xlu0 %2573
      %v2575 = vsub.f32 %v2514, %v2571
      %v2576 = vsub.f32 %v2564, %v2574
      %v2577 = vmul.f32 %v2575, 1.442695
      %v2578 = vpow.pop %v2577
      %v2579 = vmul.f32 %v2576, 1.442695
      %v2580 = vpow.pop %v2579
      %v2581 = vsel %vm595, %v2578, 0.0
      %2582 = vadd.xlane.f32.xlu0 %v2581
      %v2583 = vpop.xlane.xlu0 %2582
      %v2584 = vsel %vm595, %v2580, 0.0
      %2585 = vadd.xlane.f32.xlu0 %v2584
      %v2586 = vpop.xlane.xlu0 %2585
      %v2587 = vrcp.pop %v2583
      %v2588 = vrcp.pop %v2586
      %v2589 = vmul.f32 %v2578, %v2587
      %v2590 = vmul.f32 %v2580, %v2588
      %v2591 = vpack.c.bf16 %v2589, %v2589
      %v2592 = vpack.c.bf16 %v2590, %v2590
      %2594 = vrot.lane.b32.xlu0 %v2253, 112
      %v2595 = vpop.permute.xlu0 %2594
      %v2597 = vsel %vm595, %v2591, 0
      %v2600 = vsel %vm599, %v2595, 0
      %2602 = vmatprep.subr.bf16.mxu0 0
      %2603 = vmatpush1.bf16.msra.mxu0 %v2600
      %2604 = vmatprep.subr.bf16.mxu0 0
      %2605 = vmatpush1.bf16.msra.mxu0 0
      %2606 = vmatprep.subr.bf16.mxu0 0
      %2607 = vmatpush1.bf16.msra.mxu0 0
      %2608 = vmatprep.subr.bf16.mxu0 0
      %2609 = vmatpush1.bf16.msra.mxu0 0
      %2610 = vmatprep.subr.bf16.mxu0 0
      %2611 = vmatpush1.bf16.msra.mxu0 0
      %2612 = vmatprep.subr.bf16.mxu0 0
      %2613 = vmatpush1.bf16.msra.mxu0 0
      %2614 = vmatprep.subr.bf16.mxu0 0
      %2615 = vmatpush1.bf16.msra.mxu0 0
      %2616 = vmatprep.subr.bf16.mxu0 0
      %2617 = vmatpush1.bf16.msra.mxu0 0
      %2618 = vmatprep.subr.bf16.mxu0 0
      %2619 = vmatpush1.bf16.msra.mxu0 0
      %2620 = vmatprep.subr.bf16.mxu0 0
      %2621 = vmatpush1.bf16.msra.mxu0 0
      %2622 = vmatprep.subr.bf16.mxu0 0
      %2623 = vmatpush1.bf16.msra.mxu0 0
      %2624 = vmatprep.subr.bf16.mxu0 0
      %2625 = vmatpush1.bf16.msra.mxu0 0
      %2626 = vmatprep.subr.bf16.mxu0 0
      %2627 = vmatpush1.bf16.msra.mxu0 0
      %2628 = vmatprep.subr.bf16.mxu0 0
      %2629 = vmatpush1.bf16.msra.mxu0 0
      %2630 = vmatprep.subr.bf16.mxu0 0
      %2631 = vmatpush1.bf16.msra.mxu0 0
      %2632 = vmatprep.subr.bf16.mxu0 0
      %2633 = vmatpush1.bf16.msra.mxu0 0
      %2634 = vmatprep.mubr.bf16.mxu0 0
      %2635 = vmatmul.mubr.bf16.gmra.mrb[0].mxu0 %v2597
      %v2636 = vpop.f32.mrb[0].mxu0
      %v2637 = vadd.f32 0.0, %v2636
      %v2638 = vpop.f32.mrb[0].mxu0
      %v2639 = vpop.f32.mrb[0].mxu0
      %v2640 = vpop.f32.mrb[0].mxu0
      %2641 = vdwg.mxu0
      %2643 = vrot.lane.b32.xlu0 %v2254, 112
      %v2644 = vpop.permute.xlu0 %2643
      %v2646 = vsel %vm595, %v2592, 0
      %v2649 = vsel %vm599, %v2644, 0
      %2651 = vmatprep.subr.bf16.mxu0 0
      %2652 = vmatpush1.bf16.msra.mxu0 %v2649
      %2653 = vmatprep.subr.bf16.mxu0 0
      %2654 = vmatpush1.bf16.msra.mxu0 0
      %2655 = vmatprep.subr.bf16.mxu0 0
      %2656 = vmatpush1.bf16.msra.mxu0 0
      %2657 = vmatprep.subr.bf16.mxu0 0
      %2658 = vmatpush1.bf16.msra.mxu0 0
      %2659 = vmatprep.subr.bf16.mxu0 0
      %2660 = vmatpush1.bf16.msra.mxu0 0
      %2661 = vmatprep.subr.bf16.mxu0 0
      %2662 = vmatpush1.bf16.msra.mxu0 0
      %2663 = vmatprep.subr.bf16.mxu0 0
      %2664 = vmatpush1.bf16.msra.mxu0 0
      %2665 = vmatprep.subr.bf16.mxu0 0
      %2666 = vmatpush1.bf16.msra.mxu0 0
      %2667 = vmatprep.subr.bf16.mxu0 0
      %2668 = vmatpush1.bf16.msra.mxu0 0
      %2669 = vmatprep.subr.bf16.mxu0 0
      %2670 = vmatpush1.bf16.msra.mxu0 0
      %2671 = vmatprep.subr.bf16.mxu0 0
      %2672 = vmatpush1.bf16.msra.mxu0 0
      %2673 = vmatprep.subr.bf16.mxu0 0
      %2674 = vmatpush1.bf16.msra.mxu0 0
      %2675 = vmatprep.subr.bf16.mxu0 0
      %2676 = vmatpush1.bf16.msra.mxu0 0
      %2677 = vmatprep.subr.bf16.mxu0 0
      %2678 = vmatpush1.bf16.msra.mxu0 0
      %2679 = vmatprep.subr.bf16.mxu0 0
      %2680 = vmatpush1.bf16.msra.mxu0 0
      %2681 = vmatprep.subr.bf16.mxu0 0
      %2682 = vmatpush1.bf16.msra.mxu0 0
      %2683 = vmatprep.mubr.bf16.mxu0 0
      %2684 = vmatmul.mubr.bf16.gmra.mrb[0].mxu0 %v2646
      %v2685 = vpop.f32.mrb[0].mxu0
      %v2686 = vadd.f32 0.0, %v2685
      %v2687 = vpop.f32.mrb[0].mxu0
      %v2688 = vpop.f32.mrb[0].mxu0
      %v2689 = vpop.f32.mrb[0].mxu0
      %2690 = vdwg.mxu0
      %2691 = vrot.lane.b32.xlu0 %v2251, 96
      %v2692 = vpop.permute.xlu0 %2691
      %2693 = vrot.lane.b32.xlu0 %v2251, 32
      %v2694 = vpop.permute.xlu0 %2693
      %v2696 = vsel %vm762, %v2692, 0
      %v2699 = vsel %vm762, %v2694, 0
      %2701 = vmatprep.subr.bf16.mxu0 0
      %2702 = vmatpush1.bf16.xpose.msra.mxu0 %v2699
      %2703 = vmatprep.subr.bf16.mxu0 0
      %2704 = vmatpush1.bf16.xpose.msra.mxu0 0
      %2705 = vmatprep.subr.bf16.mxu0 0
      %2706 = vmatpush1.bf16.xpose.msra.mxu0 0
      %2707 = vmatprep.subr.bf16.mxu0 0
      %2708 = vmatpush1.bf16.xpose.msra.mxu0 0
      %2709 = vmatprep.subr.bf16.mxu0 0
      %2710 = vmatpush1.bf16.xpose.msra.mxu0 0
      %2711 = vmatprep.subr.bf16.mxu0 0
      %2712 = vmatpush1.bf16.xpose.msra.mxu0 0
      %2713 = vmatprep.subr.bf16.mxu0 0
      %2714 = vmatpush1.bf16.xpose.msra.mxu0 0
      %2715 = vmatprep.subr.bf16.mxu0 0
      %2716 = vmatpush1.bf16.xpose.msra.mxu0 0
      %2717 = vmatprep.subr.bf16.mxu0 0
      %2718 = vmatpush1.bf16.xpose.msra.mxu0 0
      %2719 = vmatprep.subr.bf16.mxu0 0
      %2720 = vmatpush1.bf16.xpose.msra.mxu0 0
      %2721 = vmatprep.subr.bf16.mxu0 0
      %2722 = vmatpush1.bf16.xpose.msra.mxu0 0
      %2723 = vmatprep.subr.bf16.mxu0 0
      %2724 = vmatpush1.bf16.xpose.msra.mxu0 0
      %2725 = vmatprep.subr.bf16.mxu0 0
      %2726 = vmatpush1.bf16.xpose.msra.mxu0 0
      %2727 = vmatprep.subr.bf16.mxu0 0
      %2728 = vmatpush1.bf16.xpose.msra.mxu0 0
      %2729 = vmatprep.subr.bf16.mxu0 0
      %2730 = vmatpush1.bf16.xpose.msra.mxu0 0
      %2731 = vmatprep.subr.bf16.mxu0 0
      %2732 = vmatpush1.bf16.xpose.msra.mxu0 0
      %2733 = vmatprep.mubr.bf16.mxu0 0
      %2734 = vmatmul.mubr.bf16.gmra.mrb[0].mxu0 %v2696
      %v2735 = vpop.f32.mrb[0].mxu0
      %v2736 = vadd.f32 0.0, %v2735
      %v2737 = vpop.f32.mrb[0].mxu0
      %v2738 = vpop.f32.mrb[0].mxu0
      %v2739 = vpop.f32.mrb[0].mxu0
      %2740 = vdwg.mxu0
      %2741 = vrot.lane.b32.xlu0 %v2252, 96
      %v2742 = vpop.permute.xlu0 %2741
      %2743 = vrot.lane.b32.xlu0 %v2252, 32
      %v2744 = vpop.permute.xlu0 %2743
      %v2746 = vsel %vm762, %v2742, 0
      %v2749 = vsel %vm762, %v2744, 0
      %2751 = vmatprep.subr.bf16.mxu0 0
      %2752 = vmatpush1.bf16.xpose.msra.mxu0 %v2749
      %2753 = vmatprep.subr.bf16.mxu0 0
      %2754 = vmatpush1.bf16.xpose.msra.mxu0 0
      %2755 = vmatprep.subr.bf16.mxu0 0
      %2756 = vmatpush1.bf16.xpose.msra.mxu0 0
      %2757 = vmatprep.subr.bf16.mxu0 0
      %2758 = vmatpush1.bf16.xpose.msra.mxu0 0
      %2759 = vmatprep.subr.bf16.mxu0 0
      %2760 = vmatpush1.bf16.xpose.msra.mxu0 0
      %2761 = vmatprep.subr.bf16.mxu0 0
      %2762 = vmatpush1.bf16.xpose.msra.mxu0 0
      %2763 = vmatprep.subr.bf16.mxu0 0
      %2764 = vmatpush1.bf16.xpose.msra.mxu0 0
      %2765 = vmatprep.subr.bf16.mxu0 0
      %2766 = vmatpush1.bf16.xpose.msra.mxu0 0
      %2767 = vmatprep.subr.bf16.mxu0 0
      %2768 = vmatpush1.bf16.xpose.msra.mxu0 0
      %2769 = vmatprep.subr.bf16.mxu0 0
      %2770 = vmatpush1.bf16.xpose.msra.mxu0 0
      %2771 = vmatprep.subr.bf16.mxu0 0
      %2772 = vmatpush1.bf16.xpose.msra.mxu0 0
      %2773 = vmatprep.subr.bf16.mxu0 0
      %2774 = vmatpush1.bf16.xpose.msra.mxu0 0
      %2775 = vmatprep.subr.bf16.mxu0 0
      %2776 = vmatpush1.bf16.xpose.msra.mxu0 0
      %2777 = vmatprep.subr.bf16.mxu0 0
      %2778 = vmatpush1.bf16.xpose.msra.mxu0 0
      %2779 = vmatprep.subr.bf16.mxu0 0
      %2780 = vmatpush1.bf16.xpose.msra.mxu0 0
      %2781 = vmatprep.subr.bf16.mxu0 0
      %2782 = vmatpush1.bf16.xpose.msra.mxu0 0
      %2783 = vmatprep.mubr.bf16.mxu0 0
      %2784 = vmatmul.mubr.bf16.gmra.mrb[0].mxu0 %v2746
      %v2785 = vpop.f32.mrb[0].mxu0
      %v2786 = vadd.f32 0.0, %v2785
      %v2787 = vpop.f32.mrb[0].mxu0
      %v2788 = vpop.f32.mrb[0].mxu0
      %v2789 = vpop.f32.mrb[0].mxu0
      %2790 = vdwg.mxu0
      %v2791 = vsel %vm595, %v2736, -inf
      %2792 = vmax.xlane.f32.xlu0 %v2791
      %v2793 = vpop.xlane.xlu0 %2792
      %v2794 = vsel %vm595, %v2786, -inf
      %2795 = vmax.xlane.f32.xlu0 %v2794
      %v2796 = vpop.xlane.xlu0 %2795
      %v2797 = vsub.f32 %v2736, %v2793
      %v2798 = vsub.f32 %v2786, %v2796
      %v2799 = vmul.f32 %v2797, 1.442695
      %v2800 = vpow.pop %v2799
      %v2801 = vmul.f32 %v2798, 1.442695
      %v2802 = vpow.pop %v2801
      %v2803 = vsel %vm595, %v2800, 0.0
      %2804 = vadd.xlane.f32.xlu0 %v2803
      %v2805 = vpop.xlane.xlu0 %2804
      %v2806 = vsel %vm595, %v2802, 0.0
      %2807 = vadd.xlane.f32.xlu0 %v2806
      %v2808 = vpop.xlane.xlu0 %2807
      %v2809 = vrcp.pop %v2805
      %v2810 = vrcp.pop %v2808
      %v2811 = vmul.f32 %v2800, %v2809
      %v2812 = vmul.f32 %v2802, %v2810
      %v2813 = vpack.c.bf16 %v2811, %v2811
      %v2814 = vpack.c.bf16 %v2812, %v2812
      %2815 = vrot.lane.b32.xlu0 %v2253, 96
      %v2816 = vpop.permute.xlu0 %2815
      %v2818 = vsel %vm595, %v2813, 0
      %v2821 = vsel %vm599, %v2816, 0
      %2823 = vmatprep.subr.bf16.mxu0 0
      %2824 = vmatpush1.bf16.msra.mxu0 %v2821
      %2825 = vmatprep.subr.bf16.mxu0 0
      %2826 = vmatpush1.bf16.msra.mxu0 0
      %2827 = vmatprep.subr.bf16.mxu0 0
      %2828 = vmatpush1.bf16.msra.mxu0 0
      %2829 = vmatprep.subr.bf16.mxu0 0
      %2830 = vmatpush1.bf16.msra.mxu0 0
      %2831 = vmatprep.subr.bf16.mxu0 0
      %2832 = vmatpush1.bf16.msra.mxu0 0
      %2833 = vmatprep.subr.bf16.mxu0 0
      %2834 = vmatpush1.bf16.msra.mxu0 0
      %2835 = vmatprep.subr.bf16.mxu0 0
      %2836 = vmatpush1.bf16.msra.mxu0 0
      %2837 = vmatprep.subr.bf16.mxu0 0
      %2838 = vmatpush1.bf16.msra.mxu0 0
      %2839 = vmatprep.subr.bf16.mxu0 0
      %2840 = vmatpush1.bf16.msra.mxu0 0
      %2841 = vmatprep.subr.bf16.mxu0 0
      %2842 = vmatpush1.bf16.msra.mxu0 0
      %2843 = vmatprep.subr.bf16.mxu0 0
      %2844 = vmatpush1.bf16.msra.mxu0 0
      %2845 = vmatprep.subr.bf16.mxu0 0
      %2846 = vmatpush1.bf16.msra.mxu0 0
      %2847 = vmatprep.subr.bf16.mxu0 0
      %2848 = vmatpush1.bf16.msra.mxu0 0
      %2849 = vmatprep.subr.bf16.mxu0 0
      %2850 = vmatpush1.bf16.msra.mxu0 0
      %2851 = vmatprep.subr.bf16.mxu0 0
      %2852 = vmatpush1.bf16.msra.mxu0 0
      %2853 = vmatprep.subr.bf16.mxu0 0
      %2854 = vmatpush1.bf16.msra.mxu0 0
      %2855 = vmatprep.mubr.bf16.mxu0 0
      %2856 = vmatmul.mubr.bf16.gmra.mrb[0].mxu0 %v2818
      %v2857 = vpop.f32.mrb[0].mxu0
      %v2858 = vadd.f32 0.0, %v2857
      %v2859 = vpop.f32.mrb[0].mxu0
      %v2860 = vpop.f32.mrb[0].mxu0
      %v2861 = vpop.f32.mrb[0].mxu0
      %2862 = vdwg.mxu0
      %2863 = vrot.lane.b32.xlu0 %v2254, 96
      %v2864 = vpop.permute.xlu0 %2863
      %v2866 = vsel %vm595, %v2814, 0
      %v2869 = vsel %vm599, %v2864, 0
      %2871 = vmatprep.subr.bf16.mxu0 0
      %2872 = vmatpush1.bf16.msra.mxu0 %v2869
      %2873 = vmatprep.subr.bf16.mxu0 0
      %2874 = vmatpush1.bf16.msra.mxu0 0
      %2875 = vmatprep.subr.bf16.mxu0 0
      %2876 = vmatpush1.bf16.msra.mxu0 0
      %2877 = vmatprep.subr.bf16.mxu0 0
      %2878 = vmatpush1.bf16.msra.mxu0 0
      %2879 = vmatprep.subr.bf16.mxu0 0
      %2880 = vmatpush1.bf16.msra.mxu0 0
      %2881 = vmatprep.subr.bf16.mxu0 0
      %2882 = vmatpush1.bf16.msra.mxu0 0
      %2883 = vmatprep.subr.bf16.mxu0 0
      %2884 = vmatpush1.bf16.msra.mxu0 0
      %2885 = vmatprep.subr.bf16.mxu0 0
      %2886 = vmatpush1.bf16.msra.mxu0 0
      %2887 = vmatprep.subr.bf16.mxu0 0
      %2888 = vmatpush1.bf16.msra.mxu0 0
      %2889 = vmatprep.subr.bf16.mxu0 0
      %2890 = vmatpush1.bf16.msra.mxu0 0
      %2891 = vmatprep.subr.bf16.mxu0 0
      %2892 = vmatpush1.bf16.msra.mxu0 0
      %2893 = vmatprep.subr.bf16.mxu0 0
      %2894 = vmatpush1.bf16.msra.mxu0 0
      %2895 = vmatprep.subr.bf16.mxu0 0
      %2896 = vmatpush1.bf16.msra.mxu0 0
      %2897 = vmatprep.subr.bf16.mxu0 0
      %2898 = vmatpush1.bf16.msra.mxu0 0
      %2899 = vmatprep.subr.bf16.mxu0 0
      %2900 = vmatpush1.bf16.msra.mxu0 0
      %2901 = vmatprep.subr.bf16.mxu0 0
      %2902 = vmatpush1.bf16.msra.mxu0 0
      %2903 = vmatprep.mubr.bf16.mxu0 0
      %2904 = vmatmul.mubr.bf16.gmra.mrb[0].mxu0 %v2866
      %v2905 = vpop.f32.mrb[0].mxu0
      %v2906 = vadd.f32 0.0, %v2905
      %v2907 = vpop.f32.mrb[0].mxu0
      %v2908 = vpop.f32.mrb[0].mxu0
      %v2909 = vpop.f32.mrb[0].mxu0
      %2910 = vdwg.mxu0
      %2911 = vrot.lane.b32.xlu0 %v2251, 80
      %v2912 = vpop.permute.xlu0 %2911
      %2913 = vrot.lane.b32.xlu0 %v2251, 16
      %v2914 = vpop.permute.xlu0 %2913
      %v2916 = vsel %vm762, %v2912, 0
      %v2919 = vsel %vm762, %v2914, 0
      %2921 = vmatprep.subr.bf16.mxu0 0
      %2922 = vmatpush1.bf16.xpose.msra.mxu0 %v2919
      %2923 = vmatprep.subr.bf16.mxu0 0
      %2924 = vmatpush1.bf16.xpose.msra.mxu0 0
      %2925 = vmatprep.subr.bf16.mxu0 0
      %2926 = vmatpush1.bf16.xpose.msra.mxu0 0
      %2927 = vmatprep.subr.bf16.mxu0 0
      %2928 = vmatpush1.bf16.xpose.msra.mxu0 0
      %2929 = vmatprep.subr.bf16.mxu0 0
      %2930 = vmatpush1.bf16.xpose.msra.mxu0 0
      %2931 = vmatprep.subr.bf16.mxu0 0
      %2932 = vmatpush1.bf16.xpose.msra.mxu0 0
      %2933 = vmatprep.subr.bf16.mxu0 0
      %2934 = vmatpush1.bf16.xpose.msra.mxu0 0
      %2935 = vmatprep.subr.bf16.mxu0 0
      %2936 = vmatpush1.bf16.xpose.msra.mxu0 0
      %2937 = vmatprep.subr.bf16.mxu0 0
      %2938 = vmatpush1.bf16.xpose.msra.mxu0 0
      %2939 = vmatprep.subr.bf16.mxu0 0
      %2940 = vmatpush1.bf16.xpose.msra.mxu0 0
      %2941 = vmatprep.subr.bf16.mxu0 0
      %2942 = vmatpush1.bf16.xpose.msra.mxu0 0
      %2943 = vmatprep.subr.bf16.mxu0 0
      %2944 = vmatpush1.bf16.xpose.msra.mxu0 0
      %2945 = vmatprep.subr.bf16.mxu0 0
      %2946 = vmatpush1.bf16.xpose.msra.mxu0 0
      %2947 = vmatprep.subr.bf16.mxu0 0
      %2948 = vmatpush1.bf16.xpose.msra.mxu0 0
      %2949 = vmatprep.subr.bf16.mxu0 0
      %2950 = vmatpush1.bf16.xpose.msra.mxu0 0
      %2951 = vmatprep.subr.bf16.mxu0 0
      %2952 = vmatpush1.bf16.xpose.msra.mxu0 0
      %2953 = vmatprep.mubr.bf16.mxu0 0
      %2954 = vmatmul.mubr.bf16.gmra.mrb[0].mxu0 %v2916
      %v2955 = vpop.f32.mrb[0].mxu0
      %v2956 = vadd.f32 0.0, %v2955
      %v2957 = vpop.f32.mrb[0].mxu0
      %v2958 = vpop.f32.mrb[0].mxu0
      %v2959 = vpop.f32.mrb[0].mxu0
      %2960 = vdwg.mxu0
      %2961 = vrot.lane.b32.xlu0 %v2252, 80
      %v2962 = vpop.permute.xlu0 %2961
      %2963 = vrot.lane.b32.xlu0 %v2252, 16
      %v2964 = vpop.permute.xlu0 %2963
      %v2966 = vsel %vm762, %v2962, 0
      %v2969 = vsel %vm762, %v2964, 0
      %2971 = vmatprep.subr.bf16.mxu0 0
      %2972 = vmatpush1.bf16.xpose.msra.mxu0 %v2969
      %2973 = vmatprep.subr.bf16.mxu0 0
      %2974 = vmatpush1.bf16.xpose.msra.mxu0 0
      %2975 = vmatprep.subr.bf16.mxu0 0
      %2976 = vmatpush1.bf16.xpose.msra.mxu0 0
      %2977 = vmatprep.subr.bf16.mxu0 0
      %2978 = vmatpush1.bf16.xpose.msra.mxu0 0
      %2979 = vmatprep.subr.bf16.mxu0 0
      %2980 = vmatpush1.bf16.xpose.msra.mxu0 0
      %2981 = vmatprep.subr.bf16.mxu0 0
      %2982 = vmatpush1.bf16.xpose.msra.mxu0 0
      %2983 = vmatprep.subr.bf16.mxu0 0
      %2984 = vmatpush1.bf16.xpose.msra.mxu0 0
      %2985 = vmatprep.subr.bf16.mxu0 0
      %2986 = vmatpush1.bf16.xpose.msra.mxu0 0
      %2987 = vmatprep.subr.bf16.mxu0 0
      %2988 = vmatpush1.bf16.xpose.msra.mxu0 0
      %2989 = vmatprep.subr.bf16.mxu0 0
      %2990 = vmatpush1.bf16.xpose.msra.mxu0 0
      %2991 = vmatprep.subr.bf16.mxu0 0
      %2992 = vmatpush1.bf16.xpose.msra.mxu0 0
      %2993 = vmatprep.subr.bf16.mxu0 0
      %2994 = vmatpush1.bf16.xpose.msra.mxu0 0
      %2995 = vmatprep.subr.bf16.mxu0 0
      %2996 = vmatpush1.bf16.xpose.msra.mxu0 0
      %2997 = vmatprep.subr.bf16.mxu0 0
      %2998 = vmatpush1.bf16.xpose.msra.mxu0 0
      %2999 = vmatprep.subr.bf16.mxu0 0
      %3000 = vmatpush1.bf16.xpose.msra.mxu0 0
      %3001 = vmatprep.subr.bf16.mxu0 0
      %3002 = vmatpush1.bf16.xpose.msra.mxu0 0
      %3003 = vmatprep.mubr.bf16.mxu0 0
      %3004 = vmatmul.mubr.bf16.gmra.mrb[0].mxu0 %v2966
      %v3005 = vpop.f32.mrb[0].mxu0
      %v3006 = vadd.f32 0.0, %v3005
      %v3007 = vpop.f32.mrb[0].mxu0
      %v3008 = vpop.f32.mrb[0].mxu0
      %v3009 = vpop.f32.mrb[0].mxu0
      %3010 = vdwg.mxu0
      %v3011 = vsel %vm595, %v2956, -inf
      %3012 = vmax.xlane.f32.xlu0 %v3011
      %v3013 = vpop.xlane.xlu0 %3012
      %v3014 = vsel %vm595, %v3006, -inf
      %3015 = vmax.xlane.f32.xlu0 %v3014
      %v3016 = vpop.xlane.xlu0 %3015
      %v3017 = vsub.f32 %v2956, %v3013
      %v3018 = vsub.f32 %v3006, %v3016
      %v3019 = vmul.f32 %v3017, 1.442695
      %v3020 = vpow.pop %v3019
      %v3021 = vmul.f32 %v3018, 1.442695
      %v3022 = vpow.pop %v3021
      %v3023 = vsel %vm595, %v3020, 0.0
      %3024 = vadd.xlane.f32.xlu0 %v3023
      %v3025 = vpop.xlane.xlu0 %3024
      %v3026 = vsel %vm595, %v3022, 0.0
      %3027 = vadd.xlane.f32.xlu0 %v3026
      %v3028 = vpop.xlane.xlu0 %3027
      %v3029 = vrcp.pop %v3025
      %v3030 = vrcp.pop %v3028
      %v3031 = vmul.f32 %v3020, %v3029
      %v3032 = vmul.f32 %v3022, %v3030
      %v3033 = vpack.c.bf16 %v3031, %v3031
      %v3034 = vpack.c.bf16 %v3032, %v3032
      %3035 = vrot.lane.b32.xlu0 %v2253, 80
      %v3036 = vpop.permute.xlu0 %3035
      %v3038 = vsel %vm595, %v3033, 0
      %v3041 = vsel %vm599, %v3036, 0
      %3043 = vmatprep.subr.bf16.mxu0 0
      %3044 = vmatpush1.bf16.msra.mxu0 %v3041
      %3045 = vmatprep.subr.bf16.mxu0 0
      %3046 = vmatpush1.bf16.msra.mxu0 0
      %3047 = vmatprep.subr.bf16.mxu0 0
      %3048 = vmatpush1.bf16.msra.mxu0 0
      %3049 = vmatprep.subr.bf16.mxu0 0
      %3050 = vmatpush1.bf16.msra.mxu0 0
      %3051 = vmatprep.subr.bf16.mxu0 0
      %3052 = vmatpush1.bf16.msra.mxu0 0
      %3053 = vmatprep.subr.bf16.mxu0 0
      %3054 = vmatpush1.bf16.msra.mxu0 0
      %3055 = vmatprep.subr.bf16.mxu0 0
      %3056 = vmatpush1.bf16.msra.mxu0 0
      %3057 = vmatprep.subr.bf16.mxu0 0
      %3058 = vmatpush1.bf16.msra.mxu0 0
      %3059 = vmatprep.subr.bf16.mxu0 0
      %3060 = vmatpush1.bf16.msra.mxu0 0
      %3061 = vmatprep.subr.bf16.mxu0 0
      %3062 = vmatpush1.bf16.msra.mxu0 0
      %3063 = vmatprep.subr.bf16.mxu0 0
      %3064 = vmatpush1.bf16.msra.mxu0 0
      %3065 = vmatprep.subr.bf16.mxu0 0
      %3066 = vmatpush1.bf16.msra.mxu0 0
      %3067 = vmatprep.subr.bf16.mxu0 0
      %3068 = vmatpush1.bf16.msra.mxu0 0
      %3069 = vmatprep.subr.bf16.mxu0 0
      %3070 = vmatpush1.bf16.msra.mxu0 0
      %3071 = vmatprep.subr.bf16.mxu0 0
      %3072 = vmatpush1.bf16.msra.mxu0 0
      %3073 = vmatprep.subr.bf16.mxu0 0
      %3074 = vmatpush1.bf16.msra.mxu0 0
      %3075 = vmatprep.mubr.bf16.mxu0 0
      %3076 = vmatmul.mubr.bf16.gmra.mrb[0].mxu0 %v3038
      %v3077 = vpop.f32.mrb[0].mxu0
      %v3078 = vadd.f32 0.0, %v3077
      %v3079 = vpop.f32.mrb[0].mxu0
      %v3080 = vpop.f32.mrb[0].mxu0
      %v3081 = vpop.f32.mrb[0].mxu0
      %3082 = vdwg.mxu0
      %3083 = vrot.lane.b32.xlu0 %v2254, 80
      %v3084 = vpop.permute.xlu0 %3083
      %v3086 = vsel %vm595, %v3034, 0
      %v3089 = vsel %vm599, %v3084, 0
      %3091 = vmatprep.subr.bf16.mxu0 0
      %3092 = vmatpush1.bf16.msra.mxu0 %v3089
      %3093 = vmatprep.subr.bf16.mxu0 0
      %3094 = vmatpush1.bf16.msra.mxu0 0
      %3095 = vmatprep.subr.bf16.mxu0 0
      %3096 = vmatpush1.bf16.msra.mxu0 0
      %3097 = vmatprep.subr.bf16.mxu0 0
      %3098 = vmatpush1.bf16.msra.mxu0 0
      %3099 = vmatprep.subr.bf16.mxu0 0
      %3100 = vmatpush1.bf16.msra.mxu0 0
      %3101 = vmatprep.subr.bf16.mxu0 0
      %3102 = vmatpush1.bf16.msra.mxu0 0
      %3103 = vmatprep.subr.bf16.mxu0 0
      %3104 = vmatpush1.bf16.msra.mxu0 0
      %3105 = vmatprep.subr.bf16.mxu0 0
      %3106 = vmatpush1.bf16.msra.mxu0 0
      %3107 = vmatprep.subr.bf16.mxu0 0
      %3108 = vmatpush1.bf16.msra.mxu0 0
      %3109 = vmatprep.subr.bf16.mxu0 0
      %3110 = vmatpush1.bf16.msra.mxu0 0
      %3111 = vmatprep.subr.bf16.mxu0 0
      %3112 = vmatpush1.bf16.msra.mxu0 0
      %3113 = vmatprep.subr.bf16.mxu0 0
      %3114 = vmatpush1.bf16.msra.mxu0 0
      %3115 = vmatprep.subr.bf16.mxu0 0
      %3116 = vmatpush1.bf16.msra.mxu0 0
      %3117 = vmatprep.subr.bf16.mxu0 0
      %3118 = vmatpush1.bf16.msra.mxu0 0
      %3119 = vmatprep.subr.bf16.mxu0 0
      %3120 = vmatpush1.bf16.msra.mxu0 0
      %3121 = vmatprep.subr.bf16.mxu0 0
      %3122 = vmatpush1.bf16.msra.mxu0 0
      %3123 = vmatprep.mubr.bf16.mxu0 0
      %3124 = vmatmul.mubr.bf16.gmra.mrb[0].mxu0 %v3086
      %v3125 = vpop.f32.mrb[0].mxu0
      %v3126 = vadd.f32 0.0, %v3125
      %v3127 = vpop.f32.mrb[0].mxu0
      %v3128 = vpop.f32.mrb[0].mxu0
      %v3129 = vpop.f32.mrb[0].mxu0
      %3130 = vdwg.mxu0
      %3133 = vrot.lane.b32.xlu0 %v2637, 16
      %v3134 = vpop.permute.xlu0 %3133
      %3135 = vrot.lane.b32.xlu0 %v2686, 16
      %v3136 = vpop.permute.xlu0 %3135
      %3141 = vrot.lane.b32.xlu0 %v2858, 32
      %v3142 = vpop.permute.xlu0 %3141
      %3143 = vrot.lane.b32.xlu0 %v2906, 32
      %v3144 = vpop.permute.xlu0 %3143
      %3149 = vrot.lane.b32.xlu0 %v3078, 48
      %v3150 = vpop.permute.xlu0 %3149
      %3151 = vrot.lane.b32.xlu0 %v3126, 48
      %v3152 = vpop.permute.xlu0 %3151
      %v3155 = vsel %vm762, %v2418, %v3134
      %v3156 = vsel %vm762, %v2464, %v3136
      %v3157 = vsel %vm1662, %v3155, %v3142
      %v3158 = vsel %vm1662, %v3156, %v3144
      %v3159 = vsel %vm1665, %v3157, %v3150
      %v3160 = vsel %vm1665, %v3158, %v3152
      %v3161 = vpack.c.bf16 %v3160, %v3159
      %s3162 = scalar_lea.vmem %s6, 32
      %v3163 = vld [vmem:[%s3162] sm:$0xf]
      %v3164 = vld [vmem:[%s3162 + $0x4] sm:$0xf]
      %v3165 = vld [vmem:[%s3162 + $0x8] sm:$0xf]
      %v3166 = vld [vmem:[%s3162 + $0xc] sm:$0xf]
      %v3167 = vld [vmem:[%s3162 + $0x10] sm:$0xf]
      %v3168 = vld [vmem:[%s3162 + $0x14] sm:$0xf]
      %v3169 = vld [vmem:[%s3162 + $0x18] sm:$0xf]
      %v3170 = vld [vmem:[%s3162 + $0x1c] sm:$0xf]
      %s3171 = scalar_lea.vmem %s7, 1
      %v3172 = vld [vmem:[%s3171] sm:$0x1]
      %v3174 = vlaneseq
      %v3175 = vshrl.u32 %v3174, 7
      %v3176 = vsub.s32 0, %v3175
      %v3177 = vrot.slane %v3172, %v3176
      %v3187 = vunpack.c.l.b16 %v3163
      %v3188 = vunpack.c.l.b16 %v3164
      %v3189 = vunpack.c.l.b16 %v3165
      %v3190 = vunpack.c.l.b16 %v3166
      %v3191 = vunpack.c.l.b16 %v3167
      %v3192 = vunpack.c.l.b16 %v3168
      %v3193 = vunpack.c.l.b16 %v3169
      %v3194 = vunpack.c.l.b16 %v3170
      %v3195 = vpack.c.b16 %v3188, %v3187
      %v3196 = vpack.c.b16 %v3190, %v3189
      %v3197 = vpack.c.b16 %v3192, %v3191
      %v3198 = vpack.c.b16 %v3194, %v3193
      %v3204 = vsel %vm708, %v3161, 0
      %3206 = vmatprep.subr.bf16.mxu0 0
      %3207 = vmatpush1.bf16.msra.mxu0 %v3195
      %3208 = vmatprep.subr.bf16.mxu0 0
      %3209 = vmatpush1.bf16.msra.mxu0 %v3196
      %3210 = vmatprep.subr.bf16.mxu0 0
      %3211 = vmatpush1.bf16.msra.mxu0 %v3197
      %3212 = vmatprep.subr.bf16.mxu0 0
      %3213 = vmatpush1.bf16.msra.mxu0 %v3198
      %3214 = vmatprep.subr.bf16.mxu0 0
      %3215 = vmatpush1.bf16.msra.mxu0 0
      %3216 = vmatprep.subr.bf16.mxu0 0
      %3217 = vmatpush1.bf16.msra.mxu0 0
      %3218 = vmatprep.subr.bf16.mxu0 0
      %3219 = vmatpush1.bf16.msra.mxu0 0
      %3220 = vmatprep.subr.bf16.mxu0 0
      %3221 = vmatpush1.bf16.msra.mxu0 0
      %3222 = vmatprep.subr.bf16.mxu0 0
      %3223 = vmatpush1.bf16.msra.mxu0 0
      %3224 = vmatprep.subr.bf16.mxu0 0
      %3225 = vmatpush1.bf16.msra.mxu0 0
      %3226 = vmatprep.subr.bf16.mxu0 0
      %3227 = vmatpush1.bf16.msra.mxu0 0
      %3228 = vmatprep.subr.bf16.mxu0 0
      %3229 = vmatpush1.bf16.msra.mxu0 0
      %3230 = vmatprep.subr.bf16.mxu0 0
      %3231 = vmatpush1.bf16.msra.mxu0 0
      %3232 = vmatprep.subr.bf16.mxu0 0
      %3233 = vmatpush1.bf16.msra.mxu0 0
      %3234 = vmatprep.subr.bf16.mxu0 0
      %3235 = vmatpush1.bf16.msra.mxu0 0
      %3236 = vmatprep.subr.bf16.mxu0 0
      %3237 = vmatpush1.bf16.msra.mxu0 0
      %3238 = vmatprep.mubr.bf16.mxu0 0
      %3239 = vmatmul.mubr.bf16.gmra.mrb[0].mxu0 %v3204
      %v3240 = vpop.f32.mrb[0].mxu0
      %v3241 = vadd.f32 %v3177, %v3240
      %v3242 = vpop.f32.mrb[0].mxu0
      %v3243 = vpop.f32.mrb[0].mxu0
      %v3244 = vadd.f32 %v3177, %v3243
      %v3245 = vpop.f32.mrb[0].mxu0
      %3246 = vdwg.mxu0
      %v3247 = vadd.f32 %v2140, %v3241
      %v3248 = vadd.f32 %v2141, %v3244
      %s3249 = scalar_lea.vmem %s8, 1
      %v3250 = vld [vmem:[%s3249] sm:$0x1]
      %s3251 = scalar_lea.vmem %s9, 1
      %v3252 = vld [vmem:[%s3251] sm:$0x1]
      %v3253 = vsel %vm708, %v3247, 0.0
      %3254 = vadd.xlane.f32.xlu0 %v3253
      %v3255 = vpop.xlane.xlu0 %3254
      %v3256 = vsel %vm708, %v3248, 0.0
      %3257 = vadd.xlane.f32.xlu0 %v3256
      %v3258 = vpop.xlane.xlu0 %3257
      %v3259 = vmul.f32 %v3255, %v1762
      %v3260 = vmul.f32 %v3258, %v1762
      %v3261 = vmul.f32 %v3247, %v3247
      %v3262 = vmul.f32 %v3248, %v3248
      %v3263 = vsel %vm708, %v3261, 0.0
      %3264 = vadd.xlane.f32.xlu0 %v3263
      %v3265 = vpop.xlane.xlu0 %3264
      %v3266 = vsel %vm708, %v3262, 0.0
      %3267 = vadd.xlane.f32.xlu0 %v3266
      %v3268 = vpop.xlane.xlu0 %3267
      %v3269 = vmul.f32 %v3265, %v1762
      %v3270 = vmul.f32 %v3268, %v1762
      %v3271 = vmul.f32 %v3259, %v3259
      %v3272 = vmul.f32 %v3260, %v3260
      %v3273 = vsub.f32 %v3269, %v3271
      %v3274 = vsub.f32 %v3270, %v3272
      %v3275 = vsub.f32 %v3247, %v3259
      %v3276 = vsub.f32 %v3248, %v3260
      %v3277 = vadd.f32 %v3273, 1e-05
      %v3278 = vadd.f32 %v3274, 1e-05
      %v3279 = vrsqrt.pop %v3277
      %v3280 = vrsqrt.pop %v3278
      %v3281 = vmul.f32 %v3275, %v3279
      %v3282 = vmul.f32 %v3276, %v3280
      %v3284 = vlaneseq
      %v3285 = vshrl.u32 %v3284, 7
      %v3286 = vsub.s32 0, %v3285
      %v3287 = vrot.slane %v3250, %v3286
      %v3289 = vmul.f32 %v3281, %v3287
      %v3290 = vmul.f32 %v3282, %v3287
      %v3292 = vlaneseq
      %v3293 = vshrl.u32 %v3292, 7
      %v3294 = vsub.s32 0, %v3293
      %v3295 = vrot.slane %v3252, %v3294
      %v3297 = vadd.f32 %v3289, %v3295
      %v3298 = vadd.f32 %v3290, %v3295
      %v3299 = vpack.c.bf16 %v3298, %v3297
      %s3300 = scalar_lea.vmem %s12, 64
      %v3301 = vld [vmem:[%s3300] sm:$0xff]
      %v3302 = vld [vmem:[%s3300 + $0x8] sm:$0xff]
      %v3303 = vld [vmem:[%s3300 + $0x10] sm:$0xff]
      %v3304 = vld [vmem:[%s3300 + $0x18] sm:$0xff]
      %v3305 = vld [vmem:[%s3300 + $0x20] sm:$0xff]
      %v3306 = vld [vmem:[%s3300 + $0x28] sm:$0xff]
      %v3307 = vld [vmem:[%s3300 + $0x30] sm:$0xff]
      %v3308 = vld [vmem:[%s3300 + $0x38] sm:$0xff]
      %s3309 = scalar_lea.vmem %s13, 2
      %v3310 = vld [vmem:[%s3309] sm:$0x3]
      %v3312 = vlaneseq
      %v3313 = vshrl.u32 %v3312, 7
      %v3314 = vsub.s32 0, %v3313
      %v3315 = vrot.slane %v3310, %v3314
      %v3316 = vlaneseq
      %v3317 = vshrl.u32 %v3316, 7
      %v3318 = vsub.s32 1, %v3317
      %v3319 = vrot.slane %v3310, %v3318
      %v3330 = vunpack.c.l.b16 %v3301
      %v3331 = vunpack.c.h.b16 %v3301
      %v3332 = vunpack.c.l.b16 %v3302
      %v3333 = vunpack.c.h.b16 %v3302
      %v3334 = vunpack.c.l.b16 %v3303
      %v3335 = vunpack.c.h.b16 %v3303
      %v3336 = vunpack.c.l.b16 %v3304
      %v3337 = vunpack.c.h.b16 %v3304
      %v3338 = vunpack.c.l.b16 %v3305
      %v3339 = vunpack.c.h.b16 %v3305
      %v3340 = vunpack.c.l.b16 %v3306
      %v3341 = vunpack.c.h.b16 %v3306
      %v3342 = vunpack.c.l.b16 %v3307
      %v3343 = vunpack.c.h.b16 %v3307
      %v3344 = vunpack.c.l.b16 %v3308
      %v3345 = vunpack.c.h.b16 %v3308
      %v3346 = vpack.c.b16 %v3332, %v3330
      %v3347 = vpack.c.b16 %v3333, %v3331
      %v3348 = vpack.c.b16 %v3336, %v3334
      %v3349 = vpack.c.b16 %v3337, %v3335
      %v3350 = vpack.c.b16 %v3340, %v3338
      %v3351 = vpack.c.b16 %v3341, %v3339
      %v3352 = vpack.c.b16 %v3344, %v3342
      %v3353 = vpack.c.b16 %v3345, %v3343
      %v3363 = vsel %vm708, %v3299, 0
      %3365 = vmatprep.subr.bf16.mxu0 %v3347
      %3366 = vmatpush1.bf16.msra.mxu0 %v3346
      %3367 = vmatprep.subr.bf16.mxu0 %v3349
      %3368 = vmatpush1.bf16.msra.mxu0 %v3348
      %3369 = vmatprep.subr.bf16.mxu0 %v3351
      %3370 = vmatpush1.bf16.msra.mxu0 %v3350
      %3371 = vmatprep.subr.bf16.mxu0 %v3353
      %3372 = vmatpush1.bf16.msra.mxu0 %v3352
      %3373 = vmatprep.subr.bf16.mxu0 0
      %3374 = vmatpush1.bf16.msra.mxu0 0
      %3375 = vmatprep.subr.bf16.mxu0 0
      %3376 = vmatpush1.bf16.msra.mxu0 0
      %3377 = vmatprep.subr.bf16.mxu0 0
      %3378 = vmatpush1.bf16.msra.mxu0 0
      %3379 = vmatprep.subr.bf16.mxu0 0
      %3380 = vmatpush1.bf16.msra.mxu0 0
      %3381 = vmatprep.subr.bf16.mxu0 0
      %3382 = vmatpush1.bf16.msra.mxu0 0
      %3383 = vmatprep.subr.bf16.mxu0 0
      %3384 = vmatpush1.bf16.msra.mxu0 0
      %3385 = vmatprep.subr.bf16.mxu0 0
      %3386 = vmatpush1.bf16.msra.mxu0 0
      %3387 = vmatprep.subr.bf16.mxu0 0
      %3388 = vmatpush1.bf16.msra.mxu0 0
      %3389 = vmatprep.subr.bf16.mxu0 0
      %3390 = vmatpush1.bf16.msra.mxu0 0
      %3391 = vmatprep.subr.bf16.mxu0 0
      %3392 = vmatpush1.bf16.msra.mxu0 0
      %3393 = vmatprep.subr.bf16.mxu0 0
      %3394 = vmatpush1.bf16.msra.mxu0 0
      %3395 = vmatprep.subr.bf16.mxu0 0
      %3396 = vmatpush1.bf16.msra.mxu0 0
      %3397 = vmatprep.mubr.bf16.mxu0 0
      %3398 = vmatmul.mubr.bf16.gmra.mrb[0].mxu0 %v3363
      %v3399 = vpop.f32.mrb[0].mxu0
      %v3400 = vadd.f32 %v3315, %v3399
      %v3401 = vpop.f32.mrb[0].mxu0
      %v3402 = vadd.f32 %v3319, %v3401
      %v3403 = vpop.f32.mrb[0].mxu0
      %v3404 = vadd.f32 %v3315, %v3403
      %v3405 = vpop.f32.mrb[0].mxu0
      %v3406 = vadd.f32 %v3319, %v3405
      %3407 = vdwg.mxu0
      %v3408 = vmax.f32 %v3400, 0.0
      %v3409 = vmax.f32 %v3402, 0.0
      %v3410 = vmax.f32 %v3404, 0.0
      %v3411 = vmax.f32 %v3406, 0.0
      %v3412 = vpack.c.bf16 %v3410, %v3408
      %v3413 = vpack.c.bf16 %v3411, %v3409
      %s3414 = scalar_lea.vmem %s14, 128
      %v3415 = vld [vmem:[%s3414] sm:$0xf]
      %v3416 = vld [vmem:[%s3414 + $0x4] sm:$0xf]
      %v3417 = vld [vmem:[%s3414 + $0x8] sm:$0xf]
      %v3418 = vld [vmem:[%s3414 + $0xc] sm:$0xf]
      %v3419 = vld [vmem:[%s3414 + $0x10] sm:$0xf]
      %v3420 = vld [vmem:[%s3414 + $0x14] sm:$0xf]
      %v3421 = vld [vmem:[%s3414 + $0x18] sm:$0xf]
      %v3422 = vld [vmem:[%s3414 + $0x1c] sm:$0xf]
      %v3423 = vld [vmem:[%s3414 + $0x20] sm:$0xf]
      %v3424 = vld [vmem:[%s3414 + $0x24] sm:$0xf]
      %v3425 = vld [vmem:[%s3414 + $0x28] sm:$0xf]
      %v3426 = vld [vmem:[%s3414 + $0x2c] sm:$0xf]
      %v3427 = vld [vmem:[%s3414 + $0x30] sm:$0xf]
      %v3428 = vld [vmem:[%s3414 + $0x34] sm:$0xf]
      %v3429 = vld [vmem:[%s3414 + $0x38] sm:$0xf]
      %v3430 = vld [vmem:[%s3414 + $0x3c] sm:$0xf]
      %v3431 = vld [vmem:[%s3414 + $0x40] sm:$0xf]
      %v3432 = vld [vmem:[%s3414 + $0x44] sm:$0xf]
      %v3433 = vld [vmem:[%s3414 + $0x48] sm:$0xf]
      %v3434 = vld [vmem:[%s3414 + $0x4c] sm:$0xf]
      %v3435 = vld [vmem:[%s3414 + $0x50] sm:$0xf]
      %v3436 = vld [vmem:[%s3414 + $0x54] sm:$0xf]
      %v3437 = vld [vmem:[%s3414 + $0x58] sm:$0xf]
      %v3438 = vld [vmem:[%s3414 + $0x5c] sm:$0xf]
      %v3439 = vld [vmem:[%s3414 + $0x60] sm:$0xf]
      %v3440 = vld [vmem:[%s3414 + $0x64] sm:$0xf]
      %v3441 = vld [vmem:[%s3414 + $0x68] sm:$0xf]
      %v3442 = vld [vmem:[%s3414 + $0x6c] sm:$0xf]
      %v3443 = vld [vmem:[%s3414 + $0x70] sm:$0xf]
      %v3444 = vld [vmem:[%s3414 + $0x74] sm:$0xf]
      %v3445 = vld [vmem:[%s3414 + $0x78] sm:$0xf]
      %v3446 = vld [vmem:[%s3414 + $0x7c] sm:$0xf]
      %s3447 = scalar_lea.vmem %s15, 1
      %v3448 = vld [vmem:[%s3447] sm:$0x1]
      %v3450 = vlaneseq
      %v3451 = vshrl.u32 %v3450, 7
      %v3452 = vsub.s32 0, %v3451
      %v3453 = vrot.slane %v3448, %v3452
      %v3487 = vunpack.c.l.b16 %v3415
      %v3488 = vunpack.c.l.b16 %v3416
      %v3489 = vunpack.c.l.b16 %v3417
      %v3490 = vunpack.c.l.b16 %v3418
      %v3491 = vunpack.c.l.b16 %v3419
      %v3492 = vunpack.c.l.b16 %v3420
      %v3493 = vunpack.c.l.b16 %v3421
      %v3494 = vunpack.c.l.b16 %v3422
      %v3495 = vunpack.c.l.b16 %v3423
      %v3496 = vunpack.c.l.b16 %v3424
      %v3497 = vunpack.c.l.b16 %v3425
      %v3498 = vunpack.c.l.b16 %v3426
      %v3499 = vunpack.c.l.b16 %v3427
      %v3500 = vunpack.c.l.b16 %v3428
      %v3501 = vunpack.c.l.b16 %v3429
      %v3502 = vunpack.c.l.b16 %v3430
      %v3503 = vunpack.c.l.b16 %v3431
      %v3504 = vunpack.c.l.b16 %v3432
      %v3505 = vunpack.c.l.b16 %v3433
      %v3506 = vunpack.c.l.b16 %v3434
      %v3507 = vunpack.c.l.b16 %v3435
      %v3508 = vunpack.c.l.b16 %v3436
      %v3509 = vunpack.c.l.b16 %v3437
      %v3510 = vunpack.c.l.b16 %v3438
      %v3511 = vunpack.c.l.b16 %v3439
      %v3512 = vunpack.c.l.b16 %v3440
      %v3513 = vunpack.c.l.b16 %v3441
      %v3514 = vunpack.c.l.b16 %v3442
      %v3515 = vunpack.c.l.b16 %v3443
      %v3516 = vunpack.c.l.b16 %v3444
      %v3517 = vunpack.c.l.b16 %v3445
      %v3518 = vunpack.c.l.b16 %v3446
      %v3519 = vpack.c.b16 %v3488, %v3487
      %v3520 = vpack.c.b16 %v3490, %v3489
      %v3521 = vpack.c.b16 %v3492, %v3491
      %v3522 = vpack.c.b16 %v3494, %v3493
      %v3523 = vpack.c.b16 %v3496, %v3495
      %v3524 = vpack.c.b16 %v3498, %v3497
      %v3525 = vpack.c.b16 %v3500, %v3499
      %v3526 = vpack.c.b16 %v3502, %v3501
      %v3527 = vpack.c.b16 %v3504, %v3503
      %v3528 = vpack.c.b16 %v3506, %v3505
      %v3529 = vpack.c.b16 %v3508, %v3507
      %v3530 = vpack.c.b16 %v3510, %v3509
      %v3531 = vpack.c.b16 %v3512, %v3511
      %v3532 = vpack.c.b16 %v3514, %v3513
      %v3533 = vpack.c.b16 %v3516, %v3515
      %v3534 = vpack.c.b16 %v3518, %v3517
      %3551 = vmatprep.subr.bf16.mxu0 0
      %3552 = vmatpush1.bf16.msra.mxu0 %v3519
      %3553 = vmatprep.subr.bf16.mxu0 0
      %3554 = vmatpush1.bf16.msra.mxu0 %v3520
      %3555 = vmatprep.subr.bf16.mxu0 0
      %3556 = vmatpush1.bf16.msra.mxu0 %v3521
      %3557 = vmatprep.subr.bf16.mxu0 0
      %3558 = vmatpush1.bf16.msra.mxu0 %v3522
      %3559 = vmatprep.subr.bf16.mxu0 0
      %3560 = vmatpush1.bf16.msra.mxu0 %v3523
      %3561 = vmatprep.subr.bf16.mxu0 0
      %3562 = vmatpush1.bf16.msra.mxu0 %v3524
      %3563 = vmatprep.subr.bf16.mxu0 0
      %3564 = vmatpush1.bf16.msra.mxu0 %v3525
      %3565 = vmatprep.subr.bf16.mxu0 0
      %3566 = vmatpush1.bf16.msra.mxu0 %v3526
      %3567 = vmatprep.subr.bf16.mxu0 0
      %3568 = vmatpush1.bf16.msra.mxu0 %v3527
      %3569 = vmatprep.subr.bf16.mxu0 0
      %3570 = vmatpush1.bf16.msra.mxu0 %v3528
      %3571 = vmatprep.subr.bf16.mxu0 0
      %3572 = vmatpush1.bf16.msra.mxu0 %v3529
      %3573 = vmatprep.subr.bf16.mxu0 0
      %3574 = vmatpush1.bf16.msra.mxu0 %v3530
      %3575 = vmatprep.subr.bf16.mxu0 0
      %3576 = vmatpush1.bf16.msra.mxu0 %v3531
      %3577 = vmatprep.subr.bf16.mxu0 0
      %3578 = vmatpush1.bf16.msra.mxu0 %v3532
      %3579 = vmatprep.subr.bf16.mxu0 0
      %3580 = vmatpush1.bf16.msra.mxu0 %v3533
      %3581 = vmatprep.subr.bf16.mxu0 0
      %3582 = vmatpush1.bf16.msra.mxu0 %v3534
      %3583 = vmatprep.mubr.bf16.mxu0 %v3413
      %3584 = vmatmul.mubr.bf16.gmra.mrb[0].mxu0 %v3412
      %v3585 = vpop.f32.mrb[0].mxu0
      %v3586 = vadd.f32 %v3453, %v3585
      %v3587 = vpop.f32.mrb[0].mxu0
      %v3588 = vpop.f32.mrb[0].mxu0
      %v3589 = vadd.f32 %v3453, %v3588
      %v3590 = vpop.f32.mrb[0].mxu0
      %3591 = vdwg.mxu0
      %v3592 = vadd.f32 %v3297, %v3586
      %v3593 = vadd.f32 %v3298, %v3589
      %s3594 = scalar_lea.vmem %s10, 1
      %v3595 = vld [vmem:[%s3594] sm:$0x1]
      %s3596 = scalar_lea.vmem %s11, 1
      %v3597 = vld [vmem:[%s3596] sm:$0x1]
      %v3598 = vsel %vm708, %v3592, 0.0
      %3599 = vadd.xlane.f32.xlu0 %v3598
      %v3600 = vpop.xlane.xlu0 %3599
      %v3601 = vsel %vm708, %v3593, 0.0
      %3602 = vadd.xlane.f32.xlu0 %v3601
      %v3603 = vpop.xlane.xlu0 %3602
      %v3604 = vmul.f32 %v3600, %v1762
      %v3605 = vmul.f32 %v3603, %v1762
      %v3606 = vmul.f32 %v3592, %v3592
      %v3607 = vmul.f32 %v3593, %v3593
      %v3608 = vsel %vm708, %v3606, 0.0
      %3609 = vadd.xlane.f32.xlu0 %v3608
      %v3610 = vpop.xlane.xlu0 %3609
      %v3611 = vsel %vm708, %v3607, 0.0
      %3612 = vadd.xlane.f32.xlu0 %v3611
      %v3613 = vpop.xlane.xlu0 %3612
      %v3614 = vmul.f32 %v3610, %v1762
      %v3615 = vmul.f32 %v3613, %v1762
      %v3616 = vmul.f32 %v3604, %v3604
      %v3617 = vmul.f32 %v3605, %v3605
      %v3618 = vsub.f32 %v3614, %v3616
      %v3619 = vsub.f32 %v3615, %v3617
      %v3620 = vsub.f32 %v3592, %v3604
      %v3621 = vsub.f32 %v3593, %v3605
      %v3622 = vadd.f32 %v3618, 1e-05
      %v3623 = vadd.f32 %v3619, 1e-05
      %v3624 = vrsqrt.pop %v3622
      %v3625 = vrsqrt.pop %v3623
      %v3626 = vmul.f32 %v3620, %v3624
      %v3627 = vmul.f32 %v3621, %v3625
      %v3629 = vlaneseq
      %v3630 = vshrl.u32 %v3629, 7
      %v3631 = vsub.s32 0, %v3630
      %v3632 = vrot.slane %v3595, %v3631
      %v3634 = vmul.f32 %v3626, %v3632
      %v3635 = vmul.f32 %v3627, %v3632
      %v3637 = vlaneseq
      %v3638 = vshrl.u32 %v3637, 7
      %v3639 = vsub.s32 0, %v3638
      %v3640 = vrot.slane %v3597, %v3639
      %v3642 = vadd.f32 %v3634, %v3640
      %v3643 = vadd.f32 %v3635, %v3640
      %v3644 = vpack.c.bf16 %v3643, %v3642
      %v3645 = vld [vmem:[%s16] sm:$0xf]
      %v3646 = vld [vmem:[%s16 + $0x4] sm:$0xf]
      %v3647 = vld [vmem:[%s16 + $0x8] sm:$0xf]
      %v3648 = vld [vmem:[%s16 + $0xc] sm:$0xf]
      %v3649 = vld [vmem:[%s16 + $0x10] sm:$0xf]
      %v3650 = vld [vmem:[%s16 + $0x14] sm:$0xf]
      %v3651 = vld [vmem:[%s16 + $0x18] sm:$0xf]
      %v3652 = vld [vmem:[%s16 + $0x1c] sm:$0xf]
      %v3653 = vld [vmem:[%s17] sm:$0x1]
      %v3655 = vlaneseq
      %v3656 = vshrl.u32 %v3655, 7
      %v3657 = vsub.s32 0, %v3656
      %v3658 = vrot.slane %v3653, %v3657
      %v3668 = vunpack.c.l.b16 %v3645
      %v3669 = vunpack.c.l.b16 %v3646
      %v3670 = vunpack.c.l.b16 %v3647
      %v3671 = vunpack.c.l.b16 %v3648
      %v3672 = vunpack.c.l.b16 %v3649
      %v3673 = vunpack.c.l.b16 %v3650
      %v3674 = vunpack.c.l.b16 %v3651
      %v3675 = vunpack.c.l.b16 %v3652
      %v3676 = vpack.c.b16 %v3669, %v3668
      %v3677 = vpack.c.b16 %v3671, %v3670
      %v3678 = vpack.c.b16 %v3673, %v3672
      %v3679 = vpack.c.b16 %v3675, %v3674
      %v3685 = vsel %vm708, %v3644, 0
      %3687 = vmatprep.subr.bf16.mxu0 0
      %3688 = vmatpush1.bf16.msra.mxu0 %v3676
      %3689 = vmatprep.subr.bf16.mxu0 0
      %3690 = vmatpush1.bf16.msra.mxu0 %v3677
      %3691 = vmatprep.subr.bf16.mxu0 0
      %3692 = vmatpush1.bf16.msra.mxu0 %v3678
      %3693 = vmatprep.subr.bf16.mxu0 0
      %3694 = vmatpush1.bf16.msra.mxu0 %v3679
      %3695 = vmatprep.subr.bf16.mxu0 0
      %3696 = vmatpush1.bf16.msra.mxu0 0
      %3697 = vmatprep.subr.bf16.mxu0 0
      %3698 = vmatpush1.bf16.msra.mxu0 0
      %3699 = vmatprep.subr.bf16.mxu0 0
      %3700 = vmatpush1.bf16.msra.mxu0 0
      %3701 = vmatprep.subr.bf16.mxu0 0
      %3702 = vmatpush1.bf16.msra.mxu0 0
      %3703 = vmatprep.subr.bf16.mxu0 0
      %3704 = vmatpush1.bf16.msra.mxu0 0
      %3705 = vmatprep.subr.bf16.mxu0 0
      %3706 = vmatpush1.bf16.msra.mxu0 0
      %3707 = vmatprep.subr.bf16.mxu0 0
      %3708 = vmatpush1.bf16.msra.mxu0 0
      %3709 = vmatprep.subr.bf16.mxu0 0
      %3710 = vmatpush1.bf16.msra.mxu0 0
      %3711 = vmatprep.subr.bf16.mxu0 0
      %3712 = vmatpush1.bf16.msra.mxu0 0
      %3713 = vmatprep.subr.bf16.mxu0 0
      %3714 = vmatpush1.bf16.msra.mxu0 0
      %3715 = vmatprep.subr.bf16.mxu0 0
      %3716 = vmatpush1.bf16.msra.mxu0 0
      %3717 = vmatprep.subr.bf16.mxu0 0
      %3718 = vmatpush1.bf16.msra.mxu0 0
      %3719 = vmatprep.mubr.bf16.mxu0 0
      %3720 = vmatmul.mubr.bf16.gmra.mrb[0].mxu0 %v3685
      %v3721 = vpop.f32.mrb[0].mxu0
      %v3722 = vadd.f32 %v3658, %v3721
      %v3723 = vpop.f32.mrb[0].mxu0
      %v3724 = vpop.f32.mrb[0].mxu0
      %v3725 = vadd.f32 %v3658, %v3724
      %v3726 = vpop.f32.mrb[0].mxu0
      %3727 = vdwg.mxu0
      %3728 = vst [vmem:[%s577] sm:$0xff] %v3722
      %3729 = vst [vmem:[%s577 + $0x8] sm:$0xff] %v3725
      %s3730 = smul.u32 2, %s29
      %p3731 = scmp.lt.s32.totalorder %s3730, 3
      %s3732 = scalar_select %p3731, %s3730, 3
      %s3733 = smul.addr %s3732, 8
      %s3734 = scalar_lea.vmem %s18, %s3733
      // Predicated region
      $region93: #{masked_autoencoder_forward.1} parent=91 // pred_check
        %p3735 = pneg %p430
      $region94: #{masked_autoencoder_forward.1} parent=91 // pred_check_branch
        %3737 = sbr.rel (%p3735) target = $region96
      $region95: #{masked_autoencoder_forward.1} parent=91 // pred_region
        %s3738 = smul.u32 2, %s29
      $region96: #{masked_autoencoder_forward.1} parent=91 // pred_fallthru
        _
    $region92: #{masked_autoencoder_forward.1} parent=5 // pred_fallthru
      _
    %p3739 = scmp.le.s32.totalorder 2, %s24
    // Predicated region
    $region97: #{masked_autoencoder_forward.1} parent=5 // pred_check
      %p3740 = pneg %p3739
    $region98: #{masked_autoencoder_forward.1} parent=5 // pred_check_branch
      %3742 = sbr.rel (%p3740) target = $region100
    $region99: #{masked_autoencoder_forward.1} parent=5 // pred_region
      %s3743 = ssub.s32 %s24, 2
      // Predicated region
      $region101: #{masked_autoencoder_forward.1} parent=99 // pred_check
        %p3744 = pneg %p436
      $region102: #{masked_autoencoder_forward.1} parent=99 // pred_check_branch
        %3746 = sbr.rel (%p3744) target = $region104
      $region103: #{masked_autoencoder_forward.1} parent=99 // pred_region
        %s3747 = smul.u32 2, %s30
        %p3748 = scmp.lt.s32.totalorder %s3747, 3
        %s3749 = scalar_select %p3748, %s3747, 3
        %s3750 = smul.addr %s3749, 8
        %s3751 = scalar_lea.vmem %s18, %s3750
      $region104: #{masked_autoencoder_forward.1} parent=99 // pred_fallthru
        _
    $region100: #{masked_autoencoder_forward.1} parent=5 // pred_fallthru
      _
  $region6: #{masked_autoencoder_forward.1} parent=0 // loop_footer
    %s28 = sadd.s32 1, %s24
  $region7: #{masked_autoencoder_forward.1} parent=0 // loop_footer_branch
    %23 = sbr.rel target = $region3
  $region8: #{masked_autoencoder_forward.1} parent=0 // loop_exit
    _

</llo_original>
